<compile_context>
chip_gen: v7x
topology: tpu7x:2x2x1
jax: 0.10.0
libtpu: 0.0.40
codegen_flags: <defaults>
</compile_context>

<pallas_src>
from functools import partial

import numpy as np
import jax
import jax.numpy as jnp
from jax import lax
from jax.experimental import pallas as pl
from jax.experimental.pallas import tpu as pltpu

# ----- vocabulary, matching the PyTorch script's construction ---------------
original_text = "the quick brown fox jumps over the lazy dog".lower()
tokenized_text = list(original_text)
unique_characters = sorted(list(set(tokenized_text)))
c2ix = {character: ix for ix, character in enumerate(unique_characters)}
vocab_size = len(c2ix)                       # 27

EMB = 48      # embedding_dim
HID = 96      # LSTM hidden_size

# Padded kernel-internal sizes (vreg-aligned).
HID_PAD = 128    # each gate block = exactly one 128-lane tile
V_PAD = 128
B_PAD = 8


def _sigmoid(x):
    # logistic(x) == 0.5*tanh(0.5*x) + 0.5 exactly: one EUP op + cheap VPU ops.
    return 0.5 * jnp.tanh(0.5 * x) + 0.5


# ----- Pallas kernel: whole forward (recurrence unrolled in-kernel) ---------
def lstm_kernel(tok_ref, xg_tbl_ref, whh_ref, wout_ref, bout_ref,
                h0_ref, c0_ref,
                logits_ref, h_out_ref, c_out_ref,
                xg_ref, hs_ref,
                *, seq_len, bp, hp, vp):
    nrows = seq_len * bp

    # Embedding + input projection, folded offline into xg_tbl:
    # one-hot(tokens) @ xg_tbl selects row tok[t,b] exactly (0/1 matmul).
    tok = tok_ref[...]                                           # (T*Bp, 1) i32
    onehot = (tok == lax.broadcasted_iota(jnp.int32, (nrows, vp), 1)
              ).astype(jnp.float32)                              # (T*Bp, Vp)
    xg_ref[...] = jnp.dot(onehot, xg_tbl_ref[...],
                          preferred_element_type=jnp.float32)    # (T*Bp, 4*Hp)

    h = h0_ref[...]                          # (Bp, Hp)
    c = c0_ref[...]                          # (Bp, Hp)

    # Fully unrolled static recurrence; only h @ W_hh^T is serial.
    # whh is re-read from VMEM each step (cheap vld) to keep vreg pressure low.
    for t in range(seq_len):
        g = xg_ref[pl.ds(t * bp, bp), :] + jnp.dot(
            h, whh_ref[...], preferred_element_type=jnp.float32)  # (Bp, 4*Hp)

        # Gate order [i, f, o, g]: one contiguous 3*Hp sigmoid slab + one tanh.
        sig = _sigmoid(g[:, :3 * hp])
        i_g = sig[:, 0 * hp:1 * hp]
        f_g = sig[:, 1 * hp:2 * hp]
        o_g = sig[:, 2 * hp:3 * hp]
        g_g = jnp.tanh(g[:, 3 * hp:])

        c = f_g * c + i_g * g_g
        h = o_g * jnp.tanh(c)
        hs_ref[pl.ds(t * bp, bp), :] = h     # aligned VMEM store, off the chain

    # Final states written exactly once (aliased with h0/c0 buffers).
    h_out_ref[...] = h
    c_out_ref[...] = c

    # Batched output projection from the VMEM scratch; lane-dense (Vp = 128).
    logits_ref[...] = (jnp.dot(hs_ref[...], wout_ref[...],
                               preferred_element_type=jnp.float32)
                       + bout_ref[...])


# ----- one-time parameter prep (hoisted out of the per-call path) -----------
def prepare_params(params):
    """Pad / gate-block all weights once; fold embedding + biases into W_ih."""
    perm = jnp.array([0, 1, 3, 2])   # PyTorch [i,f,g,o] -> kernel [i,f,o,g]

    w_ih4 = params["w_ih"].reshape(4, HID, EMB)[perm]            # (4,H,E)
    w_hh4 = params["w_hh"].reshape(4, HID, HID)[perm]            # (4,H,H)
    b4 = (params["b_ih"] + params["b_hh"]).reshape(4, HID)[perm] # (4,H)

    # xg_table[v] = E[v] @ W_ih^T + b  (gate-blocked at 128-lane boundaries).
    xg_v = jnp.einsum("ve,kme->vkm", params["embedding"], w_ih4) + b4[None]
    xg_table = jnp.zeros((V_PAD, 4, HID_PAD), jnp.float32)
    xg_table = xg_table.at[:vocab_size, :, :HID].set(xg_v)
    xg_table = xg_table.reshape(V_PAD, 4 * HID_PAD)

    # W_hh^T, gate-blocked: whh_t[j, k*Hp + m] = W_hh[gate k][m, j].
    whh_t = jnp.zeros((HID_PAD, 4, HID_PAD), jnp.float32)
    whh_t = whh_t.at[:HID, :, :HID].set(jnp.transpose(w_hh4, (2, 0, 1)))
    whh_t = whh_t.reshape(HID_PAD, 4 * HID_PAD)

    wout_t = jnp.zeros((HID_PAD, V_PAD), jnp.float32)
    wout_t = wout_t.at[:HID, :vocab_size].set(params["w_out"].T)
    bout = jnp.zeros((1, V_PAD), jnp.float32).at[0, :vocab_size].set(
        params["b_out"])

    return {"xg_table": xg_table, "whh_t": whh_t,
            "wout_t": wout_t, "bout": bout}


# ----- wrapper: CharacterLSTM.forward ----------------------------------------
def character_lstm_forward(tokens, states, prepped):
    """tokens: (B, T) int32; states: (h0, c0) each (1, B, HID) like nn.LSTM."""
    h0, c0 = states
    B, T = tokens.shape
    V = vocab_size

    # Per-call prep is now only tiny int/state padding (few small HLOs).
    tok_col = jnp.zeros((T, B_PAD), jnp.int32)
    tok_col = tok_col.at[:, :B].set(tokens.T.astype(jnp.int32))
    tok_col = tok_col.reshape(T * B_PAD, 1)

    h0p = jnp.zeros((B_PAD, HID_PAD), jnp.float32).at[:B, :HID].set(h0[0])
    c0p = jnp.zeros((B_PAD, HID_PAD), jnp.float32).at[:B, :HID].set(c0[0])

    kernel = partial(lstm_kernel, seq_len=T, bp=B_PAD, hp=HID_PAD, vp=V_PAD)

    logits_p, h_p, c_p = pl.pallas_call(
        kernel,
        out_shape=(jax.ShapeDtypeStruct((T * B_PAD, V_PAD), jnp.float32),
                   jax.ShapeDtypeStruct((B_PAD, HID_PAD), jnp.float32),
                   jax.ShapeDtypeStruct((B_PAD, HID_PAD), jnp.float32)),
        grid=(1,),
        in_specs=[
            pl.BlockSpec((T * B_PAD, 1), lambda i: (0, 0)),           # tokens
            pl.BlockSpec((V_PAD, 4 * HID_PAD), lambda i: (0, 0)),     # xg table
            pl.BlockSpec((HID_PAD, 4 * HID_PAD), lambda i: (0, 0)),   # W_hh^T
            pl.BlockSpec((HID_PAD, V_PAD), lambda i: (0, 0)),         # W_out^T
            pl.BlockSpec((1, V_PAD), lambda i: (0, 0)),               # b_out
            pl.BlockSpec((B_PAD, HID_PAD), lambda i: (0, 0)),         # h0
            pl.BlockSpec((B_PAD, HID_PAD), lambda i: (0, 0)),         # c0
        ],
        out_specs=(
            pl.BlockSpec((T * B_PAD, V_PAD), lambda i: (0, 0)),       # logits
            pl.BlockSpec((B_PAD, HID_PAD), lambda i: (0, 0)),         # final h
            pl.BlockSpec((B_PAD, HID_PAD), lambda i: (0, 0)),         # final c
        ),
        scratch_shapes=[
            pltpu.VMEM((T * B_PAD, 4 * HID_PAD), jnp.float32),        # xg
            pltpu.VMEM((T * B_PAD, HID_PAD), jnp.float32),            # hs
        ],
        input_output_aliases={5: 1, 6: 2},    # h0 -> h_out, c0 -> c_out
        compiler_params=pltpu.CompilerParams(
            dimension_semantics=("arbitrary",)),
    )(tok_col, prepped["xg_table"], prepped["whh_t"], prepped["wout_t"],
      prepped["bout"], h0p, c0p)

    # Strip padding, restore PyTorch semantics: (B, T, V).reshape(-1, V).
    logits = logits_p.reshape(T, B_PAD, V_PAD)[:, :B, :V]      # (T, B, V)
    out = jnp.transpose(logits, (1, 0, 2)).reshape(-1, V)
    h_n = h_p[:B, :HID][None]                                  # (1, B, HID)
    c_n = c_p[:B, :HID][None]
    return out, (h_n, c_n)


character_lstm_forward = jax.jit(character_lstm_forward)


# ----- pure-JAX reference for verification -----------------------------------
def reference_forward(tokens, states, params):
    h, c = states[0][0], states[1][0]
    emb = jnp.take(params["embedding"], tokens, axis=0)        # (B, T, EMB)

    def step(carry, x_t):
        h, c = carry
        gates = (x_t @ params["w_ih"].T + params["b_ih"]
                 + h @ params["w_hh"].T + params["b_hh"])
        i, f, g, o = jnp.split(gates, 4, axis=-1)
        c = jax.nn.sigmoid(f) * c + jax.nn.sigmoid(i) * jnp.tanh(g)
        h = jax.nn.sigmoid(o) * jnp.tanh(c)
        return (h, c), h

    (h, c), hs = jax.lax.scan(step, (h, c), jnp.transpose(emb, (1, 0, 2)))
    hs = jnp.transpose(hs, (1, 0, 2))                          # (B, T, HID)
    out = hs @ params["w_out"].T + params["b_out"]
    return out.reshape(-1, vocab_size), (h[None], c[None])


if __name__ == "__main__":
    key = jax.random.PRNGKey(0)
    ks = jax.random.split(key, 8)
    B, T = 2, 8

    # Deterministic synthetic parameters (shapes from __init__).
    params = {
        "embedding": jax.random.normal(ks[0], (vocab_size, EMB), jnp.float32),
        "w_ih": 0.1 * jax.random.normal(ks[1], (4 * HID, EMB), jnp.float32),
        "w_hh": 0.1 * jax.random.normal(ks[2], (4 * HID, HID), jnp.float32),
        "b_ih": 0.1 * jax.random.normal(ks[3], (4 * HID,), jnp.float32),
        "b_hh": 0.1 * jax.random.normal(ks[4], (4 * HID,), jnp.float32),
        "w_out": 0.1 * jax.random.normal(ks[5], (vocab_size, HID), jnp.float32),
        "b_out": 0.1 * jax.random.normal(ks[6], (vocab_size,), jnp.float32),
    }

    tokens = jax.random.randint(ks[7], (B, T), 0, vocab_size, dtype=jnp.int32)
    # __init_state__ equivalent
    h0 = jnp.zeros((1, B, HID), jnp.float32)
    c0 = jnp.zeros((1, B, HID), jnp.float32)

    # One-time, parameter-load-time weight prep (out of the per-call path).
    prepped = jax.tree_util.tree_map(
        jax.block_until_ready, prepare_params(params))

    out, (h_n, c_n) = character_lstm_forward(tokens, (h0, c0), prepped)
    jax.block_until_ready((out, h_n, c_n))

    ref_out, (ref_h, ref_c) = reference_forward(tokens, (h0, c0), params)
    assert out.shape == (B * T, vocab_size)
    np.testing.assert_allclose(np.asarray(out), np.asarray(ref_out),
                               rtol=1e-4, atol=1e-4)
    np.testing.assert_allclose(np.asarray(h_n), np.asarray(ref_h),
                               rtol=1e-4, atol=1e-4)
    np.testing.assert_allclose(np.asarray(c_n), np.asarray(ref_c),
                               rtol=1e-4, atol=1e-4)
    print("KERNEL_OK")
</pallas_src>

<mosaic_0001>
module attributes {stable_mosaic.version = 11 : i64} {
  func.func @lstm_kernel(%arg0: i32, %arg1: memref<64x1xi32, #tpu.memory_space<vmem>>, %arg2: memref<128x512xf32, #tpu.memory_space<vmem>>, %arg3: memref<128x512xf32, #tpu.memory_space<vmem>>, %arg4: memref<128x128xf32, #tpu.memory_space<vmem>>, %arg5: memref<1x128xf32, #tpu.memory_space<vmem>>, %arg6: memref<8x128xf32, #tpu.memory_space<vmem>>, %arg7: memref<8x128xf32, #tpu.memory_space<vmem>>, %arg8: memref<64x128xf32, #tpu.memory_space<vmem>>, %arg9: memref<8x128xf32, #tpu.memory_space<vmem>>, %arg10: memref<8x128xf32, #tpu.memory_space<vmem>>, %arg11: memref<64x512xf32, #tpu.memory_space<vmem>>, %arg12: memref<64x128xf32, #tpu.memory_space<vmem>>) attributes {dimension_semantics = [#tpu.dimension_semantics<arbitrary>], iteration_bounds = array<i64: 1>, scalar_prefetch = 0 : i64, scratch_operands = 2 : i64, tpu.core_type = #tpu.core_type<tc>, window_params = [{pipeline_mode = #tpu.pipeline_mode<synchronous>, transform_indices = @transform_0, window_bounds = array<i64: 64, 1>}, {pipeline_mode = #tpu.pipeline_mode<synchronous>, transform_indices = @transform_1, window_bounds = array<i64: 128, 512>}, {pipeline_mode = #tpu.pipeline_mode<synchronous>, transform_indices = @transform_2, window_bounds = array<i64: 128, 512>}, {pipeline_mode = #tpu.pipeline_mode<synchronous>, transform_indices = @transform_3, window_bounds = array<i64: 128, 128>}, {pipeline_mode = #tpu.pipeline_mode<synchronous>, transform_indices = @transform_4, window_bounds = array<i64: 1, 128>}, {pipeline_mode = #tpu.pipeline_mode<synchronous>, transform_indices = @transform_5, window_bounds = array<i64: 8, 128>}, {pipeline_mode = #tpu.pipeline_mode<synchronous>, transform_indices = @transform_6, window_bounds = array<i64: 8, 128>}, {pipeline_mode = #tpu.pipeline_mode<synchronous>, transform_indices = @transform_7, window_bounds = array<i64: 64, 128>}, {pipeline_mode = #tpu.pipeline_mode<synchronous>, transform_indices = @transform_8, window_bounds = array<i64: 8, 128>}, {pipeline_mode = #tpu.pipeline_mode<synchronous>, transform_indices = @transform_9, window_bounds = array<i64: 8, 128>}]} {
    %c0 = arith.constant 0 : index
    %c0_0 = arith.constant 0 : index
    %0 = vector.load %arg1[%c0, %c0_0] : memref<64x1xi32, #tpu.memory_space<vmem>>, vector<64x1xi32>
    %1 = tpu.iota {dimensions = array<i32: 1>} : vector<64x128xi32>
    %2 = vector.broadcast %0 : vector<64x1xi32> to vector<64x128xi32>
    %3 = arith.cmpi eq, %2, %1 : vector<64x128xi32>
    %4 = arith.extui %3 : vector<64x128xi1> to vector<64x128xi32>
    %5 = arith.sitofp %4 : vector<64x128xi32> to vector<64x128xf32>
    %c0_1 = arith.constant 0 : index
    %c0_2 = arith.constant 0 : index
    %6 = vector.load %arg2[%c0_1, %c0_2] : memref<128x512xf32, #tpu.memory_space<vmem>>, vector<128x512xf32>
    %cst = arith.constant dense<0.000000e+00> : vector<64x512xf32>
    %7 = tpu.matmul %5, %6, %cst {dimension_numbers = #tpu.dot_dimension_numbers<[1], [0], [0], [1], [0, 0, 1, 1], [], []>} : vector<64x128xf32>, vector<128x512xf32>, vector<64x512xf32> -> vector<64x512xf32>
    %c0_3 = arith.constant 0 : index
    %c0_4 = arith.constant 0 : index
    %8 = vector.load %arg11[%c0_3, %c0_4] : memref<64x512xf32, #tpu.memory_space<vmem>>, vector<64x512xf32>
    tpu.vector_store %arg11[%c0_3, %c0_4], %7 {strides = array<i32>} : memref<64x512xf32, #tpu.memory_space<vmem>>, vector<64x512xf32>,
    %c0_5 = arith.constant 0 : index
    %c0_6 = arith.constant 0 : index
    %9 = vector.load %arg6[%c0_5, %c0_6] : memref<8x128xf32, #tpu.memory_space<vmem>>, vector<8x128xf32>
    %c0_7 = arith.constant 0 : index
    %c0_8 = arith.constant 0 : index
    %10 = vector.load %arg7[%c0_7, %c0_8] : memref<8x128xf32, #tpu.memory_space<vmem>>, vector<8x128xf32>
    %c0_9 = arith.constant 0 : index
    %c0_10 = arith.constant 0 : index
    %11 = vector.load %arg11[%c0_9, %c0_10] : memref<64x512xf32, #tpu.memory_space<vmem>>, vector<8x512xf32>
    %c0_11 = arith.constant 0 : index
    %c0_12 = arith.constant 0 : index
    %12 = vector.load %arg3[%c0_11, %c0_12] : memref<128x512xf32, #tpu.memory_space<vmem>>, vector<128x512xf32>
    %cst_13 = arith.constant dense<0.000000e+00> : vector<8x512xf32>
    %13 = tpu.matmul %9, %12, %cst_13 {dimension_numbers = #tpu.dot_dimension_numbers<[1], [0], [0], [1], [0, 0, 1, 1], [], []>} : vector<8x128xf32>, vector<128x512xf32>, vector<8x512xf32> -> vector<8x512xf32>
    %14 = arith.addf %11, %13 : vector<8x512xf32>
    %15 = vector.extract_strided_slice %14 {offsets = [0, 0], sizes = [8, 384], strides = [1, 1]} : vector<8x512xf32> to vector<8x384xf32>
    %cst_14 = arith.constant 5.000000e-01 : f32
    %16 = vector.broadcast %cst_14 : f32 to vector<8x384xf32>
    %17 = arith.mulf %16, %15 : vector<8x384xf32>
    %18 = math.tanh %17 : vector<8x384xf32>
    %cst_15 = arith.constant 5.000000e-01 : f32
    %19 = vector.broadcast %cst_15 : f32 to vector<8x384xf32>
    %20 = arith.mulf %19, %18 : vector<8x384xf32>
    %cst_16 = arith.constant 5.000000e-01 : f32
    %21 = vector.broadcast %cst_16 : f32 to vector<8x384xf32>
    %22 = arith.addf %20, %21 : vector<8x384xf32>
    %23 = vector.extract_strided_slice %22 {offsets = [0, 0], sizes = [8, 128], strides = [1, 1]} : vector<8x384xf32> to vector<8x128xf32>
    %24 = vector.extract_strided_slice %22 {offsets = [0, 128], sizes = [8, 128], strides = [1, 1]} : vector<8x384xf32> to vector<8x128xf32>
    %25 = vector.extract_strided_slice %22 {offsets = [0, 256], sizes = [8, 128], strides = [1, 1]} : vector<8x384xf32> to vector<8x128xf32>
    %26 = vector.extract_strided_slice %14 {offsets = [0, 384], sizes = [8, 128], strides = [1, 1]} : vector<8x512xf32> to vector<8x128xf32>
    %27 = math.tanh %26 : vector<8x128xf32>
    %28 = arith.mulf %24, %10 : vector<8x128xf32>
    %29 = arith.mulf %23, %27 : vector<8x128xf32>
    %30 = arith.addf %28, %29 : vector<8x128xf32>
    %31 = math.tanh %30 : vector<8x128xf32>
    %32 = arith.mulf %25, %31 : vector<8x128xf32>
    %c0_17 = arith.constant 0 : index
    %c0_18 = arith.constant 0 : index
    %33 = vector.load %arg12[%c0_17, %c0_18] : memref<64x128xf32, #tpu.memory_space<vmem>>, vector<8x128xf32>
    tpu.vector_store %arg12[%c0_17, %c0_18], %32 {strides = array<i32>} : memref<64x128xf32, #tpu.memory_space<vmem>>, vector<8x128xf32>,
    %c8 = arith.constant 8 : index
    %c0_19 = arith.constant 0 : index
    %34 = vector.load %arg11[%c8, %c0_19] : memref<64x512xf32, #tpu.memory_space<vmem>>, vector<8x512xf32>
    %c0_20 = arith.constant 0 : index
    %c0_21 = arith.constant 0 : index
    %35 = vector.load %arg3[%c0_20, %c0_21] : memref<128x512xf32, #tpu.memory_space<vmem>>, vector<128x512xf32>
    %cst_22 = arith.constant dense<0.000000e+00> : vector<8x512xf32>
    %36 = tpu.matmul %32, %35, %cst_22 {dimension_numbers = #tpu.dot_dimension_numbers<[1], [0], [0], [1], [0, 0, 1, 1], [], []>} : vector<8x128xf32>, vector<128x512xf32>, vector<8x512xf32> -> vector<8x512xf32>
    %37 = arith.addf %34, %36 : vector<8x512xf32>
    %38 = vector.extract_strided_slice %37 {offsets = [0, 0], sizes = [8, 384], strides = [1, 1]} : vector<8x512xf32> to vector<8x384xf32>
    %cst_23 = arith.constant 5.000000e-01 : f32
    %39 = vector.broadcast %cst_23 : f32 to vector<8x384xf32>
    %40 = arith.mulf %39, %38 : vector<8x384xf32>
    %41 = math.tanh %40 : vector<8x384xf32>
    %cst_24 = arith.constant 5.000000e-01 : f32
    %42 = vector.broadcast %cst_24 : f32 to vector<8x384xf32>
    %43 = arith.mulf %42, %41 : vector<8x384xf32>
    %cst_25 = arith.constant 5.000000e-01 : f32
    %44 = vector.broadcast %cst_25 : f32 to vector<8x384xf32>
    %45 = arith.addf %43, %44 : vector<8x384xf32>
    %46 = vector.extract_strided_slice %45 {offsets = [0, 0], sizes = [8, 128], strides = [1, 1]} : vector<8x384xf32> to vector<8x128xf32>
    %47 = vector.extract_strided_slice %45 {offsets = [0, 128], sizes = [8, 128], strides = [1, 1]} : vector<8x384xf32> to vector<8x128xf32>
    %48 = vector.extract_strided_slice %45 {offsets = [0, 256], sizes = [8, 128], strides = [1, 1]} : vector<8x384xf32> to vector<8x128xf32>
    %49 = vector.extract_strided_slice %37 {offsets = [0, 384], sizes = [8, 128], strides = [1, 1]} : vector<8x512xf32> to vector<8x128xf32>
    %50 = math.tanh %49 : vector<8x128xf32>
    %51 = arith.mulf %47, %30 : vector<8x128xf32>
    %52 = arith.mulf %46, %50 : vector<8x128xf32>
    %53 = arith.addf %51, %52 : vector<8x128xf32>
    %54 = math.tanh %53 : vector<8x128xf32>
    %55 = arith.mulf %48, %54 : vector<8x128xf32>
    %c8_26 = arith.constant 8 : index
    %c0_27 = arith.constant 0 : index
    %56 = vector.load %arg12[%c8_26, %c0_27] : memref<64x128xf32, #tpu.memory_space<vmem>>, vector<8x128xf32>
    tpu.vector_store %arg12[%c8_26, %c0_27], %55 {strides = array<i32>} : memref<64x128xf32, #tpu.memory_space<vmem>>, vector<8x128xf32>,
    %c16 = arith.constant 16 : index
    %c0_28 = arith.constant 0 : index
    %57 = vector.load %arg11[%c16, %c0_28] : memref<64x512xf32, #tpu.memory_space<vmem>>, vector<8x512xf32>
    %c0_29 = arith.constant 0 : index
    %c0_30 = arith.constant 0 : index
    %58 = vector.load %arg3[%c0_29, %c0_30] : memref<128x512xf32, #tpu.memory_space<vmem>>, vector<128x512xf32>
    %cst_31 = arith.constant dense<0.000000e+00> : vector<8x512xf32>
    %59 = tpu.matmul %55, %58, %cst_31 {dimension_numbers = #tpu.dot_dimension_numbers<[1], [0], [0], [1], [0, 0, 1, 1], [], []>} : vector<8x128xf32>, vector<128x512xf32>, vector<8x512xf32> -> vector<8x512xf32>
    %60 = arith.addf %57, %59 : vector<8x512xf32>
    %61 = vector.extract_strided_slice %60 {offsets = [0, 0], sizes = [8, 384], strides = [1, 1]} : vector<8x512xf32> to vector<8x384xf32>
    %cst_32 = arith.constant 5.000000e-01 : f32
    %62 = vector.broadcast %cst_32 : f32 to vector<8x384xf32>
    %63 = arith.mulf %62, %61 : vector<8x384xf32>
    %64 = math.tanh %63 : vector<8x384xf32>
    %cst_33 = arith.constant 5.000000e-01 : f32
    %65 = vector.broadcast %cst_33 : f32 to vector<8x384xf32>
    %66 = arith.mulf %65, %64 : vector<8x384xf32>
    %cst_34 = arith.constant 5.000000e-01 : f32
    %67 = vector.broadcast %cst_34 : f32 to vector<8x384xf32>
    %68 = arith.addf %66, %67 : vector<8x384xf32>
    %69 = vector.extract_strided_slice %68 {offsets = [0, 0], sizes = [8, 128], strides = [1, 1]} : vector<8x384xf32> to vector<8x128xf32>
    %70 = vector.extract_strided_slice %68 {offsets = [0, 128], sizes = [8, 128], strides = [1, 1]} : vector<8x384xf32> to vector<8x128xf32>
    %71 = vector.extract_strided_slice %68 {offsets = [0, 256], sizes = [8, 128], strides = [1, 1]} : vector<8x384xf32> to vector<8x128xf32>
    %72 = vector.extract_strided_slice %60 {offsets = [0, 384], sizes = [8, 128], strides = [1, 1]} : vector<8x512xf32> to vector<8x128xf32>
    %73 = math.tanh %72 : vector<8x128xf32>
    %74 = arith.mulf %70, %53 : vector<8x128xf32>
    %75 = arith.mulf %69, %73 : vector<8x128xf32>
    %76 = arith.addf %74, %75 : vector<8x128xf32>
    %77 = math.tanh %76 : vector<8x128xf32>
    %78 = arith.mulf %71, %77 : vector<8x128xf32>
    %c16_35 = arith.constant 16 : index
    %c0_36 = arith.constant 0 : index
    %79 = vector.load %arg12[%c16_35, %c0_36] : memref<64x128xf32, #tpu.memory_space<vmem>>, vector<8x128xf32>
    tpu.vector_store %arg12[%c16_35, %c0_36], %78 {strides = array<i32>} : memref<64x128xf32, #tpu.memory_space<vmem>>, vector<8x128xf32>,
    %c24 = arith.constant 24 : index
    %c0_37 = arith.constant 0 : index
    %80 = vector.load %arg11[%c24, %c0_37] : memref<64x512xf32, #tpu.memory_space<vmem>>, vector<8x512xf32>
    %c0_38 = arith.constant 0 : index
    %c0_39 = arith.constant 0 : index
    %81 = vector.load %arg3[%c0_38, %c0_39] : memref<128x512xf32, #tpu.memory_space<vmem>>, vector<128x512xf32>
    %cst_40 = arith.constant dense<0.000000e+00> : vector<8x512xf32>
    %82 = tpu.matmul %78, %81, %cst_40 {dimension_numbers = #tpu.dot_dimension_numbers<[1], [0], [0], [1], [0, 0, 1, 1], [], []>} : vector<8x128xf32>, vector<128x512xf32>, vector<8x512xf32> -> vector<8x512xf32>
    %83 = arith.addf %80, %82 : vector<8x512xf32>
    %84 = vector.extract_strided_slice %83 {offsets = [0, 0], sizes = [8, 384], strides = [1, 1]} : vector<8x512xf32> to vector<8x384xf32>
    %cst_41 = arith.constant 5.000000e-01 : f32
    %85 = vector.broadcast %cst_41 : f32 to vector<8x384xf32>
    %86 = arith.mulf %85, %84 : vector<8x384xf32>
    %87 = math.tanh %86 : vector<8x384xf32>
    %cst_42 = arith.constant 5.000000e-01 : f32
    %88 = vector.broadcast %cst_42 : f32 to vector<8x384xf32>
    %89 = arith.mulf %88, %87 : vector<8x384xf32>
    %cst_43 = arith.constant 5.000000e-01 : f32
    %90 = vector.broadcast %cst_43 : f32 to vector<8x384xf32>
    %91 = arith.addf %89, %90 : vector<8x384xf32>
    %92 = vector.extract_strided_slice %91 {offsets = [0, 0], sizes = [8, 128], strides = [1, 1]} : vector<8x384xf32> to vector<8x128xf32>
    %93 = vector.extract_strided_slice %91 {offsets = [0, 128], sizes = [8, 128], strides = [1, 1]} : vector<8x384xf32> to vector<8x128xf32>
    %94 = vector.extract_strided_slice %91 {offsets = [0, 256], sizes = [8, 128], strides = [1, 1]} : vector<8x384xf32> to vector<8x128xf32>
    %95 = vector.extract_strided_slice %83 {offsets = [0, 384], sizes = [8, 128], strides = [1, 1]} : vector<8x512xf32> to vector<8x128xf32>
    %96 = math.tanh %95 : vector<8x128xf32>
    %97 = arith.mulf %93, %76 : vector<8x128xf32>
    %98 = arith.mulf %92, %96 : vector<8x128xf32>
    %99 = arith.addf %97, %98 : vector<8x128xf32>
    %100 = math.tanh %99 : vector<8x128xf32>
    %101 = arith.mulf %94, %100 : vector<8x128xf32>
    %c24_44 = arith.constant 24 : index
    %c0_45 = arith.constant 0 : index
    %102 = vector.load %arg12[%c24_44, %c0_45] : memref<64x128xf32, #tpu.memory_space<vmem>>, vector<8x128xf32>
    tpu.vector_store %arg12[%c24_44, %c0_45], %101 {strides = array<i32>} : memref<64x128xf32, #tpu.memory_space<vmem>>, vector<8x128xf32>,
    %c32 = arith.constant 32 : index
    %c0_46 = arith.constant 0 : index
    %103 = vector.load %arg11[%c32, %c0_46] : memref<64x512xf32, #tpu.memory_space<vmem>>, vector<8x512xf32>
    %c0_47 = arith.constant 0 : index
    %c0_48 = arith.constant 0 : index
    %104 = vector.load %arg3[%c0_47, %c0_48] : memref<128x512xf32, #tpu.memory_space<vmem>>, vector<128x512xf32>
    %cst_49 = arith.constant dense<0.000000e+00> : vector<8x512xf32>
    %105 = tpu.matmul %101, %104, %cst_49 {dimension_numbers = #tpu.dot_dimension_numbers<[1], [0], [0], [1], [0, 0, 1, 1], [], []>} : vector<8x128xf32>, vector<128x512xf32>, vector<8x512xf32> -> vector<8x512xf32>
    %106 = arith.addf %103, %105 : vector<8x512xf32>
    %107 = vector.extract_strided_slice %106 {offsets = [0, 0], sizes = [8, 384], strides = [1, 1]} : vector<8x512xf32> to vector<8x384xf32>
    %cst_50 = arith.constant 5.000000e-01 : f32
    %108 = vector.broadcast %cst_50 : f32 to vector<8x384xf32>
    %109 = arith.mulf %108, %107 : vector<8x384xf32>
    %110 = math.tanh %109 : vector<8x384xf32>
    %cst_51 = arith.constant 5.000000e-01 : f32
    %111 = vector.broadcast %cst_51 : f32 to vector<8x384xf32>
    %112 = arith.mulf %111, %110 : vector<8x384xf32>
    %cst_52 = arith.constant 5.000000e-01 : f32
    %113 = vector.broadcast %cst_52 : f32 to vector<8x384xf32>
    %114 = arith.addf %112, %113 : vector<8x384xf32>
    %115 = vector.extract_strided_slice %114 {offsets = [0, 0], sizes = [8, 128], strides = [1, 1]} : vector<8x384xf32> to vector<8x128xf32>
    %116 = vector.extract_strided_slice %114 {offsets = [0, 128], sizes = [8, 128], strides = [1, 1]} : vector<8x384xf32> to vector<8x128xf32>
    %117 = vector.extract_strided_slice %114 {offsets = [0, 256], sizes = [8, 128], strides = [1, 1]} : vector<8x384xf32> to vector<8x128xf32>
    %118 = vector.extract_strided_slice %106 {offsets = [0, 384], sizes = [8, 128], strides = [1, 1]} : vector<8x512xf32> to vector<8x128xf32>
    %119 = math.tanh %118 : vector<8x128xf32>
    %120 = arith.mulf %116, %99 : vector<8x128xf32>
    %121 = arith.mulf %115, %119 : vector<8x128xf32>
    %122 = arith.addf %120, %121 : vector<8x128xf32>
    %123 = math.tanh %122 : vector<8x128xf32>
    %124 = arith.mulf %117, %123 : vector<8x128xf32>
    %c32_53 = arith.constant 32 : index
    %c0_54 = arith.constant 0 : index
    %125 = vector.load %arg12[%c32_53, %c0_54] : memref<64x128xf32, #tpu.memory_space<vmem>>, vector<8x128xf32>
    tpu.vector_store %arg12[%c32_53, %c0_54], %124 {strides = array<i32>} : memref<64x128xf32, #tpu.memory_space<vmem>>, vector<8x128xf32>,
    %c40 = arith.constant 40 : index
    %c0_55 = arith.constant 0 : index
    %126 = vector.load %arg11[%c40, %c0_55] : memref<64x512xf32, #tpu.memory_space<vmem>>, vector<8x512xf32>
    %c0_56 = arith.constant 0 : index
    %c0_57 = arith.constant 0 : index
    %127 = vector.load %arg3[%c0_56, %c0_57] : memref<128x512xf32, #tpu.memory_space<vmem>>, vector<128x512xf32>
    %cst_58 = arith.constant dense<0.000000e+00> : vector<8x512xf32>
    %128 = tpu.matmul %124, %127, %cst_58 {dimension_numbers = #tpu.dot_dimension_numbers<[1], [0], [0], [1], [0, 0, 1, 1], [], []>} : vector<8x128xf32>, vector<128x512xf32>, vector<8x512xf32> -> vector<8x512xf32>
    %129 = arith.addf %126, %128 : vector<8x512xf32>
    %130 = vector.extract_strided_slice %129 {offsets = [0, 0], sizes = [8, 384], strides = [1, 1]} : vector<8x512xf32> to vector<8x384xf32>
    %cst_59 = arith.constant 5.000000e-01 : f32
    %131 = vector.broadcast %cst_59 : f32 to vector<8x384xf32>
    %132 = arith.mulf %131, %130 : vector<8x384xf32>
    %133 = math.tanh %132 : vector<8x384xf32>
    %cst_60 = arith.constant 5.000000e-01 : f32
    %134 = vector.broadcast %cst_60 : f32 to vector<8x384xf32>
    %135 = arith.mulf %134, %133 : vector<8x384xf32>
    %cst_61 = arith.constant 5.000000e-01 : f32
    %136 = vector.broadcast %cst_61 : f32 to vector<8x384xf32>
    %137 = arith.addf %135, %136 : vector<8x384xf32>
    %138 = vector.extract_strided_slice %137 {offsets = [0, 0], sizes = [8, 128], strides = [1, 1]} : vector<8x384xf32> to vector<8x128xf32>
    %139 = vector.extract_strided_slice %137 {offsets = [0, 128], sizes = [8, 128], strides = [1, 1]} : vector<8x384xf32> to vector<8x128xf32>
    %140 = vector.extract_strided_slice %137 {offsets = [0, 256], sizes = [8, 128], strides = [1, 1]} : vector<8x384xf32> to vector<8x128xf32>
    %141 = vector.extract_strided_slice %129 {offsets = [0, 384], sizes = [8, 128], strides = [1, 1]} : vector<8x512xf32> to vector<8x128xf32>
    %142 = math.tanh %141 : vector<8x128xf32>
    %143 = arith.mulf %139, %122 : vector<8x128xf32>
    %144 = arith.mulf %138, %142 : vector<8x128xf32>
    %145 = arith.addf %143, %144 : vector<8x128xf32>
    %146 = math.tanh %145 : vector<8x128xf32>
    %147 = arith.mulf %140, %146 : vector<8x128xf32>
    %c40_62 = arith.constant 40 : index
    %c0_63 = arith.constant 0 : index
    %148 = vector.load %arg12[%c40_62, %c0_63] : memref<64x128xf32, #tpu.memory_space<vmem>>, vector<8x128xf32>
    tpu.vector_store %arg12[%c40_62, %c0_63], %147 {strides = array<i32>} : memref<64x128xf32, #tpu.memory_space<vmem>>, vector<8x128xf32>,
    %c48 = arith.constant 48 : index
    %c0_64 = arith.constant 0 : index
    %149 = vector.load %arg11[%c48, %c0_64] : memref<64x512xf32, #tpu.memory_space<vmem>>, vector<8x512xf32>
    %c0_65 = arith.constant 0 : index
    %c0_66 = arith.constant 0 : index
    %150 = vector.load %arg3[%c0_65, %c0_66] : memref<128x512xf32, #tpu.memory_space<vmem>>, vector<128x512xf32>
    %cst_67 = arith.constant dense<0.000000e+00> : vector<8x512xf32>
    %151 = tpu.matmul %147, %150, %cst_67 {dimension_numbers = #tpu.dot_dimension_numbers<[1], [0], [0], [1], [0, 0, 1, 1], [], []>} : vector<8x128xf32>, vector<128x512xf32>, vector<8x512xf32> -> vector<8x512xf32>
    %152 = arith.addf %149, %151 : vector<8x512xf32>
    %153 = vector.extract_strided_slice %152 {offsets = [0, 0], sizes = [8, 384], strides = [1, 1]} : vector<8x512xf32> to vector<8x384xf32>
    %cst_68 = arith.constant 5.000000e-01 : f32
    %154 = vector.broadcast %cst_68 : f32 to vector<8x384xf32>
    %155 = arith.mulf %154, %153 : vector<8x384xf32>
    %156 = math.tanh %155 : vector<8x384xf32>
    %cst_69 = arith.constant 5.000000e-01 : f32
    %157 = vector.broadcast %cst_69 : f32 to vector<8x384xf32>
    %158 = arith.mulf %157, %156 : vector<8x384xf32>
    %cst_70 = arith.constant 5.000000e-01 : f32
    %159 = vector.broadcast %cst_70 : f32 to vector<8x384xf32>
    %160 = arith.addf %158, %159 : vector<8x384xf32>
    %161 = vector.extract_strided_slice %160 {offsets = [0, 0], sizes = [8, 128], strides = [1, 1]} : vector<8x384xf32> to vector<8x128xf32>
    %162 = vector.extract_strided_slice %160 {offsets = [0, 128], sizes = [8, 128], strides = [1, 1]} : vector<8x384xf32> to vector<8x128xf32>
    %163 = vector.extract_strided_slice %160 {offsets = [0, 256], sizes = [8, 128], strides = [1, 1]} : vector<8x384xf32> to vector<8x128xf32>
    %164 = vector.extract_strided_slice %152 {offsets = [0, 384], sizes = [8, 128], strides = [1, 1]} : vector<8x512xf32> to vector<8x128xf32>
    %165 = math.tanh %164 : vector<8x128xf32>
    %166 = arith.mulf %162, %145 : vector<8x128xf32>
    %167 = arith.mulf %161, %165 : vector<8x128xf32>
    %168 = arith.addf %166, %167 : vector<8x128xf32>
    %169 = math.tanh %168 : vector<8x128xf32>
    %170 = arith.mulf %163, %169 : vector<8x128xf32>
    %c48_71 = arith.constant 48 : index
    %c0_72 = arith.constant 0 : index
    %171 = vector.load %arg12[%c48_71, %c0_72] : memref<64x128xf32, #tpu.memory_space<vmem>>, vector<8x128xf32>
    tpu.vector_store %arg12[%c48_71, %c0_72], %170 {strides = array<i32>} : memref<64x128xf32, #tpu.memory_space<vmem>>, vector<8x128xf32>,
    %c56 = arith.constant 56 : index
    %c0_73 = arith.constant 0 : index
    %172 = vector.load %arg11[%c56, %c0_73] : memref<64x512xf32, #tpu.memory_space<vmem>>, vector<8x512xf32>
    %c0_74 = arith.constant 0 : index
    %c0_75 = arith.constant 0 : index
    %173 = vector.load %arg3[%c0_74, %c0_75] : memref<128x512xf32, #tpu.memory_space<vmem>>, vector<128x512xf32>
    %cst_76 = arith.constant dense<0.000000e+00> : vector<8x512xf32>
    %174 = tpu.matmul %170, %173, %cst_76 {dimension_numbers = #tpu.dot_dimension_numbers<[1], [0], [0], [1], [0, 0, 1, 1], [], []>} : vector<8x128xf32>, vector<128x512xf32>, vector<8x512xf32> -> vector<8x512xf32>
    %175 = arith.addf %172, %174 : vector<8x512xf32>
    %176 = vector.extract_strided_slice %175 {offsets = [0, 0], sizes = [8, 384], strides = [1, 1]} : vector<8x512xf32> to vector<8x384xf32>
    %cst_77 = arith.constant 5.000000e-01 : f32
    %177 = vector.broadcast %cst_77 : f32 to vector<8x384xf32>
    %178 = arith.mulf %177, %176 : vector<8x384xf32>
    %179 = math.tanh %178 : vector<8x384xf32>
    %cst_78 = arith.constant 5.000000e-01 : f32
    %180 = vector.broadcast %cst_78 : f32 to vector<8x384xf32>
    %181 = arith.mulf %180, %179 : vector<8x384xf32>
    %cst_79 = arith.constant 5.000000e-01 : f32
    %182 = vector.broadcast %cst_79 : f32 to vector<8x384xf32>
    %183 = arith.addf %181, %182 : vector<8x384xf32>
    %184 = vector.extract_strided_slice %183 {offsets = [0, 0], sizes = [8, 128], strides = [1, 1]} : vector<8x384xf32> to vector<8x128xf32>
    %185 = vector.extract_strided_slice %183 {offsets = [0, 128], sizes = [8, 128], strides = [1, 1]} : vector<8x384xf32> to vector<8x128xf32>
    %186 = vector.extract_strided_slice %183 {offsets = [0, 256], sizes = [8, 128], strides = [1, 1]} : vector<8x384xf32> to vector<8x128xf32>
    %187 = vector.extract_strided_slice %175 {offsets = [0, 384], sizes = [8, 128], strides = [1, 1]} : vector<8x512xf32> to vector<8x128xf32>
    %188 = math.tanh %187 : vector<8x128xf32>
    %189 = arith.mulf %185, %168 : vector<8x128xf32>
    %190 = arith.mulf %184, %188 : vector<8x128xf32>
    %191 = arith.addf %189, %190 : vector<8x128xf32>
    %192 = math.tanh %191 : vector<8x128xf32>
    %193 = arith.mulf %186, %192 : vector<8x128xf32>
    %c56_80 = arith.constant 56 : index
    %c0_81 = arith.constant 0 : index
    %194 = vector.load %arg12[%c56_80, %c0_81] : memref<64x128xf32, #tpu.memory_space<vmem>>, vector<8x128xf32>
    tpu.vector_store %arg12[%c56_80, %c0_81], %193 {strides = array<i32>} : memref<64x128xf32, #tpu.memory_space<vmem>>, vector<8x128xf32>,
    %c0_82 = arith.constant 0 : index
    %c0_83 = arith.constant 0 : index
    %195 = vector.load %arg9[%c0_82, %c0_83] : memref<8x128xf32, #tpu.memory_space<vmem>>, vector<8x128xf32>
    tpu.vector_store %arg9[%c0_82, %c0_83], %193 {strides = array<i32>} : memref<8x128xf32, #tpu.memory_space<vmem>>, vector<8x128xf32>,
    %c0_84 = arith.constant 0 : index
    %c0_85 = arith.constant 0 : index
    %196 = vector.load %arg10[%c0_84, %c0_85] : memref<8x128xf32, #tpu.memory_space<vmem>>, vector<8x128xf32>
    tpu.vector_store %arg10[%c0_84, %c0_85], %191 {strides = array<i32>} : memref<8x128xf32, #tpu.memory_space<vmem>>, vector<8x128xf32>,
    %c0_86 = arith.constant 0 : index
    %c0_87 = arith.constant 0 : index
    %197 = vector.load %arg12[%c0_86, %c0_87] : memref<64x128xf32, #tpu.memory_space<vmem>>, vector<64x128xf32>
    %c0_88 = arith.constant 0 : index
    %c0_89 = arith.constant 0 : index
    %198 = vector.load %arg4[%c0_88, %c0_89] : memref<128x128xf32, #tpu.memory_space<vmem>>, vector<128x128xf32>
    %cst_90 = arith.constant dense<0.000000e+00> : vector<64x128xf32>
    %199 = tpu.matmul %197, %198, %cst_90 {dimension_numbers = #tpu.dot_dimension_numbers<[1], [0], [0], [1], [0, 0, 1, 1], [], []>} : vector<64x128xf32>, vector<128x128xf32>, vector<64x128xf32> -> vector<64x128xf32>
    %c0_91 = arith.constant 0 : index
    %c0_92 = arith.constant 0 : index
    %200 = vector.load %arg5[%c0_91, %c0_92] : memref<1x128xf32, #tpu.memory_space<vmem>>, vector<1x128xf32>
    %201 = vector.broadcast %200 : vector<1x128xf32> to vector<64x128xf32>
    %202 = arith.addf %199, %201 : vector<64x128xf32>
    %c0_93 = arith.constant 0 : index
    %c0_94 = arith.constant 0 : index
    %203 = vector.load %arg8[%c0_93, %c0_94] : memref<64x128xf32, #tpu.memory_space<vmem>>, vector<64x128xf32>
    tpu.vector_store %arg8[%c0_93, %c0_94], %202 {strides = array<i32>} : memref<64x128xf32, #tpu.memory_space<vmem>>, vector<64x128xf32>,
    return
  }
  func.func @transform_0(%arg0: i32) -> (i32, i32) {
    %c0_i32 = arith.constant 0 : i32
    %c0_i32_0 = arith.constant 0 : i32
    %c0_i32_1 = arith.constant 0 : i32
    return %c0_i32, %c0_i32_0 : i32, i32
  }
  func.func @transform_1(%arg0: i32) -> (i32, i32) {
    %c0_i32 = arith.constant 0 : i32
    %c0_i32_0 = arith.constant 0 : i32
    %c0_i32_1 = arith.constant 0 : i32
    return %c0_i32, %c0_i32_0 : i32, i32
  }
  func.func @transform_2(%arg0: i32) -> (i32, i32) {
    %c0_i32 = arith.constant 0 : i32
    %c0_i32_0 = arith.constant 0 : i32
    %c0_i32_1 = arith.constant 0 : i32
    return %c0_i32, %c0_i32_0 : i32, i32
  }
  func.func @transform_3(%arg0: i32) -> (i32, i32) {
    %c0_i32 = arith.constant 0 : i32
    %c0_i32_0 = arith.constant 0 : i32
    %c0_i32_1 = arith.constant 0 : i32
    return %c0_i32, %c0_i32_0 : i32, i32
  }
  func.func @transform_4(%arg0: i32) -> (i32, i32) {
    %c0_i32 = arith.constant 0 : i32
    %c0_i32_0 = arith.constant 0 : i32
    %c0_i32_1 = arith.constant 0 : i32
    return %c0_i32, %c0_i32_0 : i32, i32
  }
  func.func @transform_5(%arg0: i32) -> (i32, i32) {
    %c0_i32 = arith.constant 0 : i32
    %c0_i32_0 = arith.constant 0 : i32
    %c0_i32_1 = arith.constant 0 : i32
    return %c0_i32, %c0_i32_0 : i32, i32
  }
  func.func @transform_6(%arg0: i32) -> (i32, i32) {
    %c0_i32 = arith.constant 0 : i32
    %c0_i32_0 = arith.constant 0 : i32
    %c0_i32_1 = arith.constant 0 : i32
    return %c0_i32, %c0_i32_0 : i32, i32
  }
  func.func @transform_7(%arg0: i32) -> (i32, i32) {
    %c0_i32 = arith.constant 0 : i32
    %c0_i32_0 = arith.constant 0 : i32
    %c0_i32_1 = arith.constant 0 : i32
    return %c0_i32, %c0_i32_0 : i32, i32
  }
  func.func @transform_8(%arg0: i32) -> (i32, i32) {
    %c0_i32 = arith.constant 0 : i32
    %c0_i32_0 = arith.constant 0 : i32
    %c0_i32_1 = arith.constant 0 : i32
    return %c0_i32, %c0_i32_0 : i32, i32
  }
  func.func @transform_9(%arg0: i32) -> (i32, i32) {
    %c0_i32 = arith.constant 0 : i32
    %c0_i32_0 = arith.constant 0 : i32
    %c0_i32_1 = arith.constant 0 : i32
    return %c0_i32, %c0_i32_0 : i32, i32
  }
}

</mosaic_0001>

<llo_original>
// kernel: character_lstm_forward.1
$region0: #{character_lstm_forward.1}
  #allocation0 [shape = 'u32[]', space=smem, size = 0x4, offset = 0x4, fixed_abs, tag = 'smem constant byte address 0x4 - core index']
  #allocation1 [shape = 'u32[144,128]{1,0:T(1,128)}', space=vmem, size = 0x12000, scoped, tag = 'internal scratch']
  #allocation2 [shape = 'f32[64,512]{1,0:T(8,128)}', space=vmem, size = 0x20000, scoped, tag = 'scratch operand']
  #allocation3 [shape = 'f32[64,128]{1,0:T(8,128)}', space=vmem, size = 0x8000, scoped, tag = 'scratch operand']
  %s0 = inlined_call_operand.vmem [shape: s32[64,1], index: 0, kind: input, shape index: {}]
  %s1 = inlined_call_operand.hbm [shape: f32[128,512], index: 1, kind: input, shape index: {}]
  %s2 = inlined_call_operand.hbm [shape: f32[128,512], index: 2, kind: input, shape index: {}]
  %s3 = inlined_call_operand.vmem [shape: f32[128,128], index: 3, kind: input, shape index: {}]
  %s4 = inlined_call_operand.vmem [shape: f32[1,128], index: 4, kind: input, shape index: {}]
  %s5 = inlined_call_operand.vmem [shape: f32[8,128], index: 5, kind: input, shape index: {}, may-alias: {5,8}]
  %s6 = inlined_call_operand.vmem [shape: f32[8,128], index: 6, kind: input, shape index: {}, may-alias: {6,9}]
  %s7 = inlined_call_operand.vmem [shape: f32[64,128], index: 7, kind: output, shape index: {0}]
  %s8 = inlined_call_operand.vmem [shape: f32[8,128], index: 8, kind: output, shape index: {1}, may-alias: {5,8}]
  %s9 = inlined_call_operand.vmem [shape: f32[8,128], index: 9, kind: output, shape index: {2}, may-alias: {6,9}]
  %10 = xla_tuple %s7, %s8, %s9
  %s11 = sld [smem:[#allocation0]]
  $region62: #{character_lstm_forward.1} parent=0
    _
  %s13 = ssub.s32 1, %s11
  %s14 = scalar_select 0, %s13, %s11
  $region1: #{character_lstm_forward.1} parent=0
    #allocation4 [shape = 'u8[262144]{0}', space=vmem, size = 0x40000, scoped, tag = 'input window, operand 1, single buffered']
    #allocation5 [shape = 's32[1]{0}', space=sflag, size = 0x4, scoped, tag = 'scoped memory for character_lstm_forward.1']
    #allocation6 [shape = 'u8[262144]{0}', space=vmem, size = 0x40000, scoped, tag = 'input window, operand 2, single buffered']
    #allocation7 [shape = 's32[1]{0}', space=sflag, size = 0x4, scoped, tag = 'scoped memory for character_lstm_forward.1']
    %15 = vsyncpa [#allocation5], 0
    %16 = vsyncpa [#allocation7], 0
    // Predicated region
    $region2: #{character_lstm_forward.1} parent=1 // pred_check
      _
    $region3: #{character_lstm_forward.1} parent=1 // pred_check_branch
      %18 = sbr.rel (0) target = $region5
    $region4: #{character_lstm_forward.1} parent=1 // pred_region
      _
    $region5: #{character_lstm_forward.1} parent=1 // pred_fallthru
      _
    // Predicated region
    $region6: #{character_lstm_forward.1} parent=1 // pred_check
      _
    $region7: #{character_lstm_forward.1} parent=1 // pred_check_branch
      %20 = sbr.rel (0) target = $region9
    $region8: #{character_lstm_forward.1} parent=1 // pred_region
      %s22 = ssub.s32 8192, 8192
      %23 = vsyncadd [#allocation5], %s22
      %s24 = sshll.u32 [#allocation4], 4
      %s25 = int_to_ptr.vmem [resolvable:$true] %s24
      %30 = dma.hbm_to_vmem [thread:$0]  %s1, 8192, %s25, [#allocation5], 512, 512, 32
    $region9: #{character_lstm_forward.1} parent=1 // pred_fallthru
      _
    // Predicated region
    $region10: #{character_lstm_forward.1} parent=1 // pred_check
      _
    $region11: #{character_lstm_forward.1} parent=1 // pred_check_branch
      %32 = sbr.rel (0) target = $region13
    $region12: #{character_lstm_forward.1} parent=1 // pred_region
      %s34 = ssub.s32 8192, 8192
      %35 = vsyncadd [#allocation7], %s34
      %s36 = sshll.u32 [#allocation6], 4
      %s37 = int_to_ptr.vmem [resolvable:$true] %s36
      %42 = dma.hbm_to_vmem [thread:$0]  %s2, 8192, %s37, [#allocation7], 512, 512, 32
    $region13: #{character_lstm_forward.1} parent=1 // pred_fallthru
      _
    // Predicated region
    $region14: #{character_lstm_forward.1} parent=1 // pred_check
      _
    $region15: #{character_lstm_forward.1} parent=1 // pred_check_branch
      %44 = sbr.rel (0) target = $region17
    $region16: #{character_lstm_forward.1} parent=1 // pred_region
      _
    $region17: #{character_lstm_forward.1} parent=1 // pred_fallthru
      _
    // Predicated region
    $region18: #{character_lstm_forward.1} parent=1 // pred_check
      _
    $region19: #{character_lstm_forward.1} parent=1 // pred_check_branch
      %46 = sbr.rel (0) target = $region21
    $region20: #{character_lstm_forward.1} parent=1 // pred_region
      _
    $region21: #{character_lstm_forward.1} parent=1 // pred_fallthru
      _
    // Predicated region
    $region22: #{character_lstm_forward.1} parent=1 // pred_check
      _
    $region23: #{character_lstm_forward.1} parent=1 // pred_check_branch
      %48 = sbr.rel (0) target = $region25
    $region24: #{character_lstm_forward.1} parent=1 // pred_region
      _
    $region25: #{character_lstm_forward.1} parent=1 // pred_fallthru
      _
    // Predicated region
    $region26: #{character_lstm_forward.1} parent=1 // pred_check
      _
    $region27: #{character_lstm_forward.1} parent=1 // pred_check_branch
      %50 = sbr.rel (0) target = $region29
    $region28: #{character_lstm_forward.1} parent=1 // pred_region
      _
    $region29: #{character_lstm_forward.1} parent=1 // pred_fallthru
      _
    // Predicated region
    $region30: #{character_lstm_forward.1} parent=1 // pred_check
      _
    $region31: #{character_lstm_forward.1} parent=1 // pred_check_branch
      %52 = sbr.rel (0) target = $region33
    $region32: #{character_lstm_forward.1} parent=1 // pred_region
      %53 = dma.done [#allocation5], 8192
    $region33: #{character_lstm_forward.1} parent=1 // pred_fallthru
      _
    // Predicated region
    $region34: #{character_lstm_forward.1} parent=1 // pred_check
      _
    $region35: #{character_lstm_forward.1} parent=1 // pred_check_branch
      %55 = sbr.rel (0) target = $region37
    $region36: #{character_lstm_forward.1} parent=1 // pred_region
      %56 = dma.done [#allocation7], 8192
    $region37: #{character_lstm_forward.1} parent=1 // pred_fallthru
      _
    %v57 = vld [vmem:[%s0] sm:$0xff]
    %v58 = vld [vmem:[%s0 + $0x8] sm:$0xff]
    %v59 = vld [vmem:[%s0 + $0x10] sm:$0xff]
    %v60 = vld [vmem:[%s0 + $0x18] sm:$0xff]
    %v61 = vld [vmem:[%s0 + $0x20] sm:$0xff]
    %v62 = vld [vmem:[%s0 + $0x28] sm:$0xff]
    %v63 = vld [vmem:[%s0 + $0x30] sm:$0xff]
    %v64 = vld [vmem:[%s0 + $0x38] sm:$0xff]
    %v65 = vlaneseq
    %v66 = vand.u32 %v65, 127
    %67 = vset.pattern.permute.xlu0 0
    %68 = vperm.xlu0 %67, %v57
    %v69 = vpop.permute.xlu0 %68
    %70 = vset.pattern.permute.xlu0 0
    %71 = vperm.xlu0 %70, %v58
    %v72 = vpop.permute.xlu0 %71
    %73 = vset.pattern.permute.xlu0 0
    %74 = vperm.xlu0 %73, %v59
    %v75 = vpop.permute.xlu0 %74
    %76 = vset.pattern.permute.xlu0 0
    %77 = vperm.xlu0 %76, %v60
    %v78 = vpop.permute.xlu0 %77
    %79 = vset.pattern.permute.xlu0 0
    %80 = vperm.xlu0 %79, %v61
    %v81 = vpop.permute.xlu0 %80
    %82 = vset.pattern.permute.xlu0 0
    %83 = vperm.xlu0 %82, %v62
    %v84 = vpop.permute.xlu0 %83
    %85 = vset.pattern.permute.xlu0 0
    %86 = vperm.xlu0 %85, %v63
    %v87 = vpop.permute.xlu0 %86
    %88 = vset.pattern.permute.xlu0 0
    %89 = vperm.xlu0 %88, %v64
    %v90 = vpop.permute.xlu0 %89
    %vm91 = vcmp.eq.s32.totalorder %v69, %v66
    %vm92 = vcmp.eq.s32.totalorder %v72, %v66
    %vm93 = vcmp.eq.s32.totalorder %v75, %v66
    %vm94 = vcmp.eq.s32.totalorder %v78, %v66
    %vm95 = vcmp.eq.s32.totalorder %v81, %v66
    %vm96 = vcmp.eq.s32.totalorder %v84, %v66
    %vm97 = vcmp.eq.s32.totalorder %v87, %v66
    %vm98 = vcmp.eq.s32.totalorder %v90, %v66
    %v99 = vsel %vm91, 1, 0
    %v100 = vsel %vm92, 1, 0
    %v101 = vsel %vm93, 1, 0
    %v102 = vsel %vm94, 1, 0
    %v103 = vsel %vm95, 1, 0
    %v104 = vsel %vm96, 1, 0
    %v105 = vsel %vm97, 1, 0
    %v106 = vsel %vm98, 1, 0
    %v107 = vcvt.s32.f32 %v99
    %v108 = vcvt.s32.f32 %v100
    %v109 = vcvt.s32.f32 %v101
    %v110 = vcvt.s32.f32 %v102
    %v111 = vcvt.s32.f32 %v103
    %v112 = vcvt.s32.f32 %v104
    %v113 = vcvt.s32.f32 %v105
    %v114 = vcvt.s32.f32 %v106
    %v115 = vld [vmem:[#allocation4] sm:$0xff]
    %v116 = vld [vmem:[#allocation4 + $0x8] sm:$0xff]
    %v117 = vld [vmem:[#allocation4 + $0x10] sm:$0xff]
    %v118 = vld [vmem:[#allocation4 + $0x18] sm:$0xff]
    %v119 = vld [vmem:[#allocation4 + $0x20] sm:$0xff]
    %v120 = vld [vmem:[#allocation4 + $0x28] sm:$0xff]
    %v121 = vld [vmem:[#allocation4 + $0x30] sm:$0xff]
    %v122 = vld [vmem:[#allocation4 + $0x38] sm:$0xff]
    %v123 = vld [vmem:[#allocation4 + $0x40] sm:$0xff]
    %v124 = vld [vmem:[#allocation4 + $0x48] sm:$0xff]
    %v125 = vld [vmem:[#allocation4 + $0x50] sm:$0xff]
    %v126 = vld [vmem:[#allocation4 + $0x58] sm:$0xff]
    %v127 = vld [vmem:[#allocation4 + $0x60] sm:$0xff]
    %v128 = vld [vmem:[#allocation4 + $0x68] sm:$0xff]
    %v129 = vld [vmem:[#allocation4 + $0x70] sm:$0xff]
    %v130 = vld [vmem:[#allocation4 + $0x78] sm:$0xff]
    %v131 = vld [vmem:[#allocation4 + $0x80] sm:$0xff]
    %v132 = vld [vmem:[#allocation4 + $0x88] sm:$0xff]
    %v133 = vld [vmem:[#allocation4 + $0x90] sm:$0xff]
    %v134 = vld [vmem:[#allocation4 + $0x98] sm:$0xff]
    %v135 = vld [vmem:[#allocation4 + $0xa0] sm:$0xff]
    %v136 = vld [vmem:[#allocation4 + $0xa8] sm:$0xff]
    %v137 = vld [vmem:[#allocation4 + $0xb0] sm:$0xff]
    %v138 = vld [vmem:[#allocation4 + $0xb8] sm:$0xff]
    %v139 = vld [vmem:[#allocation4 + $0xc0] sm:$0xff]
    %v140 = vld [vmem:[#allocation4 + $0xc8] sm:$0xff]
    %v141 = vld [vmem:[#allocation4 + $0xd0] sm:$0xff]
    %v142 = vld [vmem:[#allocation4 + $0xd8] sm:$0xff]
    %v143 = vld [vmem:[#allocation4 + $0xe0] sm:$0xff]
    %v144 = vld [vmem:[#allocation4 + $0xe8] sm:$0xff]
    %v145 = vld [vmem:[#allocation4 + $0xf0] sm:$0xff]
    %v146 = vld [vmem:[#allocation4 + $0xf8] sm:$0xff]
    %v147 = vld [vmem:[#allocation4 + $0x100] sm:$0xff]
    %v148 = vld [vmem:[#allocation4 + $0x108] sm:$0xff]
    %v149 = vld [vmem:[#allocation4 + $0x110] sm:$0xff]
    %v150 = vld [vmem:[#allocation4 + $0x118] sm:$0xff]
    %v151 = vld [vmem:[#allocation4 + $0x120] sm:$0xff]
    %v152 = vld [vmem:[#allocation4 + $0x128] sm:$0xff]
    %v153 = vld [vmem:[#allocation4 + $0x130] sm:$0xff]
    %v154 = vld [vmem:[#allocation4 + $0x138] sm:$0xff]
    %v155 = vld [vmem:[#allocation4 + $0x140] sm:$0xff]
    %v156 = vld [vmem:[#allocation4 + $0x148] sm:$0xff]
    %v157 = vld [vmem:[#allocation4 + $0x150] sm:$0xff]
    %v158 = vld [vmem:[#allocation4 + $0x158] sm:$0xff]
    %v159 = vld [vmem:[#allocation4 + $0x160] sm:$0xff]
    %v160 = vld [vmem:[#allocation4 + $0x168] sm:$0xff]
    %v161 = vld [vmem:[#allocation4 + $0x170] sm:$0xff]
    %v162 = vld [vmem:[#allocation4 + $0x178] sm:$0xff]
    %v163 = vld [vmem:[#allocation4 + $0x180] sm:$0xff]
    %v164 = vld [vmem:[#allocation4 + $0x188] sm:$0xff]
    %v165 = vld [vmem:[#allocation4 + $0x190] sm:$0xff]
    %v166 = vld [vmem:[#allocation4 + $0x198] sm:$0xff]
    %v167 = vld [vmem:[#allocation4 + $0x1a0] sm:$0xff]
    %v168 = vld [vmem:[#allocation4 + $0x1a8] sm:$0xff]
    %v169 = vld [vmem:[#allocation4 + $0x1b0] sm:$0xff]
    %v170 = vld [vmem:[#allocation4 + $0x1b8] sm:$0xff]
    %v171 = vld [vmem:[#allocation4 + $0x1c0] sm:$0xff]
    %v172 = vld [vmem:[#allocation4 + $0x1c8] sm:$0xff]
    %v173 = vld [vmem:[#allocation4 + $0x1d0] sm:$0xff]
    %v174 = vld [vmem:[#allocation4 + $0x1d8] sm:$0xff]
    %v175 = vld [vmem:[#allocation4 + $0x1e0] sm:$0xff]
    %v176 = vld [vmem:[#allocation4 + $0x1e8] sm:$0xff]
    %v177 = vld [vmem:[#allocation4 + $0x1f0] sm:$0xff]
    %v178 = vld [vmem:[#allocation4 + $0x1f8] sm:$0xff]
    %179 = vmatprep.subr.mxu0 %v116
    %180 = vmatpush1.msra.mxu0 %v115
    %181 = vmatprep.subr.mxu0 %v120
    %182 = vmatpush1.msra.mxu0 %v119
    %183 = vmatprep.subr.mxu0 %v124
    %184 = vmatpush1.msra.mxu0 %v123
    %185 = vmatprep.subr.mxu0 %v128
    %186 = vmatpush1.msra.mxu0 %v127
    %187 = vmatprep.subr.mxu0 %v132
    %188 = vmatpush1.msra.mxu0 %v131
    %189 = vmatprep.subr.mxu0 %v136
    %190 = vmatpush1.msra.mxu0 %v135
    %191 = vmatprep.subr.mxu0 %v140
    %192 = vmatpush1.msra.mxu0 %v139
    %193 = vmatprep.subr.mxu0 %v144
    %194 = vmatpush1.msra.mxu0 %v143
    %195 = vmatprep.subr.mxu0 %v148
    %196 = vmatpush1.msra.mxu0 %v147
    %197 = vmatprep.subr.mxu0 %v152
    %198 = vmatpush1.msra.mxu0 %v151
    %199 = vmatprep.subr.mxu0 %v156
    %200 = vmatpush1.msra.mxu0 %v155
    %201 = vmatprep.subr.mxu0 %v160
    %202 = vmatpush1.msra.mxu0 %v159
    %203 = vmatprep.subr.mxu0 %v164
    %204 = vmatpush1.msra.mxu0 %v163
    %205 = vmatprep.subr.mxu0 %v168
    %206 = vmatpush1.msra.mxu0 %v167
    %207 = vmatprep.subr.mxu0 %v172
    %208 = vmatpush1.msra.mxu0 %v171
    %209 = vmatprep.subr.mxu0 %v176
    %210 = vmatpush1.msra.mxu0 %v175
    %211 = vmatprep.subr.mxu0 0.0
    %212 = vmatpush1.msra.mxu0 0.0
    %213 = vmatprep.subr.mxu0 0.0
    %214 = vmatpush1.msra.mxu0 0.0
    %215 = vmatprep.subr.mxu0 0.0
    %216 = vmatpush1.msra.mxu0 0.0
    %217 = vmatprep.subr.mxu0 0.0
    %218 = vmatpush1.msra.mxu0 0.0
    %219 = vmatprep.subr.mxu0 0.0
    %220 = vmatpush1.msra.mxu0 0.0
    %221 = vmatprep.subr.mxu0 0.0
    %222 = vmatpush1.msra.mxu0 0.0
    %223 = vmatprep.subr.mxu0 0.0
    %224 = vmatpush1.msra.mxu0 0.0
    %225 = vmatprep.subr.mxu0 0.0
    %226 = vmatpush1.msra.mxu0 0.0
    %227 = vmatprep.subr.mxu0 0.0
    %228 = vmatpush1.msra.mxu0 0.0
    %229 = vmatprep.subr.mxu0 0.0
    %230 = vmatpush1.msra.mxu0 0.0
    %231 = vmatprep.subr.mxu0 0.0
    %232 = vmatpush1.msra.mxu0 0.0
    %233 = vmatprep.subr.mxu0 0.0
    %234 = vmatpush1.msra.mxu0 0.0
    %235 = vmatprep.subr.mxu0 0.0
    %236 = vmatpush1.msra.mxu0 0.0
    %237 = vmatprep.subr.mxu0 0.0
    %238 = vmatpush1.msra.mxu0 0.0
    %239 = vmatprep.subr.mxu0 0.0
    %240 = vmatpush1.msra.mxu0 0.0
    %241 = vmatprep.subr.mxu0 0.0
    %242 = vmatpush1.msra.mxu0 0.0
    %243 = vmatprep.mubr.f32.mxu0 0.0
    %244 = vmatmul.mubr.f32.gmra.mrb[0].mxu0 %v107
    %v245 = vpop.f32.mrb[0].mxu0
    %v246 = vadd.f32 0.0, %v245
    %v247 = vpop.f32.mrb[0].mxu0
    %v248 = vadd.f32 0.0, %v247
    %249 = vmatprep.mubr.f32.mxu0 0.0
    %250 = vmatmul.mubr.f32.gmra.mrb[0].mxu0 %v108
    %v251 = vpop.f32.mrb[0].mxu0
    %v252 = vadd.f32 0.0, %v251
    %v253 = vpop.f32.mrb[0].mxu0
    %v254 = vadd.f32 0.0, %v253
    %255 = vmatprep.mubr.f32.mxu0 0.0
    %256 = vmatmul.mubr.f32.gmra.mrb[0].mxu0 %v109
    %v257 = vpop.f32.mrb[0].mxu0
    %v258 = vadd.f32 0.0, %v257
    %v259 = vpop.f32.mrb[0].mxu0
    %v260 = vadd.f32 0.0, %v259
    %261 = vmatprep.mubr.f32.mxu0 0.0
    %262 = vmatmul.mubr.f32.gmra.mrb[0].mxu0 %v110
    %v263 = vpop.f32.mrb[0].mxu0
    %v264 = vadd.f32 0.0, %v263
    %v265 = vpop.f32.mrb[0].mxu0
    %v266 = vadd.f32 0.0, %v265
    %267 = vmatprep.mubr.f32.mxu0 0.0
    %268 = vmatmul.mubr.f32.gmra.mrb[0].mxu0 %v111
    %v269 = vpop.f32.mrb[0].mxu0
    %v270 = vadd.f32 0.0, %v269
    %v271 = vpop.f32.mrb[0].mxu0
    %v272 = vadd.f32 0.0, %v271
    %273 = vmatprep.mubr.f32.mxu0 0.0
    %274 = vmatmul.mubr.f32.gmra.mrb[0].mxu0 %v112
    %v275 = vpop.f32.mrb[0].mxu0
    %v276 = vadd.f32 0.0, %v275
    %v277 = vpop.f32.mrb[0].mxu0
    %v278 = vadd.f32 0.0, %v277
    %279 = vmatprep.mubr.f32.mxu0 0.0
    %280 = vmatmul.mubr.f32.gmra.mrb[0].mxu0 %v113
    %v281 = vpop.f32.mrb[0].mxu0
    %v282 = vadd.f32 0.0, %v281
    %v283 = vpop.f32.mrb[0].mxu0
    %v284 = vadd.f32 0.0, %v283
    %285 = vmatprep.mubr.f32.mxu0 0.0
    %286 = vmatmul.mubr.f32.gmra.mrb[0].mxu0 %v114
    %v287 = vpop.f32.mrb[0].mxu0
    %v288 = vadd.f32 0.0, %v287
    %v289 = vpop.f32.mrb[0].mxu0
    %v290 = vadd.f32 0.0, %v289
    %291 = vdwg.mxu0
    %292 = vmatprep.subr.mxu0 %v118
    %293 = vmatpush1.msra.mxu0 %v117
    %294 = vmatprep.subr.mxu0 %v122
    %295 = vmatpush1.msra.mxu0 %v121
    %296 = vmatprep.subr.mxu0 %v126
    %297 = vmatpush1.msra.mxu0 %v125
    %298 = vmatprep.subr.mxu0 %v130
    %299 = vmatpush1.msra.mxu0 %v129
    %300 = vmatprep.subr.mxu0 %v134
    %301 = vmatpush1.msra.mxu0 %v133
    %302 = vmatprep.subr.mxu0 %v138
    %303 = vmatpush1.msra.mxu0 %v137
    %304 = vmatprep.subr.mxu0 %v142
    %305 = vmatpush1.msra.mxu0 %v141
    %306 = vmatprep.subr.mxu0 %v146
    %307 = vmatpush1.msra.mxu0 %v145
    %308 = vmatprep.subr.mxu0 %v150
    %309 = vmatpush1.msra.mxu0 %v149
    %310 = vmatprep.subr.mxu0 %v154
    %311 = vmatpush1.msra.mxu0 %v153
    %312 = vmatprep.subr.mxu0 %v158
    %313 = vmatpush1.msra.mxu0 %v157
    %314 = vmatprep.subr.mxu0 %v162
    %315 = vmatpush1.msra.mxu0 %v161
    %316 = vmatprep.subr.mxu0 %v166
    %317 = vmatpush1.msra.mxu0 %v165
    %318 = vmatprep.subr.mxu0 %v170
    %319 = vmatpush1.msra.mxu0 %v169
    %320 = vmatprep.subr.mxu0 %v174
    %321 = vmatpush1.msra.mxu0 %v173
    %322 = vmatprep.subr.mxu0 %v178
    %323 = vmatpush1.msra.mxu0 %v177
    %324 = vmatprep.subr.mxu0 0.0
    %325 = vmatpush1.msra.mxu0 0.0
    %326 = vmatprep.subr.mxu0 0.0
    %327 = vmatpush1.msra.mxu0 0.0
    %328 = vmatprep.subr.mxu0 0.0
    %329 = vmatpush1.msra.mxu0 0.0
    %330 = vmatprep.subr.mxu0 0.0
    %331 = vmatpush1.msra.mxu0 0.0
    %332 = vmatprep.subr.mxu0 0.0
    %333 = vmatpush1.msra.mxu0 0.0
    %334 = vmatprep.subr.mxu0 0.0
    %335 = vmatpush1.msra.mxu0 0.0
    %336 = vmatprep.subr.mxu0 0.0
    %337 = vmatpush1.msra.mxu0 0.0
    %338 = vmatprep.subr.mxu0 0.0
    %339 = vmatpush1.msra.mxu0 0.0
    %340 = vmatprep.subr.mxu0 0.0
    %341 = vmatpush1.msra.mxu0 0.0
    %342 = vmatprep.subr.mxu0 0.0
    %343 = vmatpush1.msra.mxu0 0.0
    %344 = vmatprep.subr.mxu0 0.0
    %345 = vmatpush1.msra.mxu0 0.0
    %346 = vmatprep.subr.mxu0 0.0
    %347 = vmatpush1.msra.mxu0 0.0
    %348 = vmatprep.subr.mxu0 0.0
    %349 = vmatpush1.msra.mxu0 0.0
    %350 = vmatprep.subr.mxu0 0.0
    %351 = vmatpush1.msra.mxu0 0.0
    %352 = vmatprep.subr.mxu0 0.0
    %353 = vmatpush1.msra.mxu0 0.0
    %354 = vmatprep.subr.mxu0 0.0
    %355 = vmatpush1.msra.mxu0 0.0
    %356 = vmatprep.mubr.f32.mxu0 0.0
    %357 = vmatmul.mubr.f32.gmra.mrb[0].mxu0 %v107
    %v358 = vpop.f32.mrb[0].mxu0
    %v359 = vadd.f32 0.0, %v358
    %v360 = vpop.f32.mrb[0].mxu0
    %v361 = vadd.f32 0.0, %v360
    %362 = vmatprep.mubr.f32.mxu0 0.0
    %363 = vmatmul.mubr.f32.gmra.mrb[0].mxu0 %v108
    %v364 = vpop.f32.mrb[0].mxu0
    %v365 = vadd.f32 0.0, %v364
    %v366 = vpop.f32.mrb[0].mxu0
    %v367 = vadd.f32 0.0, %v366
    %368 = vmatprep.mubr.f32.mxu0 0.0
    %369 = vmatmul.mubr.f32.gmra.mrb[0].mxu0 %v109
    %v370 = vpop.f32.mrb[0].mxu0
    %v371 = vadd.f32 0.0, %v370
    %v372 = vpop.f32.mrb[0].mxu0
    %v373 = vadd.f32 0.0, %v372
    %374 = vmatprep.mubr.f32.mxu0 0.0
    %375 = vmatmul.mubr.f32.gmra.mrb[0].mxu0 %v110
    %v376 = vpop.f32.mrb[0].mxu0
    %v377 = vadd.f32 0.0, %v376
    %v378 = vpop.f32.mrb[0].mxu0
    %v379 = vadd.f32 0.0, %v378
    %380 = vmatprep.mubr.f32.mxu0 0.0
    %381 = vmatmul.mubr.f32.gmra.mrb[0].mxu0 %v111
    %v382 = vpop.f32.mrb[0].mxu0
    %v383 = vadd.f32 0.0, %v382
    %v384 = vpop.f32.mrb[0].mxu0
    %v385 = vadd.f32 0.0, %v384
    %386 = vmatprep.mubr.f32.mxu0 0.0
    %387 = vmatmul.mubr.f32.gmra.mrb[0].mxu0 %v112
    %v388 = vpop.f32.mrb[0].mxu0
    %v389 = vadd.f32 0.0, %v388
    %v390 = vpop.f32.mrb[0].mxu0
    %v391 = vadd.f32 0.0, %v390
    %392 = vmatprep.mubr.f32.mxu0 0.0
    %393 = vmatmul.mubr.f32.gmra.mrb[0].mxu0 %v113
    %v394 = vpop.f32.mrb[0].mxu0
    %v395 = vadd.f32 0.0, %v394
    %v396 = vpop.f32.mrb[0].mxu0
    %v397 = vadd.f32 0.0, %v396
    %398 = vmatprep.mubr.f32.mxu0 0.0
    %399 = vmatmul.mubr.f32.gmra.mrb[0].mxu0 %v114
    %v400 = vpop.f32.mrb[0].mxu0
    %v401 = vadd.f32 0.0, %v400
    %v402 = vpop.f32.mrb[0].mxu0
    %v403 = vadd.f32 0.0, %v402
    %404 = vdwg.mxu0
    %405 = vst [vmem:[#allocation2] sm:$0xff] %v246
    %406 = vst [vmem:[#allocation2 + $0x8] sm:$0xff] %v248
    %407 = vst [vmem:[#allocation2 + $0x10] sm:$0xff] %v359
    %408 = vst [vmem:[#allocation2 + $0x18] sm:$0xff] %v361
    %409 = vst [vmem:[#allocation2 + $0x20] sm:$0xff] %v252
    %410 = vst [vmem:[#allocation2 + $0x28] sm:$0xff] %v254
    %411 = vst [vmem:[#allocation2 + $0x30] sm:$0xff] %v365
    %412 = vst [vmem:[#allocation2 + $0x38] sm:$0xff] %v367
    %413 = vst [vmem:[#allocation2 + $0x40] sm:$0xff] %v258
    %414 = vst [vmem:[#allocation2 + $0x48] sm:$0xff] %v260
    %415 = vst [vmem:[#allocation2 + $0x50] sm:$0xff] %v371
    %416 = vst [vmem:[#allocation2 + $0x58] sm:$0xff] %v373
    %417 = vst [vmem:[#allocation2 + $0x60] sm:$0xff] %v264
    %418 = vst [vmem:[#allocation2 + $0x68] sm:$0xff] %v266
    %419 = vst [vmem:[#allocation2 + $0x70] sm:$0xff] %v377
    %420 = vst [vmem:[#allocation2 + $0x78] sm:$0xff] %v379
    %421 = vst [vmem:[#allocation2 + $0x80] sm:$0xff] %v270
    %422 = vst [vmem:[#allocation2 + $0x88] sm:$0xff] %v272
    %423 = vst [vmem:[#allocation2 + $0x90] sm:$0xff] %v383
    %424 = vst [vmem:[#allocation2 + $0x98] sm:$0xff] %v385
    %425 = vst [vmem:[#allocation2 + $0xa0] sm:$0xff] %v276
    %426 = vst [vmem:[#allocation2 + $0xa8] sm:$0xff] %v278
    %427 = vst [vmem:[#allocation2 + $0xb0] sm:$0xff] %v389
    %428 = vst [vmem:[#allocation2 + $0xb8] sm:$0xff] %v391
    %429 = vst [vmem:[#allocation2 + $0xc0] sm:$0xff] %v282
    %430 = vst [vmem:[#allocation2 + $0xc8] sm:$0xff] %v284
    %431 = vst [vmem:[#allocation2 + $0xd0] sm:$0xff] %v395
    %432 = vst [vmem:[#allocation2 + $0xd8] sm:$0xff] %v397
    %433 = vst [vmem:[#allocation2 + $0xe0] sm:$0xff] %v288
    %434 = vst [vmem:[#allocation2 + $0xe8] sm:$0xff] %v290
    %435 = vst [vmem:[#allocation2 + $0xf0] sm:$0xff] %v401
    %436 = vst [vmem:[#allocation2 + $0xf8] sm:$0xff] %v403
    %v437 = vld [vmem:[%s5] sm:$0xff]
    %v438 = vld [vmem:[%s6] sm:$0xff]
    %v439 = vld [vmem:[#allocation2] sm:$0xff]
    %v440 = vld [vmem:[#allocation2 + $0x8] sm:$0xff]
    %v441 = vld [vmem:[#allocation2 + $0x10] sm:$0xff]
    %v442 = vld [vmem:[#allocation2 + $0x18] sm:$0xff]
    %v443 = vld [vmem:[#allocation6] sm:$0xff]
    %v444 = vld [vmem:[#allocation6 + $0x8] sm:$0xff]
    %v445 = vld [vmem:[#allocation6 + $0x10] sm:$0xff]
    %v446 = vld [vmem:[#allocation6 + $0x18] sm:$0xff]
    %v447 = vld [vmem:[#allocation6 + $0x20] sm:$0xff]
    %v448 = vld [vmem:[#allocation6 + $0x28] sm:$0xff]
    %v449 = vld [vmem:[#allocation6 + $0x30] sm:$0xff]
    %v450 = vld [vmem:[#allocation6 + $0x38] sm:$0xff]
    %v451 = vld [vmem:[#allocation6 + $0x40] sm:$0xff]
    %v452 = vld [vmem:[#allocation6 + $0x48] sm:$0xff]
    %v453 = vld [vmem:[#allocation6 + $0x50] sm:$0xff]
    %v454 = vld [vmem:[#allocation6 + $0x58] sm:$0xff]
    %v455 = vld [vmem:[#allocation6 + $0x60] sm:$0xff]
    %v456 = vld [vmem:[#allocation6 + $0x68] sm:$0xff]
    %v457 = vld [vmem:[#allocation6 + $0x70] sm:$0xff]
    %v458 = vld [vmem:[#allocation6 + $0x78] sm:$0xff]
    %v459 = vld [vmem:[#allocation6 + $0x80] sm:$0xff]
    %v460 = vld [vmem:[#allocation6 + $0x88] sm:$0xff]
    %v461 = vld [vmem:[#allocation6 + $0x90] sm:$0xff]
    %v462 = vld [vmem:[#allocation6 + $0x98] sm:$0xff]
    %v463 = vld [vmem:[#allocation6 + $0xa0] sm:$0xff]
    %v464 = vld [vmem:[#allocation6 + $0xa8] sm:$0xff]
    %v465 = vld [vmem:[#allocation6 + $0xb0] sm:$0xff]
    %v466 = vld [vmem:[#allocation6 + $0xb8] sm:$0xff]
    %v467 = vld [vmem:[#allocation6 + $0xc0] sm:$0xff]
    %v468 = vld [vmem:[#allocation6 + $0xc8] sm:$0xff]
    %v469 = vld [vmem:[#allocation6 + $0xd0] sm:$0xff]
    %v470 = vld [vmem:[#allocation6 + $0xd8] sm:$0xff]
    %v471 = vld [vmem:[#allocation6 + $0xe0] sm:$0xff]
    %v472 = vld [vmem:[#allocation6 + $0xe8] sm:$0xff]
    %v473 = vld [vmem:[#allocation6 + $0xf0] sm:$0xff]
    %v474 = vld [vmem:[#allocation6 + $0xf8] sm:$0xff]
    %v475 = vld [vmem:[#allocation6 + $0x100] sm:$0xff]
    %v476 = vld [vmem:[#allocation6 + $0x108] sm:$0xff]
    %v477 = vld [vmem:[#allocation6 + $0x110] sm:$0xff]
    %v478 = vld [vmem:[#allocation6 + $0x118] sm:$0xff]
    %v479 = vld [vmem:[#allocation6 + $0x120] sm:$0xff]
    %v480 = vld [vmem:[#allocation6 + $0x128] sm:$0xff]
    %v481 = vld [vmem:[#allocation6 + $0x130] sm:$0xff]
    %v482 = vld [vmem:[#allocation6 + $0x138] sm:$0xff]
    %v483 = vld [vmem:[#allocation6 + $0x140] sm:$0xff]
    %v484 = vld [vmem:[#allocation6 + $0x148] sm:$0xff]
    %v485 = vld [vmem:[#allocation6 + $0x150] sm:$0xff]
    %v486 = vld [vmem:[#allocation6 + $0x158] sm:$0xff]
    %v487 = vld [vmem:[#allocation6 + $0x160] sm:$0xff]
    %v488 = vld [vmem:[#allocation6 + $0x168] sm:$0xff]
    %v489 = vld [vmem:[#allocation6 + $0x170] sm:$0xff]
    %v490 = vld [vmem:[#allocation6 + $0x178] sm:$0xff]
    %v491 = vld [vmem:[#allocation6 + $0x180] sm:$0xff]
    %v492 = vld [vmem:[#allocation6 + $0x188] sm:$0xff]
    %v493 = vld [vmem:[#allocation6 + $0x190] sm:$0xff]
    %v494 = vld [vmem:[#allocation6 + $0x198] sm:$0xff]
    %v495 = vld [vmem:[#allocation6 + $0x1a0] sm:$0xff]
    %v496 = vld [vmem:[#allocation6 + $0x1a8] sm:$0xff]
    %v497 = vld [vmem:[#allocation6 + $0x1b0] sm:$0xff]
    %v498 = vld [vmem:[#allocation6 + $0x1b8] sm:$0xff]
    %v499 = vld [vmem:[#allocation6 + $0x1c0] sm:$0xff]
    %v500 = vld [vmem:[#allocation6 + $0x1c8] sm:$0xff]
    %v501 = vld [vmem:[#allocation6 + $0x1d0] sm:$0xff]
    %v502 = vld [vmem:[#allocation6 + $0x1d8] sm:$0xff]
    %v503 = vld [vmem:[#allocation6 + $0x1e0] sm:$0xff]
    %v504 = vld [vmem:[#allocation6 + $0x1e8] sm:$0xff]
    %v505 = vld [vmem:[#allocation6 + $0x1f0] sm:$0xff]
    %v506 = vld [vmem:[#allocation6 + $0x1f8] sm:$0xff]
    %507 = vmatprep.subr.mxu0 %v444
    %508 = vmatpush1.msra.mxu0 %v443
    %509 = vmatprep.subr.mxu0 %v448
    %510 = vmatpush1.msra.mxu0 %v447
    %511 = vmatprep.subr.mxu0 %v452
    %512 = vmatpush1.msra.mxu0 %v451
    %513 = vmatprep.subr.mxu0 %v456
    %514 = vmatpush1.msra.mxu0 %v455
    %515 = vmatprep.subr.mxu0 %v460
    %516 = vmatpush1.msra.mxu0 %v459
    %517 = vmatprep.subr.mxu0 %v464
    %518 = vmatpush1.msra.mxu0 %v463
    %519 = vmatprep.subr.mxu0 %v468
    %520 = vmatpush1.msra.mxu0 %v467
    %521 = vmatprep.subr.mxu0 %v472
    %522 = vmatpush1.msra.mxu0 %v471
    %523 = vmatprep.subr.mxu0 %v476
    %524 = vmatpush1.msra.mxu0 %v475
    %525 = vmatprep.subr.mxu0 %v480
    %526 = vmatpush1.msra.mxu0 %v479
    %527 = vmatprep.subr.mxu0 %v484
    %528 = vmatpush1.msra.mxu0 %v483
    %529 = vmatprep.subr.mxu0 %v488
    %530 = vmatpush1.msra.mxu0 %v487
    %531 = vmatprep.subr.mxu0 %v492
    %532 = vmatpush1.msra.mxu0 %v491
    %533 = vmatprep.subr.mxu0 %v496
    %534 = vmatpush1.msra.mxu0 %v495
    %535 = vmatprep.subr.mxu0 %v500
    %536 = vmatpush1.msra.mxu0 %v499
    %537 = vmatprep.subr.mxu0 %v504
    %538 = vmatpush1.msra.mxu0 %v503
    %539 = vmatprep.subr.mxu0 0.0
    %540 = vmatpush1.msra.mxu0 0.0
    %541 = vmatprep.subr.mxu0 0.0
    %542 = vmatpush1.msra.mxu0 0.0
    %543 = vmatprep.subr.mxu0 0.0
    %544 = vmatpush1.msra.mxu0 0.0
    %545 = vmatprep.subr.mxu0 0.0
    %546 = vmatpush1.msra.mxu0 0.0
    %547 = vmatprep.subr.mxu0 0.0
    %548 = vmatpush1.msra.mxu0 0.0
    %549 = vmatprep.subr.mxu0 0.0
    %550 = vmatpush1.msra.mxu0 0.0
    %551 = vmatprep.subr.mxu0 0.0
    %552 = vmatpush1.msra.mxu0 0.0
    %553 = vmatprep.subr.mxu0 0.0
    %554 = vmatpush1.msra.mxu0 0.0
    %555 = vmatprep.subr.mxu0 0.0
    %556 = vmatpush1.msra.mxu0 0.0
    %557 = vmatprep.subr.mxu0 0.0
    %558 = vmatpush1.msra.mxu0 0.0
    %559 = vmatprep.subr.mxu0 0.0
    %560 = vmatpush1.msra.mxu0 0.0
    %561 = vmatprep.subr.mxu0 0.0
    %562 = vmatpush1.msra.mxu0 0.0
    %563 = vmatprep.subr.mxu0 0.0
    %564 = vmatpush1.msra.mxu0 0.0
    %565 = vmatprep.subr.mxu0 0.0
    %566 = vmatpush1.msra.mxu0 0.0
    %567 = vmatprep.subr.mxu0 0.0
    %568 = vmatpush1.msra.mxu0 0.0
    %569 = vmatprep.subr.mxu0 0.0
    %570 = vmatpush1.msra.mxu0 0.0
    %571 = vmatprep.mubr.f32.mxu0 0.0
    %572 = vmatmul.mubr.f32.gmra.mrb[0].mxu0 %v437
    %v573 = vpop.f32.mrb[0].mxu0
    %v574 = vadd.f32 0.0, %v573
    %v575 = vpop.f32.mrb[0].mxu0
    %v576 = vadd.f32 0.0, %v575
    %577 = vdwg.mxu0
    %578 = vmatprep.subr.mxu0 %v446
    %579 = vmatpush1.msra.mxu0 %v445
    %580 = vmatprep.subr.mxu0 %v450
    %581 = vmatpush1.msra.mxu0 %v449
    %582 = vmatprep.subr.mxu0 %v454
    %583 = vmatpush1.msra.mxu0 %v453
    %584 = vmatprep.subr.mxu0 %v458
    %585 = vmatpush1.msra.mxu0 %v457
    %586 = vmatprep.subr.mxu0 %v462
    %587 = vmatpush1.msra.mxu0 %v461
    %588 = vmatprep.subr.mxu0 %v466
    %589 = vmatpush1.msra.mxu0 %v465
    %590 = vmatprep.subr.mxu0 %v470
    %591 = vmatpush1.msra.mxu0 %v469
    %592 = vmatprep.subr.mxu0 %v474
    %593 = vmatpush1.msra.mxu0 %v473
    %594 = vmatprep.subr.mxu0 %v478
    %595 = vmatpush1.msra.mxu0 %v477
    %596 = vmatprep.subr.mxu0 %v482
    %597 = vmatpush1.msra.mxu0 %v481
    %598 = vmatprep.subr.mxu0 %v486
    %599 = vmatpush1.msra.mxu0 %v485
    %600 = vmatprep.subr.mxu0 %v490
    %601 = vmatpush1.msra.mxu0 %v489
    %602 = vmatprep.subr.mxu0 %v494
    %603 = vmatpush1.msra.mxu0 %v493
    %604 = vmatprep.subr.mxu0 %v498
    %605 = vmatpush1.msra.mxu0 %v497
    %606 = vmatprep.subr.mxu0 %v502
    %607 = vmatpush1.msra.mxu0 %v501
    %608 = vmatprep.subr.mxu0 %v506
    %609 = vmatpush1.msra.mxu0 %v505
    %610 = vmatprep.subr.mxu0 0.0
    %611 = vmatpush1.msra.mxu0 0.0
    %612 = vmatprep.subr.mxu0 0.0
    %613 = vmatpush1.msra.mxu0 0.0
    %614 = vmatprep.subr.mxu0 0.0
    %615 = vmatpush1.msra.mxu0 0.0
    %616 = vmatprep.subr.mxu0 0.0
    %617 = vmatpush1.msra.mxu0 0.0
    %618 = vmatprep.subr.mxu0 0.0
    %619 = vmatpush1.msra.mxu0 0.0
    %620 = vmatprep.subr.mxu0 0.0
    %621 = vmatpush1.msra.mxu0 0.0
    %622 = vmatprep.subr.mxu0 0.0
    %623 = vmatpush1.msra.mxu0 0.0
    %624 = vmatprep.subr.mxu0 0.0
    %625 = vmatpush1.msra.mxu0 0.0
    %626 = vmatprep.subr.mxu0 0.0
    %627 = vmatpush1.msra.mxu0 0.0
    %628 = vmatprep.subr.mxu0 0.0
    %629 = vmatpush1.msra.mxu0 0.0
    %630 = vmatprep.subr.mxu0 0.0
    %631 = vmatpush1.msra.mxu0 0.0
    %632 = vmatprep.subr.mxu0 0.0
    %633 = vmatpush1.msra.mxu0 0.0
    %634 = vmatprep.subr.mxu0 0.0
    %635 = vmatpush1.msra.mxu0 0.0
    %636 = vmatprep.subr.mxu0 0.0
    %637 = vmatpush1.msra.mxu0 0.0
    %638 = vmatprep.subr.mxu0 0.0
    %639 = vmatpush1.msra.mxu0 0.0
    %640 = vmatprep.subr.mxu0 0.0
    %641 = vmatpush1.msra.mxu0 0.0
    %642 = vmatprep.mubr.f32.mxu0 0.0
    %643 = vmatmul.mubr.f32.gmra.mrb[0].mxu0 %v437
    %v644 = vpop.f32.mrb[0].mxu0
    %v645 = vadd.f32 0.0, %v644
    %v646 = vpop.f32.mrb[0].mxu0
    %v647 = vadd.f32 0.0, %v646
    %648 = vdwg.mxu0
    %v649 = vadd.f32 %v439, %v574
    %v650 = vadd.f32 %v440, %v576
    %v651 = vadd.f32 %v441, %v645
    %v652 = vadd.f32 %v442, %v647
    %v653 = vmul.f32 %v649, 0.5
    %v654 = vmul.f32 %v650, 0.5
    %v655 = vmul.f32 %v651, 0.5
    %v656 = vtanh.pop %v653
    %v657 = vtanh.pop %v654
    %v658 = vtanh.pop %v655
    %v659 = vmul.f32 %v656, 0.5
    %v660 = vmul.f32 %v657, 0.5
    %v661 = vmul.f32 %v658, 0.5
    %v662 = vadd.f32 %v659, 0.5
    %v663 = vadd.f32 %v660, 0.5
    %v664 = vadd.f32 %v661, 0.5
    %v665 = vtanh.pop %v652
    %v666 = vmul.f32 %v663, %v438
    %v667 = vmul.f32 %v662, %v665
    %v668 = vadd.f32 %v666, %v667
    %v669 = vtanh.pop %v668
    %v670 = vmul.f32 %v664, %v669
    %671 = vst [vmem:[#allocation3] sm:$0xff] %v670
    %v672 = vld [vmem:[#allocation2 + $0x20] sm:$0xff]
    %v673 = vld [vmem:[#allocation2 + $0x28] sm:$0xff]
    %v674 = vld [vmem:[#allocation2 + $0x30] sm:$0xff]
    %v675 = vld [vmem:[#allocation2 + $0x38] sm:$0xff]
    %v676 = vld [vmem:[#allocation6] sm:$0xff]
    %v677 = vld [vmem:[#allocation6 + $0x8] sm:$0xff]
    %v678 = vld [vmem:[#allocation6 + $0x10] sm:$0xff]
    %v679 = vld [vmem:[#allocation6 + $0x18] sm:$0xff]
    %v680 = vld [vmem:[#allocation6 + $0x20] sm:$0xff]
    %v681 = vld [vmem:[#allocation6 + $0x28] sm:$0xff]
    %v682 = vld [vmem:[#allocation6 + $0x30] sm:$0xff]
    %v683 = vld [vmem:[#allocation6 + $0x38] sm:$0xff]
    %v684 = vld [vmem:[#allocation6 + $0x40] sm:$0xff]
    %v685 = vld [vmem:[#allocation6 + $0x48] sm:$0xff]
    %v686 = vld [vmem:[#allocation6 + $0x50] sm:$0xff]
    %v687 = vld [vmem:[#allocation6 + $0x58] sm:$0xff]
    %v688 = vld [vmem:[#allocation6 + $0x60] sm:$0xff]
    %v689 = vld [vmem:[#allocation6 + $0x68] sm:$0xff]
    %v690 = vld [vmem:[#allocation6 + $0x70] sm:$0xff]
    %v691 = vld [vmem:[#allocation6 + $0x78] sm:$0xff]
    %v692 = vld [vmem:[#allocation6 + $0x80] sm:$0xff]
    %v693 = vld [vmem:[#allocation6 + $0x88] sm:$0xff]
    %v694 = vld [vmem:[#allocation6 + $0x90] sm:$0xff]
    %v695 = vld [vmem:[#allocation6 + $0x98] sm:$0xff]
    %v696 = vld [vmem:[#allocation6 + $0xa0] sm:$0xff]
    %v697 = vld [vmem:[#allocation6 + $0xa8] sm:$0xff]
    %v698 = vld [vmem:[#allocation6 + $0xb0] sm:$0xff]
    %v699 = vld [vmem:[#allocation6 + $0xb8] sm:$0xff]
    %v700 = vld [vmem:[#allocation6 + $0xc0] sm:$0xff]
    %v701 = vld [vmem:[#allocation6 + $0xc8] sm:$0xff]
    %v702 = vld [vmem:[#allocation6 + $0xd0] sm:$0xff]
    %v703 = vld [vmem:[#allocation6 + $0xd8] sm:$0xff]
    %v704 = vld [vmem:[#allocation6 + $0xe0] sm:$0xff]
    %v705 = vld [vmem:[#allocation6 + $0xe8] sm:$0xff]
    %v706 = vld [vmem:[#allocation6 + $0xf0] sm:$0xff]
    %v707 = vld [vmem:[#allocation6 + $0xf8] sm:$0xff]
    %v708 = vld [vmem:[#allocation6 + $0x100] sm:$0xff]
    %v709 = vld [vmem:[#allocation6 + $0x108] sm:$0xff]
    %v710 = vld [vmem:[#allocation6 + $0x110] sm:$0xff]
    %v711 = vld [vmem:[#allocation6 + $0x118] sm:$0xff]
    %v712 = vld [vmem:[#allocation6 + $0x120] sm:$0xff]
    %v713 = vld [vmem:[#allocation6 + $0x128] sm:$0xff]
    %v714 = vld [vmem:[#allocation6 + $0x130] sm:$0xff]
    %v715 = vld [vmem:[#allocation6 + $0x138] sm:$0xff]
    %v716 = vld [vmem:[#allocation6 + $0x140] sm:$0xff]
    %v717 = vld [vmem:[#allocation6 + $0x148] sm:$0xff]
    %v718 = vld [vmem:[#allocation6 + $0x150] sm:$0xff]
    %v719 = vld [vmem:[#allocation6 + $0x158] sm:$0xff]
    %v720 = vld [vmem:[#allocation6 + $0x160] sm:$0xff]
    %v721 = vld [vmem:[#allocation6 + $0x168] sm:$0xff]
    %v722 = vld [vmem:[#allocation6 + $0x170] sm:$0xff]
    %v723 = vld [vmem:[#allocation6 + $0x178] sm:$0xff]
    %v724 = vld [vmem:[#allocation6 + $0x180] sm:$0xff]
    %v725 = vld [vmem:[#allocation6 + $0x188] sm:$0xff]
    %v726 = vld [vmem:[#allocation6 + $0x190] sm:$0xff]
    %v727 = vld [vmem:[#allocation6 + $0x198] sm:$0xff]
    %v728 = vld [vmem:[#allocation6 + $0x1a0] sm:$0xff]
    %v729 = vld [vmem:[#allocation6 + $0x1a8] sm:$0xff]
    %v730 = vld [vmem:[#allocation6 + $0x1b0] sm:$0xff]
    %v731 = vld [vmem:[#allocation6 + $0x1b8] sm:$0xff]
    %v732 = vld [vmem:[#allocation6 + $0x1c0] sm:$0xff]
    %v733 = vld [vmem:[#allocation6 + $0x1c8] sm:$0xff]
    %v734 = vld [vmem:[#allocation6 + $0x1d0] sm:$0xff]
    %v735 = vld [vmem:[#allocation6 + $0x1d8] sm:$0xff]
    %v736 = vld [vmem:[#allocation6 + $0x1e0] sm:$0xff]
    %v737 = vld [vmem:[#allocation6 + $0x1e8] sm:$0xff]
    %v738 = vld [vmem:[#allocation6 + $0x1f0] sm:$0xff]
    %v739 = vld [vmem:[#allocation6 + $0x1f8] sm:$0xff]
    %740 = vmatprep.subr.mxu0 %v677
    %741 = vmatpush1.msra.mxu0 %v676
    %742 = vmatprep.subr.mxu0 %v681
    %743 = vmatpush1.msra.mxu0 %v680
    %744 = vmatprep.subr.mxu0 %v685
    %745 = vmatpush1.msra.mxu0 %v684
    %746 = vmatprep.subr.mxu0 %v689
    %747 = vmatpush1.msra.mxu0 %v688
    %748 = vmatprep.subr.mxu0 %v693
    %749 = vmatpush1.msra.mxu0 %v692
    %750 = vmatprep.subr.mxu0 %v697
    %751 = vmatpush1.msra.mxu0 %v696
    %752 = vmatprep.subr.mxu0 %v701
    %753 = vmatpush1.msra.mxu0 %v700
    %754 = vmatprep.subr.mxu0 %v705
    %755 = vmatpush1.msra.mxu0 %v704
    %756 = vmatprep.subr.mxu0 %v709
    %757 = vmatpush1.msra.mxu0 %v708
    %758 = vmatprep.subr.mxu0 %v713
    %759 = vmatpush1.msra.mxu0 %v712
    %760 = vmatprep.subr.mxu0 %v717
    %761 = vmatpush1.msra.mxu0 %v716
    %762 = vmatprep.subr.mxu0 %v721
    %763 = vmatpush1.msra.mxu0 %v720
    %764 = vmatprep.subr.mxu0 %v725
    %765 = vmatpush1.msra.mxu0 %v724
    %766 = vmatprep.subr.mxu0 %v729
    %767 = vmatpush1.msra.mxu0 %v728
    %768 = vmatprep.subr.mxu0 %v733
    %769 = vmatpush1.msra.mxu0 %v732
    %770 = vmatprep.subr.mxu0 %v737
    %771 = vmatpush1.msra.mxu0 %v736
    %772 = vmatprep.subr.mxu0 0.0
    %773 = vmatpush1.msra.mxu0 0.0
    %774 = vmatprep.subr.mxu0 0.0
    %775 = vmatpush1.msra.mxu0 0.0
    %776 = vmatprep.subr.mxu0 0.0
    %777 = vmatpush1.msra.mxu0 0.0
    %778 = vmatprep.subr.mxu0 0.0
    %779 = vmatpush1.msra.mxu0 0.0
    %780 = vmatprep.subr.mxu0 0.0
    %781 = vmatpush1.msra.mxu0 0.0
    %782 = vmatprep.subr.mxu0 0.0
    %783 = vmatpush1.msra.mxu0 0.0
    %784 = vmatprep.subr.mxu0 0.0
    %785 = vmatpush1.msra.mxu0 0.0
    %786 = vmatprep.subr.mxu0 0.0
    %787 = vmatpush1.msra.mxu0 0.0
    %788 = vmatprep.subr.mxu0 0.0
    %789 = vmatpush1.msra.mxu0 0.0
    %790 = vmatprep.subr.mxu0 0.0
    %791 = vmatpush1.msra.mxu0 0.0
    %792 = vmatprep.subr.mxu0 0.0
    %793 = vmatpush1.msra.mxu0 0.0
    %794 = vmatprep.subr.mxu0 0.0
    %795 = vmatpush1.msra.mxu0 0.0
    %796 = vmatprep.subr.mxu0 0.0
    %797 = vmatpush1.msra.mxu0 0.0
    %798 = vmatprep.subr.mxu0 0.0
    %799 = vmatpush1.msra.mxu0 0.0
    %800 = vmatprep.subr.mxu0 0.0
    %801 = vmatpush1.msra.mxu0 0.0
    %802 = vmatprep.subr.mxu0 0.0
    %803 = vmatpush1.msra.mxu0 0.0
    %804 = vmatprep.mubr.f32.mxu0 0.0
    %805 = vmatmul.mubr.f32.gmra.mrb[0].mxu0 %v670
    %v806 = vpop.f32.mrb[0].mxu0
    %v807 = vadd.f32 0.0, %v806
    %v808 = vpop.f32.mrb[0].mxu0
    %v809 = vadd.f32 0.0, %v808
    %810 = vdwg.mxu0
    %811 = vmatprep.subr.mxu0 %v679
    %812 = vmatpush1.msra.mxu0 %v678
    %813 = vmatprep.subr.mxu0 %v683
    %814 = vmatpush1.msra.mxu0 %v682
    %815 = vmatprep.subr.mxu0 %v687
    %816 = vmatpush1.msra.mxu0 %v686
    %817 = vmatprep.subr.mxu0 %v691
    %818 = vmatpush1.msra.mxu0 %v690
    %819 = vmatprep.subr.mxu0 %v695
    %820 = vmatpush1.msra.mxu0 %v694
    %821 = vmatprep.subr.mxu0 %v699
    %822 = vmatpush1.msra.mxu0 %v698
    %823 = vmatprep.subr.mxu0 %v703
    %824 = vmatpush1.msra.mxu0 %v702
    %825 = vmatprep.subr.mxu0 %v707
    %826 = vmatpush1.msra.mxu0 %v706
    %827 = vmatprep.subr.mxu0 %v711
    %828 = vmatpush1.msra.mxu0 %v710
    %829 = vmatprep.subr.mxu0 %v715
    %830 = vmatpush1.msra.mxu0 %v714
    %831 = vmatprep.subr.mxu0 %v719
    %832 = vmatpush1.msra.mxu0 %v718
    %833 = vmatprep.subr.mxu0 %v723
    %834 = vmatpush1.msra.mxu0 %v722
    %835 = vmatprep.subr.mxu0 %v727
    %836 = vmatpush1.msra.mxu0 %v726
    %837 = vmatprep.subr.mxu0 %v731
    %838 = vmatpush1.msra.mxu0 %v730
    %839 = vmatprep.subr.mxu0 %v735
    %840 = vmatpush1.msra.mxu0 %v734
    %841 = vmatprep.subr.mxu0 %v739
    %842 = vmatpush1.msra.mxu0 %v738
    %843 = vmatprep.subr.mxu0 0.0
    %844 = vmatpush1.msra.mxu0 0.0
    %845 = vmatprep.subr.mxu0 0.0
    %846 = vmatpush1.msra.mxu0 0.0
    %847 = vmatprep.subr.mxu0 0.0
    %848 = vmatpush1.msra.mxu0 0.0
    %849 = vmatprep.subr.mxu0 0.0
    %850 = vmatpush1.msra.mxu0 0.0
    %851 = vmatprep.subr.mxu0 0.0
    %852 = vmatpush1.msra.mxu0 0.0
    %853 = vmatprep.subr.mxu0 0.0
    %854 = vmatpush1.msra.mxu0 0.0
    %855 = vmatprep.subr.mxu0 0.0
    %856 = vmatpush1.msra.mxu0 0.0
    %857 = vmatprep.subr.mxu0 0.0
    %858 = vmatpush1.msra.mxu0 0.0
    %859 = vmatprep.subr.mxu0 0.0
    %860 = vmatpush1.msra.mxu0 0.0
    %861 = vmatprep.subr.mxu0 0.0
    %862 = vmatpush1.msra.mxu0 0.0
    %863 = vmatprep.subr.mxu0 0.0
    %864 = vmatpush1.msra.mxu0 0.0
    %865 = vmatprep.subr.mxu0 0.0
    %866 = vmatpush1.msra.mxu0 0.0
    %867 = vmatprep.subr.mxu0 0.0
    %868 = vmatpush1.msra.mxu0 0.0
    %869 = vmatprep.subr.mxu0 0.0
    %870 = vmatpush1.msra.mxu0 0.0
    %871 = vmatprep.subr.mxu0 0.0
    %872 = vmatpush1.msra.mxu0 0.0
    %873 = vmatprep.subr.mxu0 0.0
    %874 = vmatpush1.msra.mxu0 0.0
    %875 = vmatprep.mubr.f32.mxu0 0.0
    %876 = vmatmul.mubr.f32.gmra.mrb[0].mxu0 %v670
    %v877 = vpop.f32.mrb[0].mxu0
    %v878 = vadd.f32 0.0, %v877
    %v879 = vpop.f32.mrb[0].mxu0
    %v880 = vadd.f32 0.0, %v879
    %881 = vdwg.mxu0
    %v882 = vadd.f32 %v672, %v807
    %v883 = vadd.f32 %v673, %v809
    %v884 = vadd.f32 %v674, %v878
    %v885 = vadd.f32 %v675, %v880
    %v886 = vmul.f32 %v882, 0.5
    %v887 = vmul.f32 %v883, 0.5
    %v888 = vmul.f32 %v884, 0.5
    %v889 = vtanh.pop %v886
    %v890 = vtanh.pop %v887
    %v891 = vtanh.pop %v888
    %v892 = vmul.f32 %v889, 0.5
    %v893 = vmul.f32 %v890, 0.5
    %v894 = vmul.f32 %v891, 0.5
    %v895 = vadd.f32 %v892, 0.5
    %v896 = vadd.f32 %v893, 0.5
    %v897 = vadd.f32 %v894, 0.5
    %v898 = vtanh.pop %v885
    %v899 = vmul.f32 %v896, %v668
    %v900 = vmul.f32 %v895, %v898
    %v901 = vadd.f32 %v899, %v900
    %v902 = vtanh.pop %v901
    %v903 = vmul.f32 %v897, %v902
    %904 = vst [vmem:[#allocation3 + $0x8] sm:$0xff] %v903
    %v905 = vld [vmem:[#allocation2 + $0x40] sm:$0xff]
    %v906 = vld [vmem:[#allocation2 + $0x48] sm:$0xff]
    %v907 = vld [vmem:[#allocation2 + $0x50] sm:$0xff]
    %v908 = vld [vmem:[#allocation2 + $0x58] sm:$0xff]
    %v909 = vld [vmem:[#allocation6] sm:$0xff]
    %v910 = vld [vmem:[#allocation6 + $0x8] sm:$0xff]
    %v911 = vld [vmem:[#allocation6 + $0x10] sm:$0xff]
    %v912 = vld [vmem:[#allocation6 + $0x18] sm:$0xff]
    %v913 = vld [vmem:[#allocation6 + $0x20] sm:$0xff]
    %v914 = vld [vmem:[#allocation6 + $0x28] sm:$0xff]
    %v915 = vld [vmem:[#allocation6 + $0x30] sm:$0xff]
    %v916 = vld [vmem:[#allocation6 + $0x38] sm:$0xff]
    %v917 = vld [vmem:[#allocation6 + $0x40] sm:$0xff]
    %v918 = vld [vmem:[#allocation6 + $0x48] sm:$0xff]
    %v919 = vld [vmem:[#allocation6 + $0x50] sm:$0xff]
    %v920 = vld [vmem:[#allocation6 + $0x58] sm:$0xff]
    %v921 = vld [vmem:[#allocation6 + $0x60] sm:$0xff]
    %v922 = vld [vmem:[#allocation6 + $0x68] sm:$0xff]
    %v923 = vld [vmem:[#allocation6 + $0x70] sm:$0xff]
    %v924 = vld [vmem:[#allocation6 + $0x78] sm:$0xff]
    %v925 = vld [vmem:[#allocation6 + $0x80] sm:$0xff]
    %v926 = vld [vmem:[#allocation6 + $0x88] sm:$0xff]
    %v927 = vld [vmem:[#allocation6 + $0x90] sm:$0xff]
    %v928 = vld [vmem:[#allocation6 + $0x98] sm:$0xff]
    %v929 = vld [vmem:[#allocation6 + $0xa0] sm:$0xff]
    %v930 = vld [vmem:[#allocation6 + $0xa8] sm:$0xff]
    %v931 = vld [vmem:[#allocation6 + $0xb0] sm:$0xff]
    %v932 = vld [vmem:[#allocation6 + $0xb8] sm:$0xff]
    %v933 = vld [vmem:[#allocation6 + $0xc0] sm:$0xff]
    %v934 = vld [vmem:[#allocation6 + $0xc8] sm:$0xff]
    %v935 = vld [vmem:[#allocation6 + $0xd0] sm:$0xff]
    %v936 = vld [vmem:[#allocation6 + $0xd8] sm:$0xff]
    %v937 = vld [vmem:[#allocation6 + $0xe0] sm:$0xff]
    %v938 = vld [vmem:[#allocation6 + $0xe8] sm:$0xff]
    %v939 = vld [vmem:[#allocation6 + $0xf0] sm:$0xff]
    %v940 = vld [vmem:[#allocation6 + $0xf8] sm:$0xff]
    %v941 = vld [vmem:[#allocation6 + $0x100] sm:$0xff]
    %v942 = vld [vmem:[#allocation6 + $0x108] sm:$0xff]
    %v943 = vld [vmem:[#allocation6 + $0x110] sm:$0xff]
    %v944 = vld [vmem:[#allocation6 + $0x118] sm:$0xff]
    %v945 = vld [vmem:[#allocation6 + $0x120] sm:$0xff]
    %v946 = vld [vmem:[#allocation6 + $0x128] sm:$0xff]
    %v947 = vld [vmem:[#allocation6 + $0x130] sm:$0xff]
    %v948 = vld [vmem:[#allocation6 + $0x138] sm:$0xff]
    %v949 = vld [vmem:[#allocation6 + $0x140] sm:$0xff]
    %v950 = vld [vmem:[#allocation6 + $0x148] sm:$0xff]
    %v951 = vld [vmem:[#allocation6 + $0x150] sm:$0xff]
    %v952 = vld [vmem:[#allocation6 + $0x158] sm:$0xff]
    %v953 = vld [vmem:[#allocation6 + $0x160] sm:$0xff]
    %v954 = vld [vmem:[#allocation6 + $0x168] sm:$0xff]
    %v955 = vld [vmem:[#allocation6 + $0x170] sm:$0xff]
    %v956 = vld [vmem:[#allocation6 + $0x178] sm:$0xff]
    %v957 = vld [vmem:[#allocation6 + $0x180] sm:$0xff]
    %v958 = vld [vmem:[#allocation6 + $0x188] sm:$0xff]
    %v959 = vld [vmem:[#allocation6 + $0x190] sm:$0xff]
    %v960 = vld [vmem:[#allocation6 + $0x198] sm:$0xff]
    %v961 = vld [vmem:[#allocation6 + $0x1a0] sm:$0xff]
    %v962 = vld [vmem:[#allocation6 + $0x1a8] sm:$0xff]
    %v963 = vld [vmem:[#allocation6 + $0x1b0] sm:$0xff]
    %v964 = vld [vmem:[#allocation6 + $0x1b8] sm:$0xff]
    %v965 = vld [vmem:[#allocation6 + $0x1c0] sm:$0xff]
    %v966 = vld [vmem:[#allocation6 + $0x1c8] sm:$0xff]
    %v967 = vld [vmem:[#allocation6 + $0x1d0] sm:$0xff]
    %v968 = vld [vmem:[#allocation6 + $0x1d8] sm:$0xff]
    %v969 = vld [vmem:[#allocation6 + $0x1e0] sm:$0xff]
    %v970 = vld [vmem:[#allocation6 + $0x1e8] sm:$0xff]
    %v971 = vld [vmem:[#allocation6 + $0x1f0] sm:$0xff]
    %v972 = vld [vmem:[#allocation6 + $0x1f8] sm:$0xff]
    %973 = vmatprep.subr.mxu0 %v910
    %974 = vmatpush1.msra.mxu0 %v909
    %975 = vmatprep.subr.mxu0 %v914
    %976 = vmatpush1.msra.mxu0 %v913
    %977 = vmatprep.subr.mxu0 %v918
    %978 = vmatpush1.msra.mxu0 %v917
    %979 = vmatprep.subr.mxu0 %v922
    %980 = vmatpush1.msra.mxu0 %v921
    %981 = vmatprep.subr.mxu0 %v926
    %982 = vmatpush1.msra.mxu0 %v925
    %983 = vmatprep.subr.mxu0 %v930
    %984 = vmatpush1.msra.mxu0 %v929
    %985 = vmatprep.subr.mxu0 %v934
    %986 = vmatpush1.msra.mxu0 %v933
    %987 = vmatprep.subr.mxu0 %v938
    %988 = vmatpush1.msra.mxu0 %v937
    %989 = vmatprep.subr.mxu0 %v942
    %990 = vmatpush1.msra.mxu0 %v941
    %991 = vmatprep.subr.mxu0 %v946
    %992 = vmatpush1.msra.mxu0 %v945
    %993 = vmatprep.subr.mxu0 %v950
    %994 = vmatpush1.msra.mxu0 %v949
    %995 = vmatprep.subr.mxu0 %v954
    %996 = vmatpush1.msra.mxu0 %v953
    %997 = vmatprep.subr.mxu0 %v958
    %998 = vmatpush1.msra.mxu0 %v957
    %999 = vmatprep.subr.mxu0 %v962
    %1000 = vmatpush1.msra.mxu0 %v961
    %1001 = vmatprep.subr.mxu0 %v966
    %1002 = vmatpush1.msra.mxu0 %v965
    %1003 = vmatprep.subr.mxu0 %v970
    %1004 = vmatpush1.msra.mxu0 %v969
    %1005 = vmatprep.subr.mxu0 0.0
    %1006 = vmatpush1.msra.mxu0 0.0
    %1007 = vmatprep.subr.mxu0 0.0
    %1008 = vmatpush1.msra.mxu0 0.0
    %1009 = vmatprep.subr.mxu0 0.0
    %1010 = vmatpush1.msra.mxu0 0.0
    %1011 = vmatprep.subr.mxu0 0.0
    %1012 = vmatpush1.msra.mxu0 0.0
    %1013 = vmatprep.subr.mxu0 0.0
    %1014 = vmatpush1.msra.mxu0 0.0
    %1015 = vmatprep.subr.mxu0 0.0
    %1016 = vmatpush1.msra.mxu0 0.0
    %1017 = vmatprep.subr.mxu0 0.0
    %1018 = vmatpush1.msra.mxu0 0.0
    %1019 = vmatprep.subr.mxu0 0.0
    %1020 = vmatpush1.msra.mxu0 0.0
    %1021 = vmatprep.subr.mxu0 0.0
    %1022 = vmatpush1.msra.mxu0 0.0
    %1023 = vmatprep.subr.mxu0 0.0
    %1024 = vmatpush1.msra.mxu0 0.0
    %1025 = vmatprep.subr.mxu0 0.0
    %1026 = vmatpush1.msra.mxu0 0.0
    %1027 = vmatprep.subr.mxu0 0.0
    %1028 = vmatpush1.msra.mxu0 0.0
    %1029 = vmatprep.subr.mxu0 0.0
    %1030 = vmatpush1.msra.mxu0 0.0
    %1031 = vmatprep.subr.mxu0 0.0
    %1032 = vmatpush1.msra.mxu0 0.0
    %1033 = vmatprep.subr.mxu0 0.0
    %1034 = vmatpush1.msra.mxu0 0.0
    %1035 = vmatprep.subr.mxu0 0.0
    %1036 = vmatpush1.msra.mxu0 0.0
    %1037 = vmatprep.mubr.f32.mxu0 0.0
    %1038 = vmatmul.mubr.f32.gmra.mrb[0].mxu0 %v903
    %v1039 = vpop.f32.mrb[0].mxu0
    %v1040 = vadd.f32 0.0, %v1039
    %v1041 = vpop.f32.mrb[0].mxu0
    %v1042 = vadd.f32 0.0, %v1041
    %1043 = vdwg.mxu0
    %1044 = vmatprep.subr.mxu0 %v912
    %1045 = vmatpush1.msra.mxu0 %v911
    %1046 = vmatprep.subr.mxu0 %v916
    %1047 = vmatpush1.msra.mxu0 %v915
    %1048 = vmatprep.subr.mxu0 %v920
    %1049 = vmatpush1.msra.mxu0 %v919
    %1050 = vmatprep.subr.mxu0 %v924
    %1051 = vmatpush1.msra.mxu0 %v923
    %1052 = vmatprep.subr.mxu0 %v928
    %1053 = vmatpush1.msra.mxu0 %v927
    %1054 = vmatprep.subr.mxu0 %v932
    %1055 = vmatpush1.msra.mxu0 %v931
    %1056 = vmatprep.subr.mxu0 %v936
    %1057 = vmatpush1.msra.mxu0 %v935
    %1058 = vmatprep.subr.mxu0 %v940
    %1059 = vmatpush1.msra.mxu0 %v939
    %1060 = vmatprep.subr.mxu0 %v944
    %1061 = vmatpush1.msra.mxu0 %v943
    %1062 = vmatprep.subr.mxu0 %v948
    %1063 = vmatpush1.msra.mxu0 %v947
    %1064 = vmatprep.subr.mxu0 %v952
    %1065 = vmatpush1.msra.mxu0 %v951
    %1066 = vmatprep.subr.mxu0 %v956
    %1067 = vmatpush1.msra.mxu0 %v955
    %1068 = vmatprep.subr.mxu0 %v960
    %1069 = vmatpush1.msra.mxu0 %v959
    %1070 = vmatprep.subr.mxu0 %v964
    %1071 = vmatpush1.msra.mxu0 %v963
    %1072 = vmatprep.subr.mxu0 %v968
    %1073 = vmatpush1.msra.mxu0 %v967
    %1074 = vmatprep.subr.mxu0 %v972
    %1075 = vmatpush1.msra.mxu0 %v971
    %1076 = vmatprep.subr.mxu0 0.0
    %1077 = vmatpush1.msra.mxu0 0.0
    %1078 = vmatprep.subr.mxu0 0.0
    %1079 = vmatpush1.msra.mxu0 0.0
    %1080 = vmatprep.subr.mxu0 0.0
    %1081 = vmatpush1.msra.mxu0 0.0
    %1082 = vmatprep.subr.mxu0 0.0
    %1083 = vmatpush1.msra.mxu0 0.0
    %1084 = vmatprep.subr.mxu0 0.0
    %1085 = vmatpush1.msra.mxu0 0.0
    %1086 = vmatprep.subr.mxu0 0.0
    %1087 = vmatpush1.msra.mxu0 0.0
    %1088 = vmatprep.subr.mxu0 0.0
    %1089 = vmatpush1.msra.mxu0 0.0
    %1090 = vmatprep.subr.mxu0 0.0
    %1091 = vmatpush1.msra.mxu0 0.0
    %1092 = vmatprep.subr.mxu0 0.0
    %1093 = vmatpush1.msra.mxu0 0.0
    %1094 = vmatprep.subr.mxu0 0.0
    %1095 = vmatpush1.msra.mxu0 0.0
    %1096 = vmatprep.subr.mxu0 0.0
    %1097 = vmatpush1.msra.mxu0 0.0
    %1098 = vmatprep.subr.mxu0 0.0
    %1099 = vmatpush1.msra.mxu0 0.0
    %1100 = vmatprep.subr.mxu0 0.0
    %1101 = vmatpush1.msra.mxu0 0.0
    %1102 = vmatprep.subr.mxu0 0.0
    %1103 = vmatpush1.msra.mxu0 0.0
    %1104 = vmatprep.subr.mxu0 0.0
    %1105 = vmatpush1.msra.mxu0 0.0
    %1106 = vmatprep.subr.mxu0 0.0
    %1107 = vmatpush1.msra.mxu0 0.0
    %1108 = vmatprep.mubr.f32.mxu0 0.0
    %1109 = vmatmul.mubr.f32.gmra.mrb[0].mxu0 %v903
    %v1110 = vpop.f32.mrb[0].mxu0
    %v1111 = vadd.f32 0.0, %v1110
    %v1112 = vpop.f32.mrb[0].mxu0
    %v1113 = vadd.f32 0.0, %v1112
    %1114 = vdwg.mxu0
    %v1115 = vadd.f32 %v905, %v1040
    %v1116 = vadd.f32 %v906, %v1042
    %v1117 = vadd.f32 %v907, %v1111
    %v1118 = vadd.f32 %v908, %v1113
    %v1119 = vmul.f32 %v1115, 0.5
    %v1120 = vmul.f32 %v1116, 0.5
    %v1121 = vmul.f32 %v1117, 0.5
    %v1122 = vtanh.pop %v1119
    %v1123 = vtanh.pop %v1120
    %v1124 = vtanh.pop %v1121
    %v1125 = vmul.f32 %v1122, 0.5
    %v1126 = vmul.f32 %v1123, 0.5
    %v1127 = vmul.f32 %v1124, 0.5
    %v1128 = vadd.f32 %v1125, 0.5
    %v1129 = vadd.f32 %v1126, 0.5
    %v1130 = vadd.f32 %v1127, 0.5
    %v1131 = vtanh.pop %v1118
    %v1132 = vmul.f32 %v1129, %v901
    %v1133 = vmul.f32 %v1128, %v1131
    %v1134 = vadd.f32 %v1132, %v1133
    %v1135 = vtanh.pop %v1134
    %v1136 = vmul.f32 %v1130, %v1135
    %1137 = vst [vmem:[#allocation3 + $0x10] sm:$0xff] %v1136
    %v1138 = vld [vmem:[#allocation2 + $0x60] sm:$0xff]
    %v1139 = vld [vmem:[#allocation2 + $0x68] sm:$0xff]
    %v1140 = vld [vmem:[#allocation2 + $0x70] sm:$0xff]
    %v1141 = vld [vmem:[#allocation2 + $0x78] sm:$0xff]
    %v1142 = vld [vmem:[#allocation6] sm:$0xff]
    %v1143 = vld [vmem:[#allocation6 + $0x8] sm:$0xff]
    %v1144 = vld [vmem:[#allocation6 + $0x10] sm:$0xff]
    %v1145 = vld [vmem:[#allocation6 + $0x18] sm:$0xff]
    %v1146 = vld [vmem:[#allocation6 + $0x20] sm:$0xff]
    %v1147 = vld [vmem:[#allocation6 + $0x28] sm:$0xff]
    %v1148 = vld [vmem:[#allocation6 + $0x30] sm:$0xff]
    %v1149 = vld [vmem:[#allocation6 + $0x38] sm:$0xff]
    %v1150 = vld [vmem:[#allocation6 + $0x40] sm:$0xff]
    %v1151 = vld [vmem:[#allocation6 + $0x48] sm:$0xff]
    %v1152 = vld [vmem:[#allocation6 + $0x50] sm:$0xff]
    %v1153 = vld [vmem:[#allocation6 + $0x58] sm:$0xff]
    %v1154 = vld [vmem:[#allocation6 + $0x60] sm:$0xff]
    %v1155 = vld [vmem:[#allocation6 + $0x68] sm:$0xff]
    %v1156 = vld [vmem:[#allocation6 + $0x70] sm:$0xff]
    %v1157 = vld [vmem:[#allocation6 + $0x78] sm:$0xff]
    %v1158 = vld [vmem:[#allocation6 + $0x80] sm:$0xff]
    %v1159 = vld [vmem:[#allocation6 + $0x88] sm:$0xff]
    %v1160 = vld [vmem:[#allocation6 + $0x90] sm:$0xff]
    %v1161 = vld [vmem:[#allocation6 + $0x98] sm:$0xff]
    %v1162 = vld [vmem:[#allocation6 + $0xa0] sm:$0xff]
    %v1163 = vld [vmem:[#allocation6 + $0xa8] sm:$0xff]
    %v1164 = vld [vmem:[#allocation6 + $0xb0] sm:$0xff]
    %v1165 = vld [vmem:[#allocation6 + $0xb8] sm:$0xff]
    %v1166 = vld [vmem:[#allocation6 + $0xc0] sm:$0xff]
    %v1167 = vld [vmem:[#allocation6 + $0xc8] sm:$0xff]
    %v1168 = vld [vmem:[#allocation6 + $0xd0] sm:$0xff]
    %v1169 = vld [vmem:[#allocation6 + $0xd8] sm:$0xff]
    %v1170 = vld [vmem:[#allocation6 + $0xe0] sm:$0xff]
    %v1171 = vld [vmem:[#allocation6 + $0xe8] sm:$0xff]
    %v1172 = vld [vmem:[#allocation6 + $0xf0] sm:$0xff]
    %v1173 = vld [vmem:[#allocation6 + $0xf8] sm:$0xff]
    %v1174 = vld [vmem:[#allocation6 + $0x100] sm:$0xff]
    %v1175 = vld [vmem:[#allocation6 + $0x108] sm:$0xff]
    %v1176 = vld [vmem:[#allocation6 + $0x110] sm:$0xff]
    %v1177 = vld [vmem:[#allocation6 + $0x118] sm:$0xff]
    %v1178 = vld [vmem:[#allocation6 + $0x120] sm:$0xff]
    %v1179 = vld [vmem:[#allocation6 + $0x128] sm:$0xff]
    %v1180 = vld [vmem:[#allocation6 + $0x130] sm:$0xff]
    %v1181 = vld [vmem:[#allocation6 + $0x138] sm:$0xff]
    %v1182 = vld [vmem:[#allocation6 + $0x140] sm:$0xff]
    %v1183 = vld [vmem:[#allocation6 + $0x148] sm:$0xff]
    %v1184 = vld [vmem:[#allocation6 + $0x150] sm:$0xff]
    %v1185 = vld [vmem:[#allocation6 + $0x158] sm:$0xff]
    %v1186 = vld [vmem:[#allocation6 + $0x160] sm:$0xff]
    %v1187 = vld [vmem:[#allocation6 + $0x168] sm:$0xff]
    %v1188 = vld [vmem:[#allocation6 + $0x170] sm:$0xff]
    %v1189 = vld [vmem:[#allocation6 + $0x178] sm:$0xff]
    %v1190 = vld [vmem:[#allocation6 + $0x180] sm:$0xff]
    %v1191 = vld [vmem:[#allocation6 + $0x188] sm:$0xff]
    %v1192 = vld [vmem:[#allocation6 + $0x190] sm:$0xff]
    %v1193 = vld [vmem:[#allocation6 + $0x198] sm:$0xff]
    %v1194 = vld [vmem:[#allocation6 + $0x1a0] sm:$0xff]
    %v1195 = vld [vmem:[#allocation6 + $0x1a8] sm:$0xff]
    %v1196 = vld [vmem:[#allocation6 + $0x1b0] sm:$0xff]
    %v1197 = vld [vmem:[#allocation6 + $0x1b8] sm:$0xff]
    %v1198 = vld [vmem:[#allocation6 + $0x1c0] sm:$0xff]
    %v1199 = vld [vmem:[#allocation6 + $0x1c8] sm:$0xff]
    %v1200 = vld [vmem:[#allocation6 + $0x1d0] sm:$0xff]
    %v1201 = vld [vmem:[#allocation6 + $0x1d8] sm:$0xff]
    %v1202 = vld [vmem:[#allocation6 + $0x1e0] sm:$0xff]
    %v1203 = vld [vmem:[#allocation6 + $0x1e8] sm:$0xff]
    %v1204 = vld [vmem:[#allocation6 + $0x1f0] sm:$0xff]
    %v1205 = vld [vmem:[#allocation6 + $0x1f8] sm:$0xff]
    %1206 = vmatprep.subr.mxu0 %v1143
    %1207 = vmatpush1.msra.mxu0 %v1142
    %1208 = vmatprep.subr.mxu0 %v1147
    %1209 = vmatpush1.msra.mxu0 %v1146
    %1210 = vmatprep.subr.mxu0 %v1151
    %1211 = vmatpush1.msra.mxu0 %v1150
    %1212 = vmatprep.subr.mxu0 %v1155
    %1213 = vmatpush1.msra.mxu0 %v1154
    %1214 = vmatprep.subr.mxu0 %v1159
    %1215 = vmatpush1.msra.mxu0 %v1158
    %1216 = vmatprep.subr.mxu0 %v1163
    %1217 = vmatpush1.msra.mxu0 %v1162
    %1218 = vmatprep.subr.mxu0 %v1167
    %1219 = vmatpush1.msra.mxu0 %v1166
    %1220 = vmatprep.subr.mxu0 %v1171
    %1221 = vmatpush1.msra.mxu0 %v1170
    %1222 = vmatprep.subr.mxu0 %v1175
    %1223 = vmatpush1.msra.mxu0 %v1174
    %1224 = vmatprep.subr.mxu0 %v1179
    %1225 = vmatpush1.msra.mxu0 %v1178
    %1226 = vmatprep.subr.mxu0 %v1183
    %1227 = vmatpush1.msra.mxu0 %v1182
    %1228 = vmatprep.subr.mxu0 %v1187
    %1229 = vmatpush1.msra.mxu0 %v1186
    %1230 = vmatprep.subr.mxu0 %v1191
    %1231 = vmatpush1.msra.mxu0 %v1190
    %1232 = vmatprep.subr.mxu0 %v1195
    %1233 = vmatpush1.msra.mxu0 %v1194
    %1234 = vmatprep.subr.mxu0 %v1199
    %1235 = vmatpush1.msra.mxu0 %v1198
    %1236 = vmatprep.subr.mxu0 %v1203
    %1237 = vmatpush1.msra.mxu0 %v1202
    %1238 = vmatprep.subr.mxu0 0.0
    %1239 = vmatpush1.msra.mxu0 0.0
    %1240 = vmatprep.subr.mxu0 0.0
    %1241 = vmatpush1.msra.mxu0 0.0
    %1242 = vmatprep.subr.mxu0 0.0
    %1243 = vmatpush1.msra.mxu0 0.0
    %1244 = vmatprep.subr.mxu0 0.0
    %1245 = vmatpush1.msra.mxu0 0.0
    %1246 = vmatprep.subr.mxu0 0.0
    %1247 = vmatpush1.msra.mxu0 0.0
    %1248 = vmatprep.subr.mxu0 0.0
    %1249 = vmatpush1.msra.mxu0 0.0
    %1250 = vmatprep.subr.mxu0 0.0
    %1251 = vmatpush1.msra.mxu0 0.0
    %1252 = vmatprep.subr.mxu0 0.0
    %1253 = vmatpush1.msra.mxu0 0.0
    %1254 = vmatprep.subr.mxu0 0.0
    %1255 = vmatpush1.msra.mxu0 0.0
    %1256 = vmatprep.subr.mxu0 0.0
    %1257 = vmatpush1.msra.mxu0 0.0
    %1258 = vmatprep.subr.mxu0 0.0
    %1259 = vmatpush1.msra.mxu0 0.0
    %1260 = vmatprep.subr.mxu0 0.0
    %1261 = vmatpush1.msra.mxu0 0.0
    %1262 = vmatprep.subr.mxu0 0.0
    %1263 = vmatpush1.msra.mxu0 0.0
    %1264 = vmatprep.subr.mxu0 0.0
    %1265 = vmatpush1.msra.mxu0 0.0
    %1266 = vmatprep.subr.mxu0 0.0
    %1267 = vmatpush1.msra.mxu0 0.0
    %1268 = vmatprep.subr.mxu0 0.0
    %1269 = vmatpush1.msra.mxu0 0.0
    %1270 = vmatprep.mubr.f32.mxu0 0.0
    %1271 = vmatmul.mubr.f32.gmra.mrb[0].mxu0 %v1136
    %v1272 = vpop.f32.mrb[0].mxu0
    %v1273 = vadd.f32 0.0, %v1272
    %v1274 = vpop.f32.mrb[0].mxu0
    %v1275 = vadd.f32 0.0, %v1274
    %1276 = vdwg.mxu0
    %1277 = vmatprep.subr.mxu0 %v1145
    %1278 = vmatpush1.msra.mxu0 %v1144
    %1279 = vmatprep.subr.mxu0 %v1149
    %1280 = vmatpush1.msra.mxu0 %v1148
    %1281 = vmatprep.subr.mxu0 %v1153
    %1282 = vmatpush1.msra.mxu0 %v1152
    %1283 = vmatprep.subr.mxu0 %v1157
    %1284 = vmatpush1.msra.mxu0 %v1156
    %1285 = vmatprep.subr.mxu0 %v1161
    %1286 = vmatpush1.msra.mxu0 %v1160
    %1287 = vmatprep.subr.mxu0 %v1165
    %1288 = vmatpush1.msra.mxu0 %v1164
    %1289 = vmatprep.subr.mxu0 %v1169
    %1290 = vmatpush1.msra.mxu0 %v1168
    %1291 = vmatprep.subr.mxu0 %v1173
    %1292 = vmatpush1.msra.mxu0 %v1172
    %1293 = vmatprep.subr.mxu0 %v1177
    %1294 = vmatpush1.msra.mxu0 %v1176
    %1295 = vmatprep.subr.mxu0 %v1181
    %1296 = vmatpush1.msra.mxu0 %v1180
    %1297 = vmatprep.subr.mxu0 %v1185
    %1298 = vmatpush1.msra.mxu0 %v1184
    %1299 = vmatprep.subr.mxu0 %v1189
    %1300 = vmatpush1.msra.mxu0 %v1188
    %1301 = vmatprep.subr.mxu0 %v1193
    %1302 = vmatpush1.msra.mxu0 %v1192
    %1303 = vmatprep.subr.mxu0 %v1197
    %1304 = vmatpush1.msra.mxu0 %v1196
    %1305 = vmatprep.subr.mxu0 %v1201
    %1306 = vmatpush1.msra.mxu0 %v1200
    %1307 = vmatprep.subr.mxu0 %v1205
    %1308 = vmatpush1.msra.mxu0 %v1204
    %1309 = vmatprep.subr.mxu0 0.0
    %1310 = vmatpush1.msra.mxu0 0.0
    %1311 = vmatprep.subr.mxu0 0.0
    %1312 = vmatpush1.msra.mxu0 0.0
    %1313 = vmatprep.subr.mxu0 0.0
    %1314 = vmatpush1.msra.mxu0 0.0
    %1315 = vmatprep.subr.mxu0 0.0
    %1316 = vmatpush1.msra.mxu0 0.0
    %1317 = vmatprep.subr.mxu0 0.0
    %1318 = vmatpush1.msra.mxu0 0.0
    %1319 = vmatprep.subr.mxu0 0.0
    %1320 = vmatpush1.msra.mxu0 0.0
    %1321 = vmatprep.subr.mxu0 0.0
    %1322 = vmatpush1.msra.mxu0 0.0
    %1323 = vmatprep.subr.mxu0 0.0
    %1324 = vmatpush1.msra.mxu0 0.0
    %1325 = vmatprep.subr.mxu0 0.0
    %1326 = vmatpush1.msra.mxu0 0.0
    %1327 = vmatprep.subr.mxu0 0.0
    %1328 = vmatpush1.msra.mxu0 0.0
    %1329 = vmatprep.subr.mxu0 0.0
    %1330 = vmatpush1.msra.mxu0 0.0
    %1331 = vmatprep.subr.mxu0 0.0
    %1332 = vmatpush1.msra.mxu0 0.0
    %1333 = vmatprep.subr.mxu0 0.0
    %1334 = vmatpush1.msra.mxu0 0.0
    %1335 = vmatprep.subr.mxu0 0.0
    %1336 = vmatpush1.msra.mxu0 0.0
    %1337 = vmatprep.subr.mxu0 0.0
    %1338 = vmatpush1.msra.mxu0 0.0
    %1339 = vmatprep.subr.mxu0 0.0
    %1340 = vmatpush1.msra.mxu0 0.0
    %1341 = vmatprep.mubr.f32.mxu0 0.0
    %1342 = vmatmul.mubr.f32.gmra.mrb[0].mxu0 %v1136
    %v1343 = vpop.f32.mrb[0].mxu0
    %v1344 = vadd.f32 0.0, %v1343
    %v1345 = vpop.f32.mrb[0].mxu0
    %v1346 = vadd.f32 0.0, %v1345
    %1347 = vdwg.mxu0
    %v1348 = vadd.f32 %v1138, %v1273
    %v1349 = vadd.f32 %v1139, %v1275
    %v1350 = vadd.f32 %v1140, %v1344
    %v1351 = vadd.f32 %v1141, %v1346
    %v1352 = vmul.f32 %v1348, 0.5
    %v1353 = vmul.f32 %v1349, 0.5
    %v1354 = vmul.f32 %v1350, 0.5
    %v1355 = vtanh.pop %v1352
    %v1356 = vtanh.pop %v1353
    %v1357 = vtanh.pop %v1354
    %v1358 = vmul.f32 %v1355, 0.5
    %v1359 = vmul.f32 %v1356, 0.5
    %v1360 = vmul.f32 %v1357, 0.5
    %v1361 = vadd.f32 %v1358, 0.5
    %v1362 = vadd.f32 %v1359, 0.5
    %v1363 = vadd.f32 %v1360, 0.5
    %v1364 = vtanh.pop %v1351
    %v1365 = vmul.f32 %v1362, %v1134
    %v1366 = vmul.f32 %v1361, %v1364
    %v1367 = vadd.f32 %v1365, %v1366
    %v1368 = vtanh.pop %v1367
    %v1369 = vmul.f32 %v1363, %v1368
    %1370 = vst [vmem:[#allocation3 + $0x18] sm:$0xff] %v1369
    %v1371 = vld [vmem:[#allocation2 + $0x80] sm:$0xff]
    %v1372 = vld [vmem:[#allocation2 + $0x88] sm:$0xff]
    %v1373 = vld [vmem:[#allocation2 + $0x90] sm:$0xff]
    %v1374 = vld [vmem:[#allocation2 + $0x98] sm:$0xff]
    %v1375 = vld [vmem:[#allocation6] sm:$0xff]
    %v1376 = vld [vmem:[#allocation6 + $0x8] sm:$0xff]
    %v1377 = vld [vmem:[#allocation6 + $0x10] sm:$0xff]
    %v1378 = vld [vmem:[#allocation6 + $0x18] sm:$0xff]
    %v1379 = vld [vmem:[#allocation6 + $0x20] sm:$0xff]
    %v1380 = vld [vmem:[#allocation6 + $0x28] sm:$0xff]
    %v1381 = vld [vmem:[#allocation6 + $0x30] sm:$0xff]
    %v1382 = vld [vmem:[#allocation6 + $0x38] sm:$0xff]
    %v1383 = vld [vmem:[#allocation6 + $0x40] sm:$0xff]
    %v1384 = vld [vmem:[#allocation6 + $0x48] sm:$0xff]
    %v1385 = vld [vmem:[#allocation6 + $0x50] sm:$0xff]
    %v1386 = vld [vmem:[#allocation6 + $0x58] sm:$0xff]
    %v1387 = vld [vmem:[#allocation6 + $0x60] sm:$0xff]
    %v1388 = vld [vmem:[#allocation6 + $0x68] sm:$0xff]
    %v1389 = vld [vmem:[#allocation6 + $0x70] sm:$0xff]
    %v1390 = vld [vmem:[#allocation6 + $0x78] sm:$0xff]
    %v1391 = vld [vmem:[#allocation6 + $0x80] sm:$0xff]
    %v1392 = vld [vmem:[#allocation6 + $0x88] sm:$0xff]
    %v1393 = vld [vmem:[#allocation6 + $0x90] sm:$0xff]
    %v1394 = vld [vmem:[#allocation6 + $0x98] sm:$0xff]
    %v1395 = vld [vmem:[#allocation6 + $0xa0] sm:$0xff]
    %v1396 = vld [vmem:[#allocation6 + $0xa8] sm:$0xff]
    %v1397 = vld [vmem:[#allocation6 + $0xb0] sm:$0xff]
    %v1398 = vld [vmem:[#allocation6 + $0xb8] sm:$0xff]
    %v1399 = vld [vmem:[#allocation6 + $0xc0] sm:$0xff]
    %v1400 = vld [vmem:[#allocation6 + $0xc8] sm:$0xff]
    %v1401 = vld [vmem:[#allocation6 + $0xd0] sm:$0xff]
    %v1402 = vld [vmem:[#allocation6 + $0xd8] sm:$0xff]
    %v1403 = vld [vmem:[#allocation6 + $0xe0] sm:$0xff]
    %v1404 = vld [vmem:[#allocation6 + $0xe8] sm:$0xff]
    %v1405 = vld [vmem:[#allocation6 + $0xf0] sm:$0xff]
    %v1406 = vld [vmem:[#allocation6 + $0xf8] sm:$0xff]
    %v1407 = vld [vmem:[#allocation6 + $0x100] sm:$0xff]
    %v1408 = vld [vmem:[#allocation6 + $0x108] sm:$0xff]
    %v1409 = vld [vmem:[#allocation6 + $0x110] sm:$0xff]
    %v1410 = vld [vmem:[#allocation6 + $0x118] sm:$0xff]
    %v1411 = vld [vmem:[#allocation6 + $0x120] sm:$0xff]
    %v1412 = vld [vmem:[#allocation6 + $0x128] sm:$0xff]
    %v1413 = vld [vmem:[#allocation6 + $0x130] sm:$0xff]
    %v1414 = vld [vmem:[#allocation6 + $0x138] sm:$0xff]
    %v1415 = vld [vmem:[#allocation6 + $0x140] sm:$0xff]
    %v1416 = vld [vmem:[#allocation6 + $0x148] sm:$0xff]
    %v1417 = vld [vmem:[#allocation6 + $0x150] sm:$0xff]
    %v1418 = vld [vmem:[#allocation6 + $0x158] sm:$0xff]
    %v1419 = vld [vmem:[#allocation6 + $0x160] sm:$0xff]
    %v1420 = vld [vmem:[#allocation6 + $0x168] sm:$0xff]
    %v1421 = vld [vmem:[#allocation6 + $0x170] sm:$0xff]
    %v1422 = vld [vmem:[#allocation6 + $0x178] sm:$0xff]
    %v1423 = vld [vmem:[#allocation6 + $0x180] sm:$0xff]
    %v1424 = vld [vmem:[#allocation6 + $0x188] sm:$0xff]
    %v1425 = vld [vmem:[#allocation6 + $0x190] sm:$0xff]
    %v1426 = vld [vmem:[#allocation6 + $0x198] sm:$0xff]
    %v1427 = vld [vmem:[#allocation6 + $0x1a0] sm:$0xff]
    %v1428 = vld [vmem:[#allocation6 + $0x1a8] sm:$0xff]
    %v1429 = vld [vmem:[#allocation6 + $0x1b0] sm:$0xff]
    %v1430 = vld [vmem:[#allocation6 + $0x1b8] sm:$0xff]
    %v1431 = vld [vmem:[#allocation6 + $0x1c0] sm:$0xff]
    %v1432 = vld [vmem:[#allocation6 + $0x1c8] sm:$0xff]
    %v1433 = vld [vmem:[#allocation6 + $0x1d0] sm:$0xff]
    %v1434 = vld [vmem:[#allocation6 + $0x1d8] sm:$0xff]
    %v1435 = vld [vmem:[#allocation6 + $0x1e0] sm:$0xff]
    %v1436 = vld [vmem:[#allocation6 + $0x1e8] sm:$0xff]
    %v1437 = vld [vmem:[#allocation6 + $0x1f0] sm:$0xff]
    %v1438 = vld [vmem:[#allocation6 + $0x1f8] sm:$0xff]
    %1439 = vmatprep.subr.mxu0 %v1376
    %1440 = vmatpush1.msra.mxu0 %v1375
    %1441 = vmatprep.subr.mxu0 %v1380
    %1442 = vmatpush1.msra.mxu0 %v1379
    %1443 = vmatprep.subr.mxu0 %v1384
    %1444 = vmatpush1.msra.mxu0 %v1383
    %1445 = vmatprep.subr.mxu0 %v1388
    %1446 = vmatpush1.msra.mxu0 %v1387
    %1447 = vmatprep.subr.mxu0 %v1392
    %1448 = vmatpush1.msra.mxu0 %v1391
    %1449 = vmatprep.subr.mxu0 %v1396
    %1450 = vmatpush1.msra.mxu0 %v1395
    %1451 = vmatprep.subr.mxu0 %v1400
    %1452 = vmatpush1.msra.mxu0 %v1399
    %1453 = vmatprep.subr.mxu0 %v1404
    %1454 = vmatpush1.msra.mxu0 %v1403
    %1455 = vmatprep.subr.mxu0 %v1408
    %1456 = vmatpush1.msra.mxu0 %v1407
    %1457 = vmatprep.subr.mxu0 %v1412
    %1458 = vmatpush1.msra.mxu0 %v1411
    %1459 = vmatprep.subr.mxu0 %v1416
    %1460 = vmatpush1.msra.mxu0 %v1415
    %1461 = vmatprep.subr.mxu0 %v1420
    %1462 = vmatpush1.msra.mxu0 %v1419
    %1463 = vmatprep.subr.mxu0 %v1424
    %1464 = vmatpush1.msra.mxu0 %v1423
    %1465 = vmatprep.subr.mxu0 %v1428
    %1466 = vmatpush1.msra.mxu0 %v1427
    %1467 = vmatprep.subr.mxu0 %v1432
    %1468 = vmatpush1.msra.mxu0 %v1431
    %1469 = vmatprep.subr.mxu0 %v1436
    %1470 = vmatpush1.msra.mxu0 %v1435
    %1471 = vmatprep.subr.mxu0 0.0
    %1472 = vmatpush1.msra.mxu0 0.0
    %1473 = vmatprep.subr.mxu0 0.0
    %1474 = vmatpush1.msra.mxu0 0.0
    %1475 = vmatprep.subr.mxu0 0.0
    %1476 = vmatpush1.msra.mxu0 0.0
    %1477 = vmatprep.subr.mxu0 0.0
    %1478 = vmatpush1.msra.mxu0 0.0
    %1479 = vmatprep.subr.mxu0 0.0
    %1480 = vmatpush1.msra.mxu0 0.0
    %1481 = vmatprep.subr.mxu0 0.0
    %1482 = vmatpush1.msra.mxu0 0.0
    %1483 = vmatprep.subr.mxu0 0.0
    %1484 = vmatpush1.msra.mxu0 0.0
    %1485 = vmatprep.subr.mxu0 0.0
    %1486 = vmatpush1.msra.mxu0 0.0
    %1487 = vmatprep.subr.mxu0 0.0
    %1488 = vmatpush1.msra.mxu0 0.0
    %1489 = vmatprep.subr.mxu0 0.0
    %1490 = vmatpush1.msra.mxu0 0.0
    %1491 = vmatprep.subr.mxu0 0.0
    %1492 = vmatpush1.msra.mxu0 0.0
    %1493 = vmatprep.subr.mxu0 0.0
    %1494 = vmatpush1.msra.mxu0 0.0
    %1495 = vmatprep.subr.mxu0 0.0
    %1496 = vmatpush1.msra.mxu0 0.0
    %1497 = vmatprep.subr.mxu0 0.0
    %1498 = vmatpush1.msra.mxu0 0.0
    %1499 = vmatprep.subr.mxu0 0.0
    %1500 = vmatpush1.msra.mxu0 0.0
    %1501 = vmatprep.subr.mxu0 0.0
    %1502 = vmatpush1.msra.mxu0 0.0
    %1503 = vmatprep.mubr.f32.mxu0 0.0
    %1504 = vmatmul.mubr.f32.gmra.mrb[0].mxu0 %v1369
    %v1505 = vpop.f32.mrb[0].mxu0
    %v1506 = vadd.f32 0.0, %v1505
    %v1507 = vpop.f32.mrb[0].mxu0
    %v1508 = vadd.f32 0.0, %v1507
    %1509 = vdwg.mxu0
    %1510 = vmatprep.subr.mxu0 %v1378
    %1511 = vmatpush1.msra.mxu0 %v1377
    %1512 = vmatprep.subr.mxu0 %v1382
    %1513 = vmatpush1.msra.mxu0 %v1381
    %1514 = vmatprep.subr.mxu0 %v1386
    %1515 = vmatpush1.msra.mxu0 %v1385
    %1516 = vmatprep.subr.mxu0 %v1390
    %1517 = vmatpush1.msra.mxu0 %v1389
    %1518 = vmatprep.subr.mxu0 %v1394
    %1519 = vmatpush1.msra.mxu0 %v1393
    %1520 = vmatprep.subr.mxu0 %v1398
    %1521 = vmatpush1.msra.mxu0 %v1397
    %1522 = vmatprep.subr.mxu0 %v1402
    %1523 = vmatpush1.msra.mxu0 %v1401
    %1524 = vmatprep.subr.mxu0 %v1406
    %1525 = vmatpush1.msra.mxu0 %v1405
    %1526 = vmatprep.subr.mxu0 %v1410
    %1527 = vmatpush1.msra.mxu0 %v1409
    %1528 = vmatprep.subr.mxu0 %v1414
    %1529 = vmatpush1.msra.mxu0 %v1413
    %1530 = vmatprep.subr.mxu0 %v1418
    %1531 = vmatpush1.msra.mxu0 %v1417
    %1532 = vmatprep.subr.mxu0 %v1422
    %1533 = vmatpush1.msra.mxu0 %v1421
    %1534 = vmatprep.subr.mxu0 %v1426
    %1535 = vmatpush1.msra.mxu0 %v1425
    %1536 = vmatprep.subr.mxu0 %v1430
    %1537 = vmatpush1.msra.mxu0 %v1429
    %1538 = vmatprep.subr.mxu0 %v1434
    %1539 = vmatpush1.msra.mxu0 %v1433
    %1540 = vmatprep.subr.mxu0 %v1438
    %1541 = vmatpush1.msra.mxu0 %v1437
    %1542 = vmatprep.subr.mxu0 0.0
    %1543 = vmatpush1.msra.mxu0 0.0
    %1544 = vmatprep.subr.mxu0 0.0
    %1545 = vmatpush1.msra.mxu0 0.0
    %1546 = vmatprep.subr.mxu0 0.0
    %1547 = vmatpush1.msra.mxu0 0.0
    %1548 = vmatprep.subr.mxu0 0.0
    %1549 = vmatpush1.msra.mxu0 0.0
    %1550 = vmatprep.subr.mxu0 0.0
    %1551 = vmatpush1.msra.mxu0 0.0
    %1552 = vmatprep.subr.mxu0 0.0
    %1553 = vmatpush1.msra.mxu0 0.0
    %1554 = vmatprep.subr.mxu0 0.0
    %1555 = vmatpush1.msra.mxu0 0.0
    %1556 = vmatprep.subr.mxu0 0.0
    %1557 = vmatpush1.msra.mxu0 0.0
    %1558 = vmatprep.subr.mxu0 0.0
    %1559 = vmatpush1.msra.mxu0 0.0
    %1560 = vmatprep.subr.mxu0 0.0
    %1561 = vmatpush1.msra.mxu0 0.0
    %1562 = vmatprep.subr.mxu0 0.0
    %1563 = vmatpush1.msra.mxu0 0.0
    %1564 = vmatprep.subr.mxu0 0.0
    %1565 = vmatpush1.msra.mxu0 0.0
    %1566 = vmatprep.subr.mxu0 0.0
    %1567 = vmatpush1.msra.mxu0 0.0
    %1568 = vmatprep.subr.mxu0 0.0
    %1569 = vmatpush1.msra.mxu0 0.0
    %1570 = vmatprep.subr.mxu0 0.0
    %1571 = vmatpush1.msra.mxu0 0.0
    %1572 = vmatprep.subr.mxu0 0.0
    %1573 = vmatpush1.msra.mxu0 0.0
    %1574 = vmatprep.mubr.f32.mxu0 0.0
    %1575 = vmatmul.mubr.f32.gmra.mrb[0].mxu0 %v1369
    %v1576 = vpop.f32.mrb[0].mxu0
    %v1577 = vadd.f32 0.0, %v1576
    %v1578 = vpop.f32.mrb[0].mxu0
    %v1579 = vadd.f32 0.0, %v1578
    %1580 = vdwg.mxu0
    %v1581 = vadd.f32 %v1371, %v1506
    %v1582 = vadd.f32 %v1372, %v1508
    %v1583 = vadd.f32 %v1373, %v1577
    %v1584 = vadd.f32 %v1374, %v1579
    %v1585 = vmul.f32 %v1581, 0.5
    %v1586 = vmul.f32 %v1582, 0.5
    %v1587 = vmul.f32 %v1583, 0.5
    %v1588 = vtanh.pop %v1585
    %v1589 = vtanh.pop %v1586
    %v1590 = vtanh.pop %v1587
    %v1591 = vmul.f32 %v1588, 0.5
    %v1592 = vmul.f32 %v1589, 0.5
    %v1593 = vmul.f32 %v1590, 0.5
    %v1594 = vadd.f32 %v1591, 0.5
    %v1595 = vadd.f32 %v1592, 0.5
    %v1596 = vadd.f32 %v1593, 0.5
    %v1597 = vtanh.pop %v1584
    %v1598 = vmul.f32 %v1595, %v1367
    %v1599 = vmul.f32 %v1594, %v1597
    %v1600 = vadd.f32 %v1598, %v1599
    %v1601 = vtanh.pop %v1600
    %v1602 = vmul.f32 %v1596, %v1601
    %1603 = vst [vmem:[#allocation3 + $0x20] sm:$0xff] %v1602
    %v1604 = vld [vmem:[#allocation2 + $0xa0] sm:$0xff]
    %v1605 = vld [vmem:[#allocation2 + $0xa8] sm:$0xff]
    %v1606 = vld [vmem:[#allocation2 + $0xb0] sm:$0xff]
    %v1607 = vld [vmem:[#allocation2 + $0xb8] sm:$0xff]
    %v1608 = vld [vmem:[#allocation6] sm:$0xff]
    %v1609 = vld [vmem:[#allocation6 + $0x8] sm:$0xff]
    %v1610 = vld [vmem:[#allocation6 + $0x10] sm:$0xff]
    %v1611 = vld [vmem:[#allocation6 + $0x18] sm:$0xff]
    %v1612 = vld [vmem:[#allocation6 + $0x20] sm:$0xff]
    %v1613 = vld [vmem:[#allocation6 + $0x28] sm:$0xff]
    %v1614 = vld [vmem:[#allocation6 + $0x30] sm:$0xff]
    %v1615 = vld [vmem:[#allocation6 + $0x38] sm:$0xff]
    %v1616 = vld [vmem:[#allocation6 + $0x40] sm:$0xff]
    %v1617 = vld [vmem:[#allocation6 + $0x48] sm:$0xff]
    %v1618 = vld [vmem:[#allocation6 + $0x50] sm:$0xff]
    %v1619 = vld [vmem:[#allocation6 + $0x58] sm:$0xff]
    %v1620 = vld [vmem:[#allocation6 + $0x60] sm:$0xff]
    %v1621 = vld [vmem:[#allocation6 + $0x68] sm:$0xff]
    %v1622 = vld [vmem:[#allocation6 + $0x70] sm:$0xff]
    %v1623 = vld [vmem:[#allocation6 + $0x78] sm:$0xff]
    %v1624 = vld [vmem:[#allocation6 + $0x80] sm:$0xff]
    %v1625 = vld [vmem:[#allocation6 + $0x88] sm:$0xff]
    %v1626 = vld [vmem:[#allocation6 + $0x90] sm:$0xff]
    %v1627 = vld [vmem:[#allocation6 + $0x98] sm:$0xff]
    %v1628 = vld [vmem:[#allocation6 + $0xa0] sm:$0xff]
    %v1629 = vld [vmem:[#allocation6 + $0xa8] sm:$0xff]
    %v1630 = vld [vmem:[#allocation6 + $0xb0] sm:$0xff]
    %v1631 = vld [vmem:[#allocation6 + $0xb8] sm:$0xff]
    %v1632 = vld [vmem:[#allocation6 + $0xc0] sm:$0xff]
    %v1633 = vld [vmem:[#allocation6 + $0xc8] sm:$0xff]
    %v1634 = vld [vmem:[#allocation6 + $0xd0] sm:$0xff]
    %v1635 = vld [vmem:[#allocation6 + $0xd8] sm:$0xff]
    %v1636 = vld [vmem:[#allocation6 + $0xe0] sm:$0xff]
    %v1637 = vld [vmem:[#allocation6 + $0xe8] sm:$0xff]
    %v1638 = vld [vmem:[#allocation6 + $0xf0] sm:$0xff]
    %v1639 = vld [vmem:[#allocation6 + $0xf8] sm:$0xff]
    %v1640 = vld [vmem:[#allocation6 + $0x100] sm:$0xff]
    %v1641 = vld [vmem:[#allocation6 + $0x108] sm:$0xff]
    %v1642 = vld [vmem:[#allocation6 + $0x110] sm:$0xff]
    %v1643 = vld [vmem:[#allocation6 + $0x118] sm:$0xff]
    %v1644 = vld [vmem:[#allocation6 + $0x120] sm:$0xff]
    %v1645 = vld [vmem:[#allocation6 + $0x128] sm:$0xff]
    %v1646 = vld [vmem:[#allocation6 + $0x130] sm:$0xff]
    %v1647 = vld [vmem:[#allocation6 + $0x138] sm:$0xff]
    %v1648 = vld [vmem:[#allocation6 + $0x140] sm:$0xff]
    %v1649 = vld [vmem:[#allocation6 + $0x148] sm:$0xff]
    %v1650 = vld [vmem:[#allocation6 + $0x150] sm:$0xff]
    %v1651 = vld [vmem:[#allocation6 + $0x158] sm:$0xff]
    %v1652 = vld [vmem:[#allocation6 + $0x160] sm:$0xff]
    %v1653 = vld [vmem:[#allocation6 + $0x168] sm:$0xff]
    %v1654 = vld [vmem:[#allocation6 + $0x170] sm:$0xff]
    %v1655 = vld [vmem:[#allocation6 + $0x178] sm:$0xff]
    %v1656 = vld [vmem:[#allocation6 + $0x180] sm:$0xff]
    %v1657 = vld [vmem:[#allocation6 + $0x188] sm:$0xff]
    %v1658 = vld [vmem:[#allocation6 + $0x190] sm:$0xff]
    %v1659 = vld [vmem:[#allocation6 + $0x198] sm:$0xff]
    %v1660 = vld [vmem:[#allocation6 + $0x1a0] sm:$0xff]
    %v1661 = vld [vmem:[#allocation6 + $0x1a8] sm:$0xff]
    %v1662 = vld [vmem:[#allocation6 + $0x1b0] sm:$0xff]
    %v1663 = vld [vmem:[#allocation6 + $0x1b8] sm:$0xff]
    %v1664 = vld [vmem:[#allocation6 + $0x1c0] sm:$0xff]
    %v1665 = vld [vmem:[#allocation6 + $0x1c8] sm:$0xff]
    %v1666 = vld [vmem:[#allocation6 + $0x1d0] sm:$0xff]
    %v1667 = vld [vmem:[#allocation6 + $0x1d8] sm:$0xff]
    %v1668 = vld [vmem:[#allocation6 + $0x1e0] sm:$0xff]
    %v1669 = vld [vmem:[#allocation6 + $0x1e8] sm:$0xff]
    %v1670 = vld [vmem:[#allocation6 + $0x1f0] sm:$0xff]
    %v1671 = vld [vmem:[#allocation6 + $0x1f8] sm:$0xff]
    %1672 = vmatprep.subr.mxu0 %v1609
    %1673 = vmatpush1.msra.mxu0 %v1608
    %1674 = vmatprep.subr.mxu0 %v1613
    %1675 = vmatpush1.msra.mxu0 %v1612
    %1676 = vmatprep.subr.mxu0 %v1617
    %1677 = vmatpush1.msra.mxu0 %v1616
    %1678 = vmatprep.subr.mxu0 %v1621
    %1679 = vmatpush1.msra.mxu0 %v1620
    %1680 = vmatprep.subr.mxu0 %v1625
    %1681 = vmatpush1.msra.mxu0 %v1624
    %1682 = vmatprep.subr.mxu0 %v1629
    %1683 = vmatpush1.msra.mxu0 %v1628
    %1684 = vmatprep.subr.mxu0 %v1633
    %1685 = vmatpush1.msra.mxu0 %v1632
    %1686 = vmatprep.subr.mxu0 %v1637
    %1687 = vmatpush1.msra.mxu0 %v1636
    %1688 = vmatprep.subr.mxu0 %v1641
    %1689 = vmatpush1.msra.mxu0 %v1640
    %1690 = vmatprep.subr.mxu0 %v1645
    %1691 = vmatpush1.msra.mxu0 %v1644
    %1692 = vmatprep.subr.mxu0 %v1649
    %1693 = vmatpush1.msra.mxu0 %v1648
    %1694 = vmatprep.subr.mxu0 %v1653
    %1695 = vmatpush1.msra.mxu0 %v1652
    %1696 = vmatprep.subr.mxu0 %v1657
    %1697 = vmatpush1.msra.mxu0 %v1656
    %1698 = vmatprep.subr.mxu0 %v1661
    %1699 = vmatpush1.msra.mxu0 %v1660
    %1700 = vmatprep.subr.mxu0 %v1665
    %1701 = vmatpush1.msra.mxu0 %v1664
    %1702 = vmatprep.subr.mxu0 %v1669
    %1703 = vmatpush1.msra.mxu0 %v1668
    %1704 = vmatprep.subr.mxu0 0.0
    %1705 = vmatpush1.msra.mxu0 0.0
    %1706 = vmatprep.subr.mxu0 0.0
    %1707 = vmatpush1.msra.mxu0 0.0
    %1708 = vmatprep.subr.mxu0 0.0
    %1709 = vmatpush1.msra.mxu0 0.0
    %1710 = vmatprep.subr.mxu0 0.0
    %1711 = vmatpush1.msra.mxu0 0.0
    %1712 = vmatprep.subr.mxu0 0.0
    %1713 = vmatpush1.msra.mxu0 0.0
    %1714 = vmatprep.subr.mxu0 0.0
    %1715 = vmatpush1.msra.mxu0 0.0
    %1716 = vmatprep.subr.mxu0 0.0
    %1717 = vmatpush1.msra.mxu0 0.0
    %1718 = vmatprep.subr.mxu0 0.0
    %1719 = vmatpush1.msra.mxu0 0.0
    %1720 = vmatprep.subr.mxu0 0.0
    %1721 = vmatpush1.msra.mxu0 0.0
    %1722 = vmatprep.subr.mxu0 0.0
    %1723 = vmatpush1.msra.mxu0 0.0
    %1724 = vmatprep.subr.mxu0 0.0
    %1725 = vmatpush1.msra.mxu0 0.0
    %1726 = vmatprep.subr.mxu0 0.0
    %1727 = vmatpush1.msra.mxu0 0.0
    %1728 = vmatprep.subr.mxu0 0.0
    %1729 = vmatpush1.msra.mxu0 0.0
    %1730 = vmatprep.subr.mxu0 0.0
    %1731 = vmatpush1.msra.mxu0 0.0
    %1732 = vmatprep.subr.mxu0 0.0
    %1733 = vmatpush1.msra.mxu0 0.0
    %1734 = vmatprep.subr.mxu0 0.0
    %1735 = vmatpush1.msra.mxu0 0.0
    %1736 = vmatprep.mubr.f32.mxu0 0.0
    %1737 = vmatmul.mubr.f32.gmra.mrb[0].mxu0 %v1602
    %v1738 = vpop.f32.mrb[0].mxu0
    %v1739 = vadd.f32 0.0, %v1738
    %v1740 = vpop.f32.mrb[0].mxu0
    %v1741 = vadd.f32 0.0, %v1740
    %1742 = vdwg.mxu0
    %1743 = vmatprep.subr.mxu0 %v1611
    %1744 = vmatpush1.msra.mxu0 %v1610
    %1745 = vmatprep.subr.mxu0 %v1615
    %1746 = vmatpush1.msra.mxu0 %v1614
    %1747 = vmatprep.subr.mxu0 %v1619
    %1748 = vmatpush1.msra.mxu0 %v1618
    %1749 = vmatprep.subr.mxu0 %v1623
    %1750 = vmatpush1.msra.mxu0 %v1622
    %1751 = vmatprep.subr.mxu0 %v1627
    %1752 = vmatpush1.msra.mxu0 %v1626
    %1753 = vmatprep.subr.mxu0 %v1631
    %1754 = vmatpush1.msra.mxu0 %v1630
    %1755 = vmatprep.subr.mxu0 %v1635
    %1756 = vmatpush1.msra.mxu0 %v1634
    %1757 = vmatprep.subr.mxu0 %v1639
    %1758 = vmatpush1.msra.mxu0 %v1638
    %1759 = vmatprep.subr.mxu0 %v1643
    %1760 = vmatpush1.msra.mxu0 %v1642
    %1761 = vmatprep.subr.mxu0 %v1647
    %1762 = vmatpush1.msra.mxu0 %v1646
    %1763 = vmatprep.subr.mxu0 %v1651
    %1764 = vmatpush1.msra.mxu0 %v1650
    %1765 = vmatprep.subr.mxu0 %v1655
    %1766 = vmatpush1.msra.mxu0 %v1654
    %1767 = vmatprep.subr.mxu0 %v1659
    %1768 = vmatpush1.msra.mxu0 %v1658
    %1769 = vmatprep.subr.mxu0 %v1663
    %1770 = vmatpush1.msra.mxu0 %v1662
    %1771 = vmatprep.subr.mxu0 %v1667
    %1772 = vmatpush1.msra.mxu0 %v1666
    %1773 = vmatprep.subr.mxu0 %v1671
    %1774 = vmatpush1.msra.mxu0 %v1670
    %1775 = vmatprep.subr.mxu0 0.0
    %1776 = vmatpush1.msra.mxu0 0.0
    %1777 = vmatprep.subr.mxu0 0.0
    %1778 = vmatpush1.msra.mxu0 0.0
    %1779 = vmatprep.subr.mxu0 0.0
    %1780 = vmatpush1.msra.mxu0 0.0
    %1781 = vmatprep.subr.mxu0 0.0
    %1782 = vmatpush1.msra.mxu0 0.0
    %1783 = vmatprep.subr.mxu0 0.0
    %1784 = vmatpush1.msra.mxu0 0.0
    %1785 = vmatprep.subr.mxu0 0.0
    %1786 = vmatpush1.msra.mxu0 0.0
    %1787 = vmatprep.subr.mxu0 0.0
    %1788 = vmatpush1.msra.mxu0 0.0
    %1789 = vmatprep.subr.mxu0 0.0
    %1790 = vmatpush1.msra.mxu0 0.0
    %1791 = vmatprep.subr.mxu0 0.0
    %1792 = vmatpush1.msra.mxu0 0.0
    %1793 = vmatprep.subr.mxu0 0.0
    %1794 = vmatpush1.msra.mxu0 0.0
    %1795 = vmatprep.subr.mxu0 0.0
    %1796 = vmatpush1.msra.mxu0 0.0
    %1797 = vmatprep.subr.mxu0 0.0
    %1798 = vmatpush1.msra.mxu0 0.0
    %1799 = vmatprep.subr.mxu0 0.0
    %1800 = vmatpush1.msra.mxu0 0.0
    %1801 = vmatprep.subr.mxu0 0.0
    %1802 = vmatpush1.msra.mxu0 0.0
    %1803 = vmatprep.subr.mxu0 0.0
    %1804 = vmatpush1.msra.mxu0 0.0
    %1805 = vmatprep.subr.mxu0 0.0
    %1806 = vmatpush1.msra.mxu0 0.0
    %1807 = vmatprep.mubr.f32.mxu0 0.0
    %1808 = vmatmul.mubr.f32.gmra.mrb[0].mxu0 %v1602
    %v1809 = vpop.f32.mrb[0].mxu0
    %v1810 = vadd.f32 0.0, %v1809
    %v1811 = vpop.f32.mrb[0].mxu0
    %v1812 = vadd.f32 0.0, %v1811
    %1813 = vdwg.mxu0
    %v1814 = vadd.f32 %v1604, %v1739
    %v1815 = vadd.f32 %v1605, %v1741
    %v1816 = vadd.f32 %v1606, %v1810
    %v1817 = vadd.f32 %v1607, %v1812
    %v1818 = vmul.f32 %v1814, 0.5
    %v1819 = vmul.f32 %v1815, 0.5
    %v1820 = vmul.f32 %v1816, 0.5
    %v1821 = vtanh.pop %v1818
    %v1822 = vtanh.pop %v1819
    %v1823 = vtanh.pop %v1820
    %v1824 = vmul.f32 %v1821, 0.5
    %v1825 = vmul.f32 %v1822, 0.5
    %v1826 = vmul.f32 %v1823, 0.5
    %v1827 = vadd.f32 %v1824, 0.5
    %v1828 = vadd.f32 %v1825, 0.5
    %v1829 = vadd.f32 %v1826, 0.5
    %v1830 = vtanh.pop %v1817
    %v1831 = vmul.f32 %v1828, %v1600
    %v1832 = vmul.f32 %v1827, %v1830
    %v1833 = vadd.f32 %v1831, %v1832
    %v1834 = vtanh.pop %v1833
    %v1835 = vmul.f32 %v1829, %v1834
    %1836 = vst [vmem:[#allocation3 + $0x28] sm:$0xff] %v1835
    %v1837 = vld [vmem:[#allocation2 + $0xc0] sm:$0xff]
    %v1838 = vld [vmem:[#allocation2 + $0xc8] sm:$0xff]
    %v1839 = vld [vmem:[#allocation2 + $0xd0] sm:$0xff]
    %v1840 = vld [vmem:[#allocation2 + $0xd8] sm:$0xff]
    %v1841 = vld [vmem:[#allocation6] sm:$0xff]
    %v1842 = vld [vmem:[#allocation6 + $0x8] sm:$0xff]
    %v1843 = vld [vmem:[#allocation6 + $0x10] sm:$0xff]
    %v1844 = vld [vmem:[#allocation6 + $0x18] sm:$0xff]
    %v1845 = vld [vmem:[#allocation6 + $0x20] sm:$0xff]
    %v1846 = vld [vmem:[#allocation6 + $0x28] sm:$0xff]
    %v1847 = vld [vmem:[#allocation6 + $0x30] sm:$0xff]
    %v1848 = vld [vmem:[#allocation6 + $0x38] sm:$0xff]
    %v1849 = vld [vmem:[#allocation6 + $0x40] sm:$0xff]
    %v1850 = vld [vmem:[#allocation6 + $0x48] sm:$0xff]
    %v1851 = vld [vmem:[#allocation6 + $0x50] sm:$0xff]
    %v1852 = vld [vmem:[#allocation6 + $0x58] sm:$0xff]
    %v1853 = vld [vmem:[#allocation6 + $0x60] sm:$0xff]
    %v1854 = vld [vmem:[#allocation6 + $0x68] sm:$0xff]
    %v1855 = vld [vmem:[#allocation6 + $0x70] sm:$0xff]
    %v1856 = vld [vmem:[#allocation6 + $0x78] sm:$0xff]
    %v1857 = vld [vmem:[#allocation6 + $0x80] sm:$0xff]
    %v1858 = vld [vmem:[#allocation6 + $0x88] sm:$0xff]
    %v1859 = vld [vmem:[#allocation6 + $0x90] sm:$0xff]
    %v1860 = vld [vmem:[#allocation6 + $0x98] sm:$0xff]
    %v1861 = vld [vmem:[#allocation6 + $0xa0] sm:$0xff]
    %v1862 = vld [vmem:[#allocation6 + $0xa8] sm:$0xff]
    %v1863 = vld [vmem:[#allocation6 + $0xb0] sm:$0xff]
    %v1864 = vld [vmem:[#allocation6 + $0xb8] sm:$0xff]
    %v1865 = vld [vmem:[#allocation6 + $0xc0] sm:$0xff]
    %v1866 = vld [vmem:[#allocation6 + $0xc8] sm:$0xff]
    %v1867 = vld [vmem:[#allocation6 + $0xd0] sm:$0xff]
    %v1868 = vld [vmem:[#allocation6 + $0xd8] sm:$0xff]
    %v1869 = vld [vmem:[#allocation6 + $0xe0] sm:$0xff]
    %v1870 = vld [vmem:[#allocation6 + $0xe8] sm:$0xff]
    %v1871 = vld [vmem:[#allocation6 + $0xf0] sm:$0xff]
    %v1872 = vld [vmem:[#allocation6 + $0xf8] sm:$0xff]
    %v1873 = vld [vmem:[#allocation6 + $0x100] sm:$0xff]
    %v1874 = vld [vmem:[#allocation6 + $0x108] sm:$0xff]
    %v1875 = vld [vmem:[#allocation6 + $0x110] sm:$0xff]
    %v1876 = vld [vmem:[#allocation6 + $0x118] sm:$0xff]
    %v1877 = vld [vmem:[#allocation6 + $0x120] sm:$0xff]
    %v1878 = vld [vmem:[#allocation6 + $0x128] sm:$0xff]
    %v1879 = vld [vmem:[#allocation6 + $0x130] sm:$0xff]
    %v1880 = vld [vmem:[#allocation6 + $0x138] sm:$0xff]
    %v1881 = vld [vmem:[#allocation6 + $0x140] sm:$0xff]
    %v1882 = vld [vmem:[#allocation6 + $0x148] sm:$0xff]
    %v1883 = vld [vmem:[#allocation6 + $0x150] sm:$0xff]
    %v1884 = vld [vmem:[#allocation6 + $0x158] sm:$0xff]
    %v1885 = vld [vmem:[#allocation6 + $0x160] sm:$0xff]
    %v1886 = vld [vmem:[#allocation6 + $0x168] sm:$0xff]
    %v1887 = vld [vmem:[#allocation6 + $0x170] sm:$0xff]
    %v1888 = vld [vmem:[#allocation6 + $0x178] sm:$0xff]
    %v1889 = vld [vmem:[#allocation6 + $0x180] sm:$0xff]
    %v1890 = vld [vmem:[#allocation6 + $0x188] sm:$0xff]
    %v1891 = vld [vmem:[#allocation6 + $0x190] sm:$0xff]
    %v1892 = vld [vmem:[#allocation6 + $0x198] sm:$0xff]
    %v1893 = vld [vmem:[#allocation6 + $0x1a0] sm:$0xff]
    %v1894 = vld [vmem:[#allocation6 + $0x1a8] sm:$0xff]
    %v1895 = vld [vmem:[#allocation6 + $0x1b0] sm:$0xff]
    %v1896 = vld [vmem:[#allocation6 + $0x1b8] sm:$0xff]
    %v1897 = vld [vmem:[#allocation6 + $0x1c0] sm:$0xff]
    %v1898 = vld [vmem:[#allocation6 + $0x1c8] sm:$0xff]
    %v1899 = vld [vmem:[#allocation6 + $0x1d0] sm:$0xff]
    %v1900 = vld [vmem:[#allocation6 + $0x1d8] sm:$0xff]
    %v1901 = vld [vmem:[#allocation6 + $0x1e0] sm:$0xff]
    %v1902 = vld [vmem:[#allocation6 + $0x1e8] sm:$0xff]
    %v1903 = vld [vmem:[#allocation6 + $0x1f0] sm:$0xff]
    %v1904 = vld [vmem:[#allocation6 + $0x1f8] sm:$0xff]
    %1905 = vmatprep.subr.mxu0 %v1842
    %1906 = vmatpush1.msra.mxu0 %v1841
    %1907 = vmatprep.subr.mxu0 %v1846
    %1908 = vmatpush1.msra.mxu0 %v1845
    %1909 = vmatprep.subr.mxu0 %v1850
    %1910 = vmatpush1.msra.mxu0 %v1849
    %1911 = vmatprep.subr.mxu0 %v1854
    %1912 = vmatpush1.msra.mxu0 %v1853
    %1913 = vmatprep.subr.mxu0 %v1858
    %1914 = vmatpush1.msra.mxu0 %v1857
    %1915 = vmatprep.subr.mxu0 %v1862
    %1916 = vmatpush1.msra.mxu0 %v1861
    %1917 = vmatprep.subr.mxu0 %v1866
    %1918 = vmatpush1.msra.mxu0 %v1865
    %1919 = vmatprep.subr.mxu0 %v1870
    %1920 = vmatpush1.msra.mxu0 %v1869
    %1921 = vmatprep.subr.mxu0 %v1874
    %1922 = vmatpush1.msra.mxu0 %v1873
    %1923 = vmatprep.subr.mxu0 %v1878
    %1924 = vmatpush1.msra.mxu0 %v1877
    %1925 = vmatprep.subr.mxu0 %v1882
    %1926 = vmatpush1.msra.mxu0 %v1881
    %1927 = vmatprep.subr.mxu0 %v1886
    %1928 = vmatpush1.msra.mxu0 %v1885
    %1929 = vmatprep.subr.mxu0 %v1890
    %1930 = vmatpush1.msra.mxu0 %v1889
    %1931 = vmatprep.subr.mxu0 %v1894
    %1932 = vmatpush1.msra.mxu0 %v1893
    %1933 = vmatprep.subr.mxu0 %v1898
    %1934 = vmatpush1.msra.mxu0 %v1897
    %1935 = vmatprep.subr.mxu0 %v1902
    %1936 = vmatpush1.msra.mxu0 %v1901
    %1937 = vmatprep.subr.mxu0 0.0
    %1938 = vmatpush1.msra.mxu0 0.0
    %1939 = vmatprep.subr.mxu0 0.0
    %1940 = vmatpush1.msra.mxu0 0.0
    %1941 = vmatprep.subr.mxu0 0.0
    %1942 = vmatpush1.msra.mxu0 0.0
    %1943 = vmatprep.subr.mxu0 0.0
    %1944 = vmatpush1.msra.mxu0 0.0
    %1945 = vmatprep.subr.mxu0 0.0
    %1946 = vmatpush1.msra.mxu0 0.0
    %1947 = vmatprep.subr.mxu0 0.0
    %1948 = vmatpush1.msra.mxu0 0.0
    %1949 = vmatprep.subr.mxu0 0.0
    %1950 = vmatpush1.msra.mxu0 0.0
    %1951 = vmatprep.subr.mxu0 0.0
    %1952 = vmatpush1.msra.mxu0 0.0
    %1953 = vmatprep.subr.mxu0 0.0
    %1954 = vmatpush1.msra.mxu0 0.0
    %1955 = vmatprep.subr.mxu0 0.0
    %1956 = vmatpush1.msra.mxu0 0.0
    %1957 = vmatprep.subr.mxu0 0.0
    %1958 = vmatpush1.msra.mxu0 0.0
    %1959 = vmatprep.subr.mxu0 0.0
    %1960 = vmatpush1.msra.mxu0 0.0
    %1961 = vmatprep.subr.mxu0 0.0
    %1962 = vmatpush1.msra.mxu0 0.0
    %1963 = vmatprep.subr.mxu0 0.0
    %1964 = vmatpush1.msra.mxu0 0.0
    %1965 = vmatprep.subr.mxu0 0.0
    %1966 = vmatpush1.msra.mxu0 0.0
    %1967 = vmatprep.subr.mxu0 0.0
    %1968 = vmatpush1.msra.mxu0 0.0
    %1969 = vmatprep.mubr.f32.mxu0 0.0
    %1970 = vmatmul.mubr.f32.gmra.mrb[0].mxu0 %v1835
    %v1971 = vpop.f32.mrb[0].mxu0
    %v1972 = vadd.f32 0.0, %v1971
    %v1973 = vpop.f32.mrb[0].mxu0
    %v1974 = vadd.f32 0.0, %v1973
    %1975 = vdwg.mxu0
    %1976 = vmatprep.subr.mxu0 %v1844
    %1977 = vmatpush1.msra.mxu0 %v1843
    %1978 = vmatprep.subr.mxu0 %v1848
    %1979 = vmatpush1.msra.mxu0 %v1847
    %1980 = vmatprep.subr.mxu0 %v1852
    %1981 = vmatpush1.msra.mxu0 %v1851
    %1982 = vmatprep.subr.mxu0 %v1856
    %1983 = vmatpush1.msra.mxu0 %v1855
    %1984 = vmatprep.subr.mxu0 %v1860
    %1985 = vmatpush1.msra.mxu0 %v1859
    %1986 = vmatprep.subr.mxu0 %v1864
    %1987 = vmatpush1.msra.mxu0 %v1863
    %1988 = vmatprep.subr.mxu0 %v1868
    %1989 = vmatpush1.msra.mxu0 %v1867
    %1990 = vmatprep.subr.mxu0 %v1872
    %1991 = vmatpush1.msra.mxu0 %v1871
    %1992 = vmatprep.subr.mxu0 %v1876
    %1993 = vmatpush1.msra.mxu0 %v1875
    %1994 = vmatprep.subr.mxu0 %v1880
    %1995 = vmatpush1.msra.mxu0 %v1879
    %1996 = vmatprep.subr.mxu0 %v1884
    %1997 = vmatpush1.msra.mxu0 %v1883
    %1998 = vmatprep.subr.mxu0 %v1888
    %1999 = vmatpush1.msra.mxu0 %v1887
    %2000 = vmatprep.subr.mxu0 %v1892
    %2001 = vmatpush1.msra.mxu0 %v1891
    %2002 = vmatprep.subr.mxu0 %v1896
    %2003 = vmatpush1.msra.mxu0 %v1895
    %2004 = vmatprep.subr.mxu0 %v1900
    %2005 = vmatpush1.msra.mxu0 %v1899
    %2006 = vmatprep.subr.mxu0 %v1904
    %2007 = vmatpush1.msra.mxu0 %v1903
    %2008 = vmatprep.subr.mxu0 0.0
    %2009 = vmatpush1.msra.mxu0 0.0
    %2010 = vmatprep.subr.mxu0 0.0
    %2011 = vmatpush1.msra.mxu0 0.0
    %2012 = vmatprep.subr.mxu0 0.0
    %2013 = vmatpush1.msra.mxu0 0.0
    %2014 = vmatprep.subr.mxu0 0.0
    %2015 = vmatpush1.msra.mxu0 0.0
    %2016 = vmatprep.subr.mxu0 0.0
    %2017 = vmatpush1.msra.mxu0 0.0
    %2018 = vmatprep.subr.mxu0 0.0
    %2019 = vmatpush1.msra.mxu0 0.0
    %2020 = vmatprep.subr.mxu0 0.0
    %2021 = vmatpush1.msra.mxu0 0.0
    %2022 = vmatprep.subr.mxu0 0.0
    %2023 = vmatpush1.msra.mxu0 0.0
    %2024 = vmatprep.subr.mxu0 0.0
    %2025 = vmatpush1.msra.mxu0 0.0
    %2026 = vmatprep.subr.mxu0 0.0
    %2027 = vmatpush1.msra.mxu0 0.0
    %2028 = vmatprep.subr.mxu0 0.0
    %2029 = vmatpush1.msra.mxu0 0.0
    %2030 = vmatprep.subr.mxu0 0.0
    %2031 = vmatpush1.msra.mxu0 0.0
    %2032 = vmatprep.subr.mxu0 0.0
    %2033 = vmatpush1.msra.mxu0 0.0
    %2034 = vmatprep.subr.mxu0 0.0
    %2035 = vmatpush1.msra.mxu0 0.0
    %2036 = vmatprep.subr.mxu0 0.0
    %2037 = vmatpush1.msra.mxu0 0.0
    %2038 = vmatprep.subr.mxu0 0.0
    %2039 = vmatpush1.msra.mxu0 0.0
    %2040 = vmatprep.mubr.f32.mxu0 0.0
    %2041 = vmatmul.mubr.f32.gmra.mrb[0].mxu0 %v1835
    %v2042 = vpop.f32.mrb[0].mxu0
    %v2043 = vadd.f32 0.0, %v2042
    %v2044 = vpop.f32.mrb[0].mxu0
    %v2045 = vadd.f32 0.0, %v2044
    %2046 = vdwg.mxu0
    %v2047 = vadd.f32 %v1837, %v1972
    %v2048 = vadd.f32 %v1838, %v1974
    %v2049 = vadd.f32 %v1839, %v2043
    %v2050 = vadd.f32 %v1840, %v2045
    %v2051 = vmul.f32 %v2047, 0.5
    %v2052 = vmul.f32 %v2048, 0.5
    %v2053 = vmul.f32 %v2049, 0.5
    %v2054 = vtanh.pop %v2051
    %v2055 = vtanh.pop %v2052
    %v2056 = vtanh.pop %v2053
    %v2057 = vmul.f32 %v2054, 0.5
    %v2058 = vmul.f32 %v2055, 0.5
    %v2059 = vmul.f32 %v2056, 0.5
    %v2060 = vadd.f32 %v2057, 0.5
    %v2061 = vadd.f32 %v2058, 0.5
    %v2062 = vadd.f32 %v2059, 0.5
    %v2063 = vtanh.pop %v2050
    %v2064 = vmul.f32 %v2061, %v1833
    %v2065 = vmul.f32 %v2060, %v2063
    %v2066 = vadd.f32 %v2064, %v2065
    %v2067 = vtanh.pop %v2066
    %v2068 = vmul.f32 %v2062, %v2067
    %2069 = vst [vmem:[#allocation3 + $0x30] sm:$0xff] %v2068
    %v2070 = vld [vmem:[#allocation2 + $0xe0] sm:$0xff]
    %v2071 = vld [vmem:[#allocation2 + $0xe8] sm:$0xff]
    %v2072 = vld [vmem:[#allocation2 + $0xf0] sm:$0xff]
    %v2073 = vld [vmem:[#allocation2 + $0xf8] sm:$0xff]
    %v2074 = vld [vmem:[#allocation6] sm:$0xff]
    %v2075 = vld [vmem:[#allocation6 + $0x8] sm:$0xff]
    %v2076 = vld [vmem:[#allocation6 + $0x10] sm:$0xff]
    %v2077 = vld [vmem:[#allocation6 + $0x18] sm:$0xff]
    %v2078 = vld [vmem:[#allocation6 + $0x20] sm:$0xff]
    %v2079 = vld [vmem:[#allocation6 + $0x28] sm:$0xff]
    %v2080 = vld [vmem:[#allocation6 + $0x30] sm:$0xff]
    %v2081 = vld [vmem:[#allocation6 + $0x38] sm:$0xff]
    %v2082 = vld [vmem:[#allocation6 + $0x40] sm:$0xff]
    %v2083 = vld [vmem:[#allocation6 + $0x48] sm:$0xff]
    %v2084 = vld [vmem:[#allocation6 + $0x50] sm:$0xff]
    %v2085 = vld [vmem:[#allocation6 + $0x58] sm:$0xff]
    %v2086 = vld [vmem:[#allocation6 + $0x60] sm:$0xff]
    %v2087 = vld [vmem:[#allocation6 + $0x68] sm:$0xff]
    %v2088 = vld [vmem:[#allocation6 + $0x70] sm:$0xff]
    %v2089 = vld [vmem:[#allocation6 + $0x78] sm:$0xff]
    %v2090 = vld [vmem:[#allocation6 + $0x80] sm:$0xff]
    %v2091 = vld [vmem:[#allocation6 + $0x88] sm:$0xff]
    %v2092 = vld [vmem:[#allocation6 + $0x90] sm:$0xff]
    %v2093 = vld [vmem:[#allocation6 + $0x98] sm:$0xff]
    %v2094 = vld [vmem:[#allocation6 + $0xa0] sm:$0xff]
    %v2095 = vld [vmem:[#allocation6 + $0xa8] sm:$0xff]
    %v2096 = vld [vmem:[#allocation6 + $0xb0] sm:$0xff]
    %v2097 = vld [vmem:[#allocation6 + $0xb8] sm:$0xff]
    %v2098 = vld [vmem:[#allocation6 + $0xc0] sm:$0xff]
    %v2099 = vld [vmem:[#allocation6 + $0xc8] sm:$0xff]
    %v2100 = vld [vmem:[#allocation6 + $0xd0] sm:$0xff]
    %v2101 = vld [vmem:[#allocation6 + $0xd8] sm:$0xff]
    %v2102 = vld [vmem:[#allocation6 + $0xe0] sm:$0xff]
    %v2103 = vld [vmem:[#allocation6 + $0xe8] sm:$0xff]
    %v2104 = vld [vmem:[#allocation6 + $0xf0] sm:$0xff]
    %v2105 = vld [vmem:[#allocation6 + $0xf8] sm:$0xff]
    %v2106 = vld [vmem:[#allocation6 + $0x100] sm:$0xff]
    %v2107 = vld [vmem:[#allocation6 + $0x108] sm:$0xff]
    %v2108 = vld [vmem:[#allocation6 + $0x110] sm:$0xff]
    %v2109 = vld [vmem:[#allocation6 + $0x118] sm:$0xff]
    %v2110 = vld [vmem:[#allocation6 + $0x120] sm:$0xff]
    %v2111 = vld [vmem:[#allocation6 + $0x128] sm:$0xff]
    %v2112 = vld [vmem:[#allocation6 + $0x130] sm:$0xff]
    %v2113 = vld [vmem:[#allocation6 + $0x138] sm:$0xff]
    %v2114 = vld [vmem:[#allocation6 + $0x140] sm:$0xff]
    %v2115 = vld [vmem:[#allocation6 + $0x148] sm:$0xff]
    %v2116 = vld [vmem:[#allocation6 + $0x150] sm:$0xff]
    %v2117 = vld [vmem:[#allocation6 + $0x158] sm:$0xff]
    %v2118 = vld [vmem:[#allocation6 + $0x160] sm:$0xff]
    %v2119 = vld [vmem:[#allocation6 + $0x168] sm:$0xff]
    %v2120 = vld [vmem:[#allocation6 + $0x170] sm:$0xff]
    %v2121 = vld [vmem:[#allocation6 + $0x178] sm:$0xff]
    %v2122 = vld [vmem:[#allocation6 + $0x180] sm:$0xff]
    %v2123 = vld [vmem:[#allocation6 + $0x188] sm:$0xff]
    %v2124 = vld [vmem:[#allocation6 + $0x190] sm:$0xff]
    %v2125 = vld [vmem:[#allocation6 + $0x198] sm:$0xff]
    %v2126 = vld [vmem:[#allocation6 + $0x1a0] sm:$0xff]
    %v2127 = vld [vmem:[#allocation6 + $0x1a8] sm:$0xff]
    %v2128 = vld [vmem:[#allocation6 + $0x1b0] sm:$0xff]
    %v2129 = vld [vmem:[#allocation6 + $0x1b8] sm:$0xff]
    %v2130 = vld [vmem:[#allocation6 + $0x1c0] sm:$0xff]
    %v2131 = vld [vmem:[#allocation6 + $0x1c8] sm:$0xff]
    %v2132 = vld [vmem:[#allocation6 + $0x1d0] sm:$0xff]
    %v2133 = vld [vmem:[#allocation6 + $0x1d8] sm:$0xff]
    %v2134 = vld [vmem:[#allocation6 + $0x1e0] sm:$0xff]
    %v2135 = vld [vmem:[#allocation6 + $0x1e8] sm:$0xff]
    %v2136 = vld [vmem:[#allocation6 + $0x1f0] sm:$0xff]
    %v2137 = vld [vmem:[#allocation6 + $0x1f8] sm:$0xff]
    %2138 = vmatprep.subr.mxu0 %v2075
    %2139 = vmatpush1.msra.mxu0 %v2074
    %2140 = vmatprep.subr.mxu0 %v2079
    %2141 = vmatpush1.msra.mxu0 %v2078
    %2142 = vmatprep.subr.mxu0 %v2083
    %2143 = vmatpush1.msra.mxu0 %v2082
    %2144 = vmatprep.subr.mxu0 %v2087
    %2145 = vmatpush1.msra.mxu0 %v2086
    %2146 = vmatprep.subr.mxu0 %v2091
    %2147 = vmatpush1.msra.mxu0 %v2090
    %2148 = vmatprep.subr.mxu0 %v2095
    %2149 = vmatpush1.msra.mxu0 %v2094
    %2150 = vmatprep.subr.mxu0 %v2099
    %2151 = vmatpush1.msra.mxu0 %v2098
    %2152 = vmatprep.subr.mxu0 %v2103
    %2153 = vmatpush1.msra.mxu0 %v2102
    %2154 = vmatprep.subr.mxu0 %v2107
    %2155 = vmatpush1.msra.mxu0 %v2106
    %2156 = vmatprep.subr.mxu0 %v2111
    %2157 = vmatpush1.msra.mxu0 %v2110
    %2158 = vmatprep.subr.mxu0 %v2115
    %2159 = vmatpush1.msra.mxu0 %v2114
    %2160 = vmatprep.subr.mxu0 %v2119
    %2161 = vmatpush1.msra.mxu0 %v2118
    %2162 = vmatprep.subr.mxu0 %v2123
    %2163 = vmatpush1.msra.mxu0 %v2122
    %2164 = vmatprep.subr.mxu0 %v2127
    %2165 = vmatpush1.msra.mxu0 %v2126
    %2166 = vmatprep.subr.mxu0 %v2131
    %2167 = vmatpush1.msra.mxu0 %v2130
    %2168 = vmatprep.subr.mxu0 %v2135
    %2169 = vmatpush1.msra.mxu0 %v2134
    %2170 = vmatprep.subr.mxu0 0.0
    %2171 = vmatpush1.msra.mxu0 0.0
    %2172 = vmatprep.subr.mxu0 0.0
    %2173 = vmatpush1.msra.mxu0 0.0
    %2174 = vmatprep.subr.mxu0 0.0
    %2175 = vmatpush1.msra.mxu0 0.0
    %2176 = vmatprep.subr.mxu0 0.0
    %2177 = vmatpush1.msra.mxu0 0.0
    %2178 = vmatprep.subr.mxu0 0.0
    %2179 = vmatpush1.msra.mxu0 0.0
    %2180 = vmatprep.subr.mxu0 0.0
    %2181 = vmatpush1.msra.mxu0 0.0
    %2182 = vmatprep.subr.mxu0 0.0
    %2183 = vmatpush1.msra.mxu0 0.0
    %2184 = vmatprep.subr.mxu0 0.0
    %2185 = vmatpush1.msra.mxu0 0.0
    %2186 = vmatprep.subr.mxu0 0.0
    %2187 = vmatpush1.msra.mxu0 0.0
    %2188 = vmatprep.subr.mxu0 0.0
    %2189 = vmatpush1.msra.mxu0 0.0
    %2190 = vmatprep.subr.mxu0 0.0
    %2191 = vmatpush1.msra.mxu0 0.0
    %2192 = vmatprep.subr.mxu0 0.0
    %2193 = vmatpush1.msra.mxu0 0.0
    %2194 = vmatprep.subr.mxu0 0.0
    %2195 = vmatpush1.msra.mxu0 0.0
    %2196 = vmatprep.subr.mxu0 0.0
    %2197 = vmatpush1.msra.mxu0 0.0
    %2198 = vmatprep.subr.mxu0 0.0
    %2199 = vmatpush1.msra.mxu0 0.0
    %2200 = vmatprep.subr.mxu0 0.0
    %2201 = vmatpush1.msra.mxu0 0.0
    %2202 = vmatprep.mubr.f32.mxu0 0.0
    %2203 = vmatmul.mubr.f32.gmra.mrb[0].mxu0 %v2068
    %v2204 = vpop.f32.mrb[0].mxu0
    %v2205 = vadd.f32 0.0, %v2204
    %v2206 = vpop.f32.mrb[0].mxu0
    %v2207 = vadd.f32 0.0, %v2206
    %2208 = vdwg.mxu0
    %2209 = vmatprep.subr.mxu0 %v2077
    %2210 = vmatpush1.msra.mxu0 %v2076
    %2211 = vmatprep.subr.mxu0 %v2081
    %2212 = vmatpush1.msra.mxu0 %v2080
    %2213 = vmatprep.subr.mxu0 %v2085
    %2214 = vmatpush1.msra.mxu0 %v2084
    %2215 = vmatprep.subr.mxu0 %v2089
    %2216 = vmatpush1.msra.mxu0 %v2088
    %2217 = vmatprep.subr.mxu0 %v2093
    %2218 = vmatpush1.msra.mxu0 %v2092
    %2219 = vmatprep.subr.mxu0 %v2097
    %2220 = vmatpush1.msra.mxu0 %v2096
    %2221 = vmatprep.subr.mxu0 %v2101
    %2222 = vmatpush1.msra.mxu0 %v2100
    %2223 = vmatprep.subr.mxu0 %v2105
    %2224 = vmatpush1.msra.mxu0 %v2104
    %2225 = vmatprep.subr.mxu0 %v2109
    %2226 = vmatpush1.msra.mxu0 %v2108
    %2227 = vmatprep.subr.mxu0 %v2113
    %2228 = vmatpush1.msra.mxu0 %v2112
    %2229 = vmatprep.subr.mxu0 %v2117
    %2230 = vmatpush1.msra.mxu0 %v2116
    %2231 = vmatprep.subr.mxu0 %v2121
    %2232 = vmatpush1.msra.mxu0 %v2120
    %2233 = vmatprep.subr.mxu0 %v2125
    %2234 = vmatpush1.msra.mxu0 %v2124
    %2235 = vmatprep.subr.mxu0 %v2129
    %2236 = vmatpush1.msra.mxu0 %v2128
    %2237 = vmatprep.subr.mxu0 %v2133
    %2238 = vmatpush1.msra.mxu0 %v2132
    %2239 = vmatprep.subr.mxu0 %v2137
    %2240 = vmatpush1.msra.mxu0 %v2136
    %2241 = vmatprep.subr.mxu0 0.0
    %2242 = vmatpush1.msra.mxu0 0.0
    %2243 = vmatprep.subr.mxu0 0.0
    %2244 = vmatpush1.msra.mxu0 0.0
    %2245 = vmatprep.subr.mxu0 0.0
    %2246 = vmatpush1.msra.mxu0 0.0
    %2247 = vmatprep.subr.mxu0 0.0
    %2248 = vmatpush1.msra.mxu0 0.0
    %2249 = vmatprep.subr.mxu0 0.0
    %2250 = vmatpush1.msra.mxu0 0.0
    %2251 = vmatprep.subr.mxu0 0.0
    %2252 = vmatpush1.msra.mxu0 0.0
    %2253 = vmatprep.subr.mxu0 0.0
    %2254 = vmatpush1.msra.mxu0 0.0
    %2255 = vmatprep.subr.mxu0 0.0
    %2256 = vmatpush1.msra.mxu0 0.0
    %2257 = vmatprep.subr.mxu0 0.0
    %2258 = vmatpush1.msra.mxu0 0.0
    %2259 = vmatprep.subr.mxu0 0.0
    %2260 = vmatpush1.msra.mxu0 0.0
    %2261 = vmatprep.subr.mxu0 0.0
    %2262 = vmatpush1.msra.mxu0 0.0
    %2263 = vmatprep.subr.mxu0 0.0
    %2264 = vmatpush1.msra.mxu0 0.0
    %2265 = vmatprep.subr.mxu0 0.0
    %2266 = vmatpush1.msra.mxu0 0.0
    %2267 = vmatprep.subr.mxu0 0.0
    %2268 = vmatpush1.msra.mxu0 0.0
    %2269 = vmatprep.subr.mxu0 0.0
    %2270 = vmatpush1.msra.mxu0 0.0
    %2271 = vmatprep.subr.mxu0 0.0
    %2272 = vmatpush1.msra.mxu0 0.0
    %2273 = vmatprep.mubr.f32.mxu0 0.0
    %2274 = vmatmul.mubr.f32.gmra.mrb[0].mxu0 %v2068
    %v2275 = vpop.f32.mrb[0].mxu0
    %v2276 = vadd.f32 0.0, %v2275
    %v2277 = vpop.f32.mrb[0].mxu0
    %v2278 = vadd.f32 0.0, %v2277
    %2279 = vdwg.mxu0
    %v2280 = vadd.f32 %v2070, %v2205
    %v2281 = vadd.f32 %v2071, %v2207
    %v2282 = vadd.f32 %v2072, %v2276
    %v2283 = vadd.f32 %v2073, %v2278
    %v2284 = vmul.f32 %v2280, 0.5
    %v2285 = vmul.f32 %v2281, 0.5
    %v2286 = vmul.f32 %v2282, 0.5
    %v2287 = vtanh.pop %v2284
    %v2288 = vtanh.pop %v2285
    %v2289 = vtanh.pop %v2286
    %v2290 = vmul.f32 %v2287, 0.5
    %v2291 = vmul.f32 %v2288, 0.5
    %v2292 = vmul.f32 %v2289, 0.5
    %v2293 = vadd.f32 %v2290, 0.5
    %v2294 = vadd.f32 %v2291, 0.5
    %v2295 = vadd.f32 %v2292, 0.5
    %v2296 = vtanh.pop %v2283
    %v2297 = vmul.f32 %v2294, %v2066
    %v2298 = vmul.f32 %v2293, %v2296
    %v2299 = vadd.f32 %v2297, %v2298
    %v2300 = vtanh.pop %v2299
    %v2301 = vmul.f32 %v2295, %v2300
    %2302 = vst [vmem:[#allocation3 + $0x38] sm:$0xff] %v2301
    %2303 = vst [vmem:[%s8] sm:$0xff] %v2301
    %2304 = vst [vmem:[%s9] sm:$0xff] %v2299
    %v2305 = vld [vmem:[#allocation3] sm:$0xff]
    %v2306 = vld [vmem:[#allocation3 + $0x8] sm:$0xff]
    %v2307 = vld [vmem:[#allocation3 + $0x10] sm:$0xff]
    %v2308 = vld [vmem:[#allocation3 + $0x18] sm:$0xff]
    %v2309 = vld [vmem:[#allocation3 + $0x20] sm:$0xff]
    %v2310 = vld [vmem:[#allocation3 + $0x28] sm:$0xff]
    %v2311 = vld [vmem:[#allocation3 + $0x30] sm:$0xff]
    %v2312 = vld [vmem:[#allocation3 + $0x38] sm:$0xff]
    %v2313 = vld [vmem:[%s3] sm:$0xff]
    %v2314 = vld [vmem:[%s3 + $0x8] sm:$0xff]
    %v2315 = vld [vmem:[%s3 + $0x10] sm:$0xff]
    %v2316 = vld [vmem:[%s3 + $0x18] sm:$0xff]
    %v2317 = vld [vmem:[%s3 + $0x20] sm:$0xff]
    %v2318 = vld [vmem:[%s3 + $0x28] sm:$0xff]
    %v2319 = vld [vmem:[%s3 + $0x30] sm:$0xff]
    %v2320 = vld [vmem:[%s3 + $0x38] sm:$0xff]
    %v2321 = vld [vmem:[%s3 + $0x40] sm:$0xff]
    %v2322 = vld [vmem:[%s3 + $0x48] sm:$0xff]
    %v2323 = vld [vmem:[%s3 + $0x50] sm:$0xff]
    %v2324 = vld [vmem:[%s3 + $0x58] sm:$0xff]
    %v2325 = vld [vmem:[%s3 + $0x60] sm:$0xff]
    %v2326 = vld [vmem:[%s3 + $0x68] sm:$0xff]
    %v2327 = vld [vmem:[%s3 + $0x70] sm:$0xff]
    %v2328 = vld [vmem:[%s3 + $0x78] sm:$0xff]
    %v2329 = vld [vmem:[%s4] sm:$0x1]
    %v2331 = vlaneseq
    %v2332 = vshrl.u32 %v2331, 7
    %v2333 = vsub.s32 0, %v2332
    %v2334 = vrot.slane %v2329, %v2333
    %2336 = vmatprep.subr.mxu0 0.0
    %2337 = vmatpush1.msra.mxu0 %v2313
    %2338 = vmatprep.subr.mxu0 0.0
    %2339 = vmatpush1.msra.mxu0 %v2314
    %2340 = vmatprep.subr.mxu0 0.0
    %2341 = vmatpush1.msra.mxu0 %v2315
    %2342 = vmatprep.subr.mxu0 0.0
    %2343 = vmatpush1.msra.mxu0 %v2316
    %2344 = vmatprep.subr.mxu0 0.0
    %2345 = vmatpush1.msra.mxu0 %v2317
    %2346 = vmatprep.subr.mxu0 0.0
    %2347 = vmatpush1.msra.mxu0 %v2318
    %2348 = vmatprep.subr.mxu0 0.0
    %2349 = vmatpush1.msra.mxu0 %v2319
    %2350 = vmatprep.subr.mxu0 0.0
    %2351 = vmatpush1.msra.mxu0 %v2320
    %2352 = vmatprep.subr.mxu0 0.0
    %2353 = vmatpush1.msra.mxu0 %v2321
    %2354 = vmatprep.subr.mxu0 0.0
    %2355 = vmatpush1.msra.mxu0 %v2322
    %2356 = vmatprep.subr.mxu0 0.0
    %2357 = vmatpush1.msra.mxu0 %v2323
    %2358 = vmatprep.subr.mxu0 0.0
    %2359 = vmatpush1.msra.mxu0 %v2324
    %2360 = vmatprep.subr.mxu0 0.0
    %2361 = vmatpush1.msra.mxu0 %v2325
    %2362 = vmatprep.subr.mxu0 0.0
    %2363 = vmatpush1.msra.mxu0 %v2326
    %2364 = vmatprep.subr.mxu0 0.0
    %2365 = vmatpush1.msra.mxu0 %v2327
    %2366 = vmatprep.subr.mxu0 0.0
    %2367 = vmatpush1.msra.mxu0 %v2328
    %2368 = vmatprep.subr.mxu0 0.0
    %2369 = vmatpush1.msra.mxu0 0.0
    %2370 = vmatprep.subr.mxu0 0.0
    %2371 = vmatpush1.msra.mxu0 0.0
    %2372 = vmatprep.subr.mxu0 0.0
    %2373 = vmatpush1.msra.mxu0 0.0
    %2374 = vmatprep.subr.mxu0 0.0
    %2375 = vmatpush1.msra.mxu0 0.0
    %2376 = vmatprep.subr.mxu0 0.0
    %2377 = vmatpush1.msra.mxu0 0.0
    %2378 = vmatprep.subr.mxu0 0.0
    %2379 = vmatpush1.msra.mxu0 0.0
    %2380 = vmatprep.subr.mxu0 0.0
    %2381 = vmatpush1.msra.mxu0 0.0
    %2382 = vmatprep.subr.mxu0 0.0
    %2383 = vmatpush1.msra.mxu0 0.0
    %2384 = vmatprep.subr.mxu0 0.0
    %2385 = vmatpush1.msra.mxu0 0.0
    %2386 = vmatprep.subr.mxu0 0.0
    %2387 = vmatpush1.msra.mxu0 0.0
    %2388 = vmatprep.subr.mxu0 0.0
    %2389 = vmatpush1.msra.mxu0 0.0
    %2390 = vmatprep.subr.mxu0 0.0
    %2391 = vmatpush1.msra.mxu0 0.0
    %2392 = vmatprep.subr.mxu0 0.0
    %2393 = vmatpush1.msra.mxu0 0.0
    %2394 = vmatprep.subr.mxu0 0.0
    %2395 = vmatpush1.msra.mxu0 0.0
    %2396 = vmatprep.subr.mxu0 0.0
    %2397 = vmatpush1.msra.mxu0 0.0
    %2398 = vmatprep.subr.mxu0 0.0
    %2399 = vmatpush1.msra.mxu0 0.0
    %2400 = vmatprep.mubr.f32.mxu0 0.0
    %2401 = vmatmul.mubr.f32.gmra.mrb[0].mxu0 %v2305
    %v2402 = vpop.f32.mrb[0].mxu0
    %v2403 = vadd.f32 %v2334, %v2402
    %v2404 = vpop.f32.mrb[0].mxu0
    %2405 = vmatprep.mubr.f32.mxu0 0.0
    %2406 = vmatmul.mubr.f32.gmra.mrb[0].mxu0 %v2306
    %v2407 = vpop.f32.mrb[0].mxu0
    %v2408 = vadd.f32 %v2334, %v2407
    %v2409 = vpop.f32.mrb[0].mxu0
    %2410 = vmatprep.mubr.f32.mxu0 0.0
    %2411 = vmatmul.mubr.f32.gmra.mrb[0].mxu0 %v2307
    %v2412 = vpop.f32.mrb[0].mxu0
    %v2413 = vadd.f32 %v2334, %v2412
    %v2414 = vpop.f32.mrb[0].mxu0
    %2415 = vmatprep.mubr.f32.mxu0 0.0
    %2416 = vmatmul.mubr.f32.gmra.mrb[0].mxu0 %v2308
    %v2417 = vpop.f32.mrb[0].mxu0
    %v2418 = vadd.f32 %v2334, %v2417
    %v2419 = vpop.f32.mrb[0].mxu0
    %2420 = vmatprep.mubr.f32.mxu0 0.0
    %2421 = vmatmul.mubr.f32.gmra.mrb[0].mxu0 %v2309
    %v2422 = vpop.f32.mrb[0].mxu0
    %v2423 = vadd.f32 %v2334, %v2422
    %v2424 = vpop.f32.mrb[0].mxu0
    %2425 = vmatprep.mubr.f32.mxu0 0.0
    %2426 = vmatmul.mubr.f32.gmra.mrb[0].mxu0 %v2310
    %v2427 = vpop.f32.mrb[0].mxu0
    %v2428 = vadd.f32 %v2334, %v2427
    %v2429 = vpop.f32.mrb[0].mxu0
    %2430 = vmatprep.mubr.f32.mxu0 0.0
    %2431 = vmatmul.mubr.f32.gmra.mrb[0].mxu0 %v2311
    %v2432 = vpop.f32.mrb[0].mxu0
    %v2433 = vadd.f32 %v2334, %v2432
    %v2434 = vpop.f32.mrb[0].mxu0
    %2435 = vmatprep.mubr.f32.mxu0 0.0
    %2436 = vmatmul.mubr.f32.gmra.mrb[0].mxu0 %v2312
    %v2437 = vpop.f32.mrb[0].mxu0
    %v2438 = vadd.f32 %v2334, %v2437
    %v2439 = vpop.f32.mrb[0].mxu0
    %2440 = vdwg.mxu0
    %2441 = vst [vmem:[%s7] sm:$0xff] %v2403
    %2442 = vst [vmem:[%s7 + $0x8] sm:$0xff] %v2408
    %2443 = vst [vmem:[%s7 + $0x10] sm:$0xff] %v2413
    %2444 = vst [vmem:[%s7 + $0x18] sm:$0xff] %v2418
    %2445 = vst [vmem:[%s7 + $0x20] sm:$0xff] %v2423
    %2446 = vst [vmem:[%s7 + $0x28] sm:$0xff] %v2428
    %2447 = vst [vmem:[%s7 + $0x30] sm:$0xff] %v2433
    %2448 = vst [vmem:[%s7 + $0x38] sm:$0xff] %v2438
    // Predicated region
    $region38: #{character_lstm_forward.1} parent=1 // pred_check
      _
    $region39: #{character_lstm_forward.1} parent=1 // pred_check_branch
      %2450 = sbr.rel (0) target = $region41
    $region40: #{character_lstm_forward.1} parent=1 // pred_region
      _
    $region41: #{character_lstm_forward.1} parent=1 // pred_fallthru
      _
    // Predicated region
    $region42: #{character_lstm_forward.1} parent=1 // pred_check
      _
    $region43: #{character_lstm_forward.1} parent=1 // pred_check_branch
      %2452 = sbr.rel (0) target = $region45
    $region44: #{character_lstm_forward.1} parent=1 // pred_region
      _
    $region45: #{character_lstm_forward.1} parent=1 // pred_fallthru
      _
    // Predicated region
    $region46: #{character_lstm_forward.1} parent=1 // pred_check
      _
    $region47: #{character_lstm_forward.1} parent=1 // pred_check_branch
      %2454 = sbr.rel (0) target = $region49
    $region48: #{character_lstm_forward.1} parent=1 // pred_region
      _
    $region49: #{character_lstm_forward.1} parent=1 // pred_fallthru
      _
    // Predicated region
    $region50: #{character_lstm_forward.1} parent=1 // pred_check
      _
    $region51: #{character_lstm_forward.1} parent=1 // pred_check_branch
      %2456 = sbr.rel (0) target = $region53
    $region52: #{character_lstm_forward.1} parent=1 // pred_region
      _
    $region53: #{character_lstm_forward.1} parent=1 // pred_fallthru
      _
    // Predicated region
    $region54: #{character_lstm_forward.1} parent=1 // pred_check
      _
    $region55: #{character_lstm_forward.1} parent=1 // pred_check_branch
      %2458 = sbr.rel (0) target = $region57
    $region56: #{character_lstm_forward.1} parent=1 // pred_region
      _
    $region57: #{character_lstm_forward.1} parent=1 // pred_fallthru
      _
    // Predicated region
    $region58: #{character_lstm_forward.1} parent=1 // pred_check
      _
    $region59: #{character_lstm_forward.1} parent=1 // pred_check_branch
      %2460 = sbr.rel (0) target = $region61
    $region60: #{character_lstm_forward.1} parent=1 // pred_region
      _
    $region61: #{character_lstm_forward.1} parent=1 // pred_fallthru
      _
    %2461 = vsyncpa [#allocation5], 1
    %2462 = vsyncpa [#allocation7], 1

</llo_original>
